<compile_context>
chip_gen: v5e
topology: v5e:2x2
jax: 0.10.0
libtpu: 0.0.40
codegen_flags: <defaults>
</compile_context>

<pallas_src>
import numpy as np
import jax
import jax.numpy as jnp
from jax.experimental import pallas as pl
from jax.experimental.pallas import tpu as pltpu


# -----------------------------------------------------------------------------
# Host-side constant builders (tiny; become jit-time constants)
# -----------------------------------------------------------------------------
def _col_masks(Hr, Wr):
    """(2, Hr*Wr) f32: row0 = 'left neighbour valid', row1 = 'right valid'."""
    col = np.arange(Hr * Wr) % Wr
    return np.stack([(col > 0), (col < Wr - 1)], axis=0).astype(np.float32)


def _down_select(Hr, Wr):
    """(Hr*Wr, Hr*Wr//4) 0/1 matrix: keep every other row/col (stride-2 pick)."""
    Ho, Wo = Hr // 2, Wr // 2
    S = np.zeros((Hr * Wr, Ho * Wo), np.float32)
    for yo in range(Ho):
        for xo in range(Wo):
            S[(2 * yo) * Wr + 2 * xo, yo * Wo + xo] = 1.0
    return S


def _up_select(Hs, Ws, H, W):
    """(Hs*Ws, H*W) 0/1 matrix: nearest-neighbour upsample by factor H//Hs."""
    f = H // Hs
    U = np.zeros((Hs * Ws, H * W), np.float32)
    for y in range(H):
        for x in range(W):
            U[(y // f) * Ws + (x // f), y * W + x] = 1.0
    return U


def _flat_w(w):
    """(K, K, Cin, Cout) -> (Cout, K*K*Cin) bf16 (im2col weight layout)."""
    K, _, cin, cout = w.shape
    return jnp.transpose(w, (3, 0, 1, 2)).reshape(cout, K * K * cin).astype(jnp.bfloat16)


# -----------------------------------------------------------------------------
# Parameter initialization (deterministic, PyTorch-like fan-in uniform)
# -----------------------------------------------------------------------------
def _init_conv(key, K, cin, cout, with_bias=True):
    kw, kb = jax.random.split(key)
    scale = 1.0 / float(np.sqrt(cin * K * K))
    w = jax.random.uniform(kw, (K, K, cin, cout), jnp.float32, -scale, scale)
    b = jax.random.uniform(kb, (cout,), jnp.float32, -scale, scale) if with_bias else None
    return w, b


def init_params(key, input_nc=1, ndf=8, feature_channels=8, down_samples=2):
    params = {}
    keys = iter(jax.random.split(key, 64))
    # --- PixelDiscriminator ---
    # Convs followed by InstanceNorm2d(affine=False) get no bias: the bias is
    # exactly cancelled by the instance-norm mean subtraction, so dropping it
    # does not change the forward output of the PyTorch module.
    params["p0"] = _init_conv(next(keys), 3, input_nc, ndf)                      # + LeakyReLU
    params["p1"] = _init_conv(next(keys), 3, ndf, ndf * 2, with_bias=False)      # + IN + LeakyReLU
    for i in range(2, 9):
        params[f"p{i}"] = _init_conv(next(keys), 3, ndf * 2, ndf * 2, with_bias=False)
    params["pf"] = _init_conv(next(keys), 1, ndf * 2, 1)                         # 1x1 conv, bias
    # --- Attention (approximation, see TODO at top) ---
    params["a_in"] = _init_conv(next(keys), 3, input_nc, feature_channels)
    for i in range(down_samples):
        params[f"a_down{i}"] = _init_conv(next(keys), 3, feature_channels, feature_channels)
    params["a_mid"] = _init_conv(next(keys), 3, feature_channels, feature_channels)
    params["a_out"] = _init_conv(next(keys), 3, feature_channels, 1)
    return params


# -----------------------------------------------------------------------------
# Fully-fused forward pass
# -----------------------------------------------------------------------------
def attention_pixel_discriminator(x_nchw, params, down_samples=2):
    """Forward of AttentionPixelDiscriminator (eval path; the attention-map
    detach() does not change the forward value).  Returns final_pred (N, 1)."""
    N, C, H, W = x_nchw.shape
    assert H % (2 ** down_samples) == 0 and W % (2 ** down_samples) == 0
    HW = H * W
    x = x_nchw.reshape(N, C, HW).astype(jnp.float32)

    # ---- assemble ordered kernel-input list and matching BlockSpecs ----
    inputs = [x]
    in_specs = [pl.BlockSpec((1, C, HW), lambda n: (n, 0, 0))]

    def _const_map(nd):
        return lambda n: (0,) * nd

    def add(arr):
        arr = jnp.asarray(arr)
        idx = len(inputs)
        inputs.append(arr)
        in_specs.append(pl.BlockSpec(arr.shape, _const_map(arr.ndim)))
        return idx

    def add_conv(name):
        w, b = params[name]
        wi = add(_flat_w(w))
        bi = add(b.reshape(-1, 1).astype(jnp.float32)) if b is not None else None
        return wi, bi

    res_list = [(H >> s, W >> s) for s in range(down_samples + 1)]
    mask_idx = {r: add(_col_masks(*r)) for r in res_list}
    sdown_idx = [add(jnp.asarray(_down_select(*res_list[i]), jnp.bfloat16))
                 for i in range(down_samples)]
    up_idx = add(jnp.asarray(_up_select(*res_list[-1], H, W), jnp.bfloat16))

    d_layers = []
    wi, bi = add_conv("p0")
    d_layers.append((wi, bi, False, "leaky"))
    for i in range(1, 9):
        wi, bi = add_conv(f"p{i}")
        d_layers.append((wi, bi, True, "leaky"))
    wf_i, bf_i = add_conv("pf")

    a_in = add_conv("a_in")
    a_down = [add_conv(f"a_down{i}") for i in range(down_samples)]
    a_mid = add_conv("a_mid")
    a_out = add_conv("a_out")

    # ---- the fused kernel: one batch element per grid step ----
    def kernel(*refs):
        out_ref = refs[-1]

        def norm_act(y, use_norm, act):
            if use_norm:  # InstanceNorm2d: per-channel, biased var, eps=1e-5, no affine
                inv = 1.0 / y.shape[1]
                mean = jnp.sum(y, axis=1, keepdims=True) * inv
                var = jnp.sum(y * y, axis=1, keepdims=True) * inv - mean * mean
                y = (y - mean) * jax.lax.rsqrt(jnp.maximum(var, 0.0) + 1e-5)
            if act == "leaky":
                y = jnp.where(y >= 0.0, y, 0.2 * y)
            elif act == "relu":
                y = jnp.maximum(y, 0.0)
            elif act == "sigmoid":
                y = jax.nn.sigmoid(y)
            return y

        def conv3x3(h, widx, bidx, Hr, Wr, use_norm, act):
            # h: (Cin, Hr*Wr) f32.  3x3, stride 1, pad 1 as ONE im2col matmul.
            cin, hw = h.shape
            pad = Wr + 1
            zeros = jnp.zeros((cin, pad), jnp.float32)
            buf = jnp.concatenate([zeros, h, zeros], axis=1)     # flat zero halo
            m = refs[mask_idx[(Hr, Wr)]][...]
            ml, mr = m[0:1, :], m[1:2, :]
            taps = []
            for ky in (-1, 0, 1):
                for kx in (-1, 0, 1):
                    s = pad + ky * Wr + kx
                    t = buf[:, s:s + hw]                          # static lane slice
                    if kx == -1:
                        t = t * ml                                # mask row wrap (left)
                    elif kx == 1:
                        t = t * mr                                # mask row wrap (right)
                    taps.append(t)
            patches = jnp.concatenate(taps, axis=0).astype(jnp.bfloat16)   # (9*Cin, hw)
            y = jnp.dot(refs[widx][...], patches,
                        preferred_element_type=jnp.float32)       # (Cout, hw) f32
            if bidx is not None:
                y = y + refs[bidx][...]
            return norm_act(y, use_norm, act)

        x0 = refs[0][0]                                           # (C, H*W) f32

        # --- PixelDiscriminator: 9 x (3x3 conv [+IN] + LeakyReLU) + 1x1 conv ---
        h = x0
        for (widx, bidx, use_norm, act) in d_layers:
            h = conv3x3(h, widx, bidx, H, W, use_norm, act)
        pred = jnp.dot(refs[wf_i][...], h.astype(jnp.bfloat16),
                       preferred_element_type=jnp.float32) + refs[bf_i][...]   # (1, H*W)

        # --- Attention branch (forward value of .detach() is unchanged) ---
        a = conv3x3(x0, a_in[0], a_in[1], H, W, False, "relu")
        for i in range(down_samples):
            Hr, Wr = res_list[i]
            a = conv3x3(a, a_down[i][0], a_down[i][1], Hr, Wr, False, "relu")
            a = jnp.dot(a.astype(jnp.bfloat16), refs[sdown_idx[i]][...],
                        preferred_element_type=jnp.float32)       # stride-2 keep
        Hs, Ws = res_list[-1]
        a = conv3x3(a, a_mid[0], a_mid[1], Hs, Ws, False, "relu")
        a = jnp.dot(a.astype(jnp.bfloat16), refs[up_idx][...],
                    preferred_element_type=jnp.float32)           # nearest upsample
        att = conv3x3(a, a_out[0], a_out[1], H, W, False, "sigmoid")           # (1, H*W)

        # --- fused attention-weighted average ---
        num = jnp.sum(pred * att, axis=1, keepdims=True)
        den = jnp.sum(att, axis=1, keepdims=True)                 # sigmoid > 0 -> den > 0
        out_ref[...] = (num / den).reshape(1, 1, 1)

    out = pl.pallas_call(
        kernel,
        out_shape=jax.ShapeDtypeStruct((N, 1, 1), jnp.float32),
        grid=(N,),
        in_specs=in_specs,
        out_specs=pl.BlockSpec((1, 1, 1), lambda n: (n, 0, 0)),
        compiler_params=pltpu.CompilerParams(
            dimension_semantics=("parallel",)),        # batch axis -> both TCs on v7x
    )(*inputs)
    return out.reshape(N, 1)


# -----------------------------------------------------------------------------
if __name__ == "__main__":
    key = jax.random.PRNGKey(0)
    k_param, k_input = jax.random.split(key)

    # small shapes: batch=2, input_nc=1 (module default), spatial=16,
    # ndf=8, feature_channels=8, down_samples=2
    N, C, H, W = 2, 1, 16, 16
    params = init_params(k_param, input_nc=C, ndf=8,
                         feature_channels=8, down_samples=2)
    x = jax.random.normal(k_input, (N, C, H, W), dtype=jnp.float32)

    fwd = jax.jit(attention_pixel_discriminator)
    out = jax.block_until_ready(fwd(x, params))
    assert out.shape == (N, 1)
    assert bool(jnp.all(jnp.isfinite(out)))
    print("KERNEL_OK")
</pallas_src>

<mosaic_0001>
module attributes {stable_mosaic.version = 11 : i64} {
  func.func @kernel(%arg0: i32, %arg1: memref<1x1x256xf32, #tpu.memory_space<vmem>>, %arg2: memref<2x256xf32, #tpu.memory_space<vmem>>, %arg3: memref<2x64xf32, #tpu.memory_space<vmem>>, %arg4: memref<2x16xf32, #tpu.memory_space<vmem>>, %arg5: memref<256x64xbf16, #tpu.memory_space<vmem>>, %arg6: memref<64x16xbf16, #tpu.memory_space<vmem>>, %arg7: memref<16x256xbf16, #tpu.memory_space<vmem>>, %arg8: memref<8x9xbf16, #tpu.memory_space<vmem>>, %arg9: memref<8x1xf32, #tpu.memory_space<vmem>>, %arg10: memref<16x72xbf16, #tpu.memory_space<vmem>>, %arg11: memref<16x144xbf16, #tpu.memory_space<vmem>>, %arg12: memref<16x144xbf16, #tpu.memory_space<vmem>>, %arg13: memref<16x144xbf16, #tpu.memory_space<vmem>>, %arg14: memref<16x144xbf16, #tpu.memory_space<vmem>>, %arg15: memref<16x144xbf16, #tpu.memory_space<vmem>>, %arg16: memref<16x144xbf16, #tpu.memory_space<vmem>>, %arg17: memref<16x144xbf16, #tpu.memory_space<vmem>>, %arg18: memref<1x16xbf16, #tpu.memory_space<vmem>>, %arg19: memref<1x1xf32, #tpu.memory_space<vmem>>, %arg20: memref<8x9xbf16, #tpu.memory_space<vmem>>, %arg21: memref<8x1xf32, #tpu.memory_space<vmem>>, %arg22: memref<8x72xbf16, #tpu.memory_space<vmem>>, %arg23: memref<8x1xf32, #tpu.memory_space<vmem>>, %arg24: memref<8x72xbf16, #tpu.memory_space<vmem>>, %arg25: memref<8x1xf32, #tpu.memory_space<vmem>>, %arg26: memref<8x72xbf16, #tpu.memory_space<vmem>>, %arg27: memref<8x1xf32, #tpu.memory_space<vmem>>, %arg28: memref<1x72xbf16, #tpu.memory_space<vmem>>, %arg29: memref<1x1xf32, #tpu.memory_space<vmem>>, %arg30: memref<1x1x1xf32, #tpu.memory_space<vmem>>) attributes {dimension_semantics = [#tpu.dimension_semantics<parallel>], iteration_bounds = array<i64: 2>, scalar_prefetch = 0 : i64, scratch_operands = 0 : i64, tpu.core_type = #tpu.core_type<tc>, window_params = [{transform_indices = @transform_0, window_bounds = array<i64: 1, 1, 256>}, {pipeline_mode = #tpu.pipeline_mode<synchronous>, transform_indices = @transform_1, window_bounds = array<i64: 2, 256>}, {pipeline_mode = #tpu.pipeline_mode<synchronous>, transform_indices = @transform_2, window_bounds = array<i64: 2, 64>}, {pipeline_mode = #tpu.pipeline_mode<synchronous>, transform_indices = @transform_3, window_bounds = array<i64: 2, 16>}, {pipeline_mode = #tpu.pipeline_mode<synchronous>, transform_indices = @transform_4, window_bounds = array<i64: 256, 64>}, {pipeline_mode = #tpu.pipeline_mode<synchronous>, transform_indices = @transform_5, window_bounds = array<i64: 64, 16>}, {pipeline_mode = #tpu.pipeline_mode<synchronous>, transform_indices = @transform_6, window_bounds = array<i64: 16, 256>}, {pipeline_mode = #tpu.pipeline_mode<synchronous>, transform_indices = @transform_7, window_bounds = array<i64: 8, 9>}, {pipeline_mode = #tpu.pipeline_mode<synchronous>, transform_indices = @transform_8, window_bounds = array<i64: 8, 1>}, {pipeline_mode = #tpu.pipeline_mode<synchronous>, transform_indices = @transform_9, window_bounds = array<i64: 16, 72>}, {pipeline_mode = #tpu.pipeline_mode<synchronous>, transform_indices = @transform_10, window_bounds = array<i64: 16, 144>}, {pipeline_mode = #tpu.pipeline_mode<synchronous>, transform_indices = @transform_11, window_bounds = array<i64: 16, 144>}, {pipeline_mode = #tpu.pipeline_mode<synchronous>, transform_indices = @transform_12, window_bounds = array<i64: 16, 144>}, {pipeline_mode = #tpu.pipeline_mode<synchronous>, transform_indices = @transform_13, window_bounds = array<i64: 16, 144>}, {pipeline_mode = #tpu.pipeline_mode<synchronous>, transform_indices = @transform_14, window_bounds = array<i64: 16, 144>}, {pipeline_mode = #tpu.pipeline_mode<synchronous>, transform_indices = @transform_15, window_bounds = array<i64: 16, 144>}, {pipeline_mode = #tpu.pipeline_mode<synchronous>, transform_indices = @transform_16, window_bounds = array<i64: 16, 144>}, {pipeline_mode = #tpu.pipeline_mode<synchronous>, transform_indices = @transform_17, window_bounds = array<i64: 1, 16>}, {pipeline_mode = #tpu.pipeline_mode<synchronous>, transform_indices = @transform_18, window_bounds = array<i64: 1, 1>}, {pipeline_mode = #tpu.pipeline_mode<synchronous>, transform_indices = @transform_19, window_bounds = array<i64: 8, 9>}, {pipeline_mode = #tpu.pipeline_mode<synchronous>, transform_indices = @transform_20, window_bounds = array<i64: 8, 1>}, {pipeline_mode = #tpu.pipeline_mode<synchronous>, transform_indices = @transform_21, window_bounds = array<i64: 8, 72>}, {pipeline_mode = #tpu.pipeline_mode<synchronous>, transform_indices = @transform_22, window_bounds = array<i64: 8, 1>}, {pipeline_mode = #tpu.pipeline_mode<synchronous>, transform_indices = @transform_23, window_bounds = array<i64: 8, 72>}, {pipeline_mode = #tpu.pipeline_mode<synchronous>, transform_indices = @transform_24, window_bounds = array<i64: 8, 1>}, {pipeline_mode = #tpu.pipeline_mode<synchronous>, transform_indices = @transform_25, window_bounds = array<i64: 8, 72>}, {pipeline_mode = #tpu.pipeline_mode<synchronous>, transform_indices = @transform_26, window_bounds = array<i64: 8, 1>}, {pipeline_mode = #tpu.pipeline_mode<synchronous>, transform_indices = @transform_27, window_bounds = array<i64: 1, 72>}, {pipeline_mode = #tpu.pipeline_mode<synchronous>, transform_indices = @transform_28, window_bounds = array<i64: 1, 1>}, {transform_indices = @transform_29, window_bounds = array<i64: 1, 1, 1>}]} {
    %c0 = arith.constant 0 : index
    %c0_0 = arith.constant 0 : index
    %c0_1 = arith.constant 0 : index
    %0 = vector.load %arg1[%c0, %c0_0, %c0_1] : memref<1x1x256xf32, #tpu.memory_space<vmem>>, vector<1x1x256xf32>
    %1 = vector.shape_cast %0 : vector<1x1x256xf32> to vector<1x256xf32>
    %cst = arith.constant 0.000000e+00 : f32
    %2 = vector.broadcast %cst : f32 to vector<1x17xf32>
    %3 = tpu.concatenate %2, %1, %2 in 1 : vector<1x17xf32>, vector<1x256xf32>, vector<1x17xf32> -> vector<1x290xf32>
    %c0_2 = arith.constant 0 : index
    %c0_3 = arith.constant 0 : index
    %4 = vector.load %arg2[%c0_2, %c0_3] : memref<2x256xf32, #tpu.memory_space<vmem>>, vector<2x256xf32>
    %5 = vector.extract_strided_slice %4 {offsets = [0, 0], sizes = [1, 256], strides = [1, 1]} : vector<2x256xf32> to vector<1x256xf32>
    %6 = vector.extract_strided_slice %4 {offsets = [1, 0], sizes = [1, 256], strides = [1, 1]} : vector<2x256xf32> to vector<1x256xf32>
    %7 = vector.extract_strided_slice %3 {offsets = [0, 0], sizes = [1, 256], strides = [1, 1]} : vector<1x290xf32> to vector<1x256xf32>
    %8 = arith.mulf %7, %5 : vector<1x256xf32>
    %9 = vector.extract_strided_slice %3 {offsets = [0, 1], sizes = [1, 256], strides = [1, 1]} : vector<1x290xf32> to vector<1x256xf32>
    %10 = vector.extract_strided_slice %3 {offsets = [0, 2], sizes = [1, 256], strides = [1, 1]} : vector<1x290xf32> to vector<1x256xf32>
    %11 = arith.mulf %10, %6 : vector<1x256xf32>
    %12 = vector.extract_strided_slice %3 {offsets = [0, 16], sizes = [1, 256], strides = [1, 1]} : vector<1x290xf32> to vector<1x256xf32>
    %13 = arith.mulf %12, %5 : vector<1x256xf32>
    %14 = vector.extract_strided_slice %3 {offsets = [0, 17], sizes = [1, 256], strides = [1, 1]} : vector<1x290xf32> to vector<1x256xf32>
    %15 = vector.extract_strided_slice %3 {offsets = [0, 18], sizes = [1, 256], strides = [1, 1]} : vector<1x290xf32> to vector<1x256xf32>
    %16 = arith.mulf %15, %6 : vector<1x256xf32>
    %17 = vector.extract_strided_slice %3 {offsets = [0, 32], sizes = [1, 256], strides = [1, 1]} : vector<1x290xf32> to vector<1x256xf32>
    %18 = arith.mulf %17, %5 : vector<1x256xf32>
    %19 = vector.extract_strided_slice %3 {offsets = [0, 33], sizes = [1, 256], strides = [1, 1]} : vector<1x290xf32> to vector<1x256xf32>
    %20 = vector.extract_strided_slice %3 {offsets = [0, 34], sizes = [1, 256], strides = [1, 1]} : vector<1x290xf32> to vector<1x256xf32>
    %21 = arith.mulf %20, %6 : vector<1x256xf32>
    %22 = tpu.concatenate %8, %9, %11, %13, %14, %16, %18, %19, %21 in 0 : vector<1x256xf32>, vector<1x256xf32>, vector<1x256xf32>, vector<1x256xf32>, vector<1x256xf32>, vector<1x256xf32>, vector<1x256xf32>, vector<1x256xf32>, vector<1x256xf32> -> vector<9x256xf32>
    %23 = arith.truncf %22 : vector<9x256xf32> to vector<9x256xbf16>
    %c0_4 = arith.constant 0 : index
    %c0_5 = arith.constant 0 : index
    %24 = vector.load %arg8[%c0_4, %c0_5] : memref<8x9xbf16, #tpu.memory_space<vmem>>, vector<8x9xbf16>
    %cst_6 = arith.constant dense<0.000000e+00> : vector<8x256xf32>
    %25 = tpu.matmul %24, %23, %cst_6 {dimension_numbers = #tpu.dot_dimension_numbers<[1], [0], [0], [1], [0, 0, 1, 1], [], []>} : vector<8x9xbf16>, vector<9x256xbf16>, vector<8x256xf32> -> vector<8x256xf32>
    %c0_7 = arith.constant 0 : index
    %c0_8 = arith.constant 0 : index
    %26 = vector.load %arg9[%c0_7, %c0_8] : memref<8x1xf32, #tpu.memory_space<vmem>>, vector<8x1xf32>
    %27 = vector.broadcast %26 : vector<8x1xf32> to vector<8x256xf32>
    %28 = arith.addf %25, %27 : vector<8x256xf32>
    %cst_9 = arith.constant 0.000000e+00 : f32
    %29 = vector.broadcast %cst_9 : f32 to vector<8x256xf32>
    %30 = arith.cmpf oge, %28, %29 : vector<8x256xf32>
    %cst_10 = arith.constant 2.000000e-01 : f32
    %31 = vector.broadcast %cst_10 : f32 to vector<8x256xf32>
    %32 = arith.mulf %31, %28 : vector<8x256xf32>
    %33 = arith.select %30, %28, %32 : vector<8x256xi1>, vector<8x256xf32>
    %cst_11 = arith.constant 0.000000e+00 : f32
    %34 = vector.broadcast %cst_11 : f32 to vector<8x17xf32>
    %35 = tpu.concatenate %34, %33, %34 in 1 : vector<8x17xf32>, vector<8x256xf32>, vector<8x17xf32> -> vector<8x290xf32>
    %c0_12 = arith.constant 0 : index
    %c0_13 = arith.constant 0 : index
    %36 = vector.load %arg2[%c0_12, %c0_13] : memref<2x256xf32, #tpu.memory_space<vmem>>, vector<2x256xf32>
    %37 = vector.extract_strided_slice %36 {offsets = [0, 0], sizes = [1, 256], strides = [1, 1]} : vector<2x256xf32> to vector<1x256xf32>
    %38 = vector.extract_strided_slice %36 {offsets = [1, 0], sizes = [1, 256], strides = [1, 1]} : vector<2x256xf32> to vector<1x256xf32>
    %39 = vector.extract_strided_slice %35 {offsets = [0, 0], sizes = [8, 256], strides = [1, 1]} : vector<8x290xf32> to vector<8x256xf32>
    %40 = vector.broadcast %37 : vector<1x256xf32> to vector<8x256xf32>
    %41 = arith.mulf %39, %40 : vector<8x256xf32>
    %42 = vector.extract_strided_slice %35 {offsets = [0, 1], sizes = [8, 256], strides = [1, 1]} : vector<8x290xf32> to vector<8x256xf32>
    %43 = vector.extract_strided_slice %35 {offsets = [0, 2], sizes = [8, 256], strides = [1, 1]} : vector<8x290xf32> to vector<8x256xf32>
    %44 = vector.broadcast %38 : vector<1x256xf32> to vector<8x256xf32>
    %45 = arith.mulf %43, %44 : vector<8x256xf32>
    %46 = vector.extract_strided_slice %35 {offsets = [0, 16], sizes = [8, 256], strides = [1, 1]} : vector<8x290xf32> to vector<8x256xf32>
    %47 = vector.broadcast %37 : vector<1x256xf32> to vector<8x256xf32>
    %48 = arith.mulf %46, %47 : vector<8x256xf32>
    %49 = vector.extract_strided_slice %35 {offsets = [0, 17], sizes = [8, 256], strides = [1, 1]} : vector<8x290xf32> to vector<8x256xf32>
    %50 = vector.extract_strided_slice %35 {offsets = [0, 18], sizes = [8, 256], strides = [1, 1]} : vector<8x290xf32> to vector<8x256xf32>
    %51 = vector.broadcast %38 : vector<1x256xf32> to vector<8x256xf32>
    %52 = arith.mulf %50, %51 : vector<8x256xf32>
    %53 = vector.extract_strided_slice %35 {offsets = [0, 32], sizes = [8, 256], strides = [1, 1]} : vector<8x290xf32> to vector<8x256xf32>
    %54 = vector.broadcast %37 : vector<1x256xf32> to vector<8x256xf32>
    %55 = arith.mulf %53, %54 : vector<8x256xf32>
    %56 = vector.extract_strided_slice %35 {offsets = [0, 33], sizes = [8, 256], strides = [1, 1]} : vector<8x290xf32> to vector<8x256xf32>
    %57 = vector.extract_strided_slice %35 {offsets = [0, 34], sizes = [8, 256], strides = [1, 1]} : vector<8x290xf32> to vector<8x256xf32>
    %58 = vector.broadcast %38 : vector<1x256xf32> to vector<8x256xf32>
    %59 = arith.mulf %57, %58 : vector<8x256xf32>
    %60 = tpu.concatenate %41, %42, %45, %48, %49, %52, %55, %56, %59 in 0 : vector<8x256xf32>, vector<8x256xf32>, vector<8x256xf32>, vector<8x256xf32>, vector<8x256xf32>, vector<8x256xf32>, vector<8x256xf32>, vector<8x256xf32>, vector<8x256xf32> -> vector<72x256xf32>
    %61 = arith.truncf %60 : vector<72x256xf32> to vector<72x256xbf16>
    %c0_14 = arith.constant 0 : index
    %c0_15 = arith.constant 0 : index
    %62 = vector.load %arg10[%c0_14, %c0_15] : memref<16x72xbf16, #tpu.memory_space<vmem>>, vector<16x72xbf16>
    %cst_16 = arith.constant dense<0.000000e+00> : vector<16x256xf32>
    %63 = tpu.matmul %62, %61, %cst_16 {dimension_numbers = #tpu.dot_dimension_numbers<[1], [0], [0], [1], [0, 0, 1, 1], [], []>} : vector<16x72xbf16>, vector<72x256xbf16>, vector<16x256xf32> -> vector<16x256xf32>
    %cst_17 = arith.constant dense<0.000000e+00> : vector<16xf32>
    %64 = vector.multi_reduction <add>, %63, %cst_17 [1] : vector<16x256xf32> to vector<16xf32>
    %65 = vector.shape_cast %64 : vector<16xf32> to vector<16x1xf32>
    %cst_18 = arith.constant 3.906250e-03 : f32
    %66 = vector.broadcast %cst_18 : f32 to vector<16x1xf32>
    %67 = arith.mulf %65, %66 : vector<16x1xf32>
    %68 = arith.mulf %63, %63 : vector<16x256xf32>
    %cst_19 = arith.constant dense<0.000000e+00> : vector<16xf32>
    %69 = vector.multi_reduction <add>, %68, %cst_19 [1] : vector<16x256xf32> to vector<16xf32>
    %70 = vector.shape_cast %69 : vector<16xf32> to vector<16x1xf32>
    %cst_20 = arith.constant 3.906250e-03 : f32
    %71 = vector.broadcast %cst_20 : f32 to vector<16x1xf32>
    %72 = arith.mulf %70, %71 : vector<16x1xf32>
    %73 = arith.mulf %67, %67 : vector<16x1xf32>
    %74 = arith.subf %72, %73 : vector<16x1xf32>
    %75 = vector.broadcast %67 : vector<16x1xf32> to vector<16x256xf32>
    %76 = arith.subf %63, %75 : vector<16x256xf32>
    %cst_21 = arith.constant 0.000000e+00 : f32
    %77 = vector.broadcast %cst_21 : f32 to vector<16x1xf32>
    %78 = arith.maximumf %74, %77 : vector<16x1xf32>
    %cst_22 = arith.constant 9.99999974E-6 : f32
    %79 = vector.broadcast %cst_22 : f32 to vector<16x1xf32>
    %80 = arith.addf %78, %79 : vector<16x1xf32>
    %81 = math.rsqrt %80 : vector<16x1xf32>
    %82 = vector.broadcast %81 : vector<16x1xf32> to vector<16x256xf32>
    %83 = arith.mulf %76, %82 : vector<16x256xf32>
    %cst_23 = arith.constant 0.000000e+00 : f32
    %84 = vector.broadcast %cst_23 : f32 to vector<16x256xf32>
    %85 = arith.cmpf oge, %83, %84 : vector<16x256xf32>
    %cst_24 = arith.constant 2.000000e-01 : f32
    %86 = vector.broadcast %cst_24 : f32 to vector<16x256xf32>
    %87 = arith.mulf %86, %83 : vector<16x256xf32>
    %88 = arith.select %85, %83, %87 : vector<16x256xi1>, vector<16x256xf32>
    %cst_25 = arith.constant 0.000000e+00 : f32
    %89 = vector.broadcast %cst_25 : f32 to vector<16x17xf32>
    %90 = tpu.concatenate %89, %88, %89 in 1 : vector<16x17xf32>, vector<16x256xf32>, vector<16x17xf32> -> vector<16x290xf32>
    %c0_26 = arith.constant 0 : index
    %c0_27 = arith.constant 0 : index
    %91 = vector.load %arg2[%c0_26, %c0_27] : memref<2x256xf32, #tpu.memory_space<vmem>>, vector<2x256xf32>
    %92 = vector.extract_strided_slice %91 {offsets = [0, 0], sizes = [1, 256], strides = [1, 1]} : vector<2x256xf32> to vector<1x256xf32>
    %93 = vector.extract_strided_slice %91 {offsets = [1, 0], sizes = [1, 256], strides = [1, 1]} : vector<2x256xf32> to vector<1x256xf32>
    %94 = vector.extract_strided_slice %90 {offsets = [0, 0], sizes = [16, 256], strides = [1, 1]} : vector<16x290xf32> to vector<16x256xf32>
    %95 = vector.broadcast %92 : vector<1x256xf32> to vector<16x256xf32>
    %96 = arith.mulf %94, %95 : vector<16x256xf32>
    %97 = vector.extract_strided_slice %90 {offsets = [0, 1], sizes = [16, 256], strides = [1, 1]} : vector<16x290xf32> to vector<16x256xf32>
    %98 = vector.extract_strided_slice %90 {offsets = [0, 2], sizes = [16, 256], strides = [1, 1]} : vector<16x290xf32> to vector<16x256xf32>
    %99 = vector.broadcast %93 : vector<1x256xf32> to vector<16x256xf32>
    %100 = arith.mulf %98, %99 : vector<16x256xf32>
    %101 = vector.extract_strided_slice %90 {offsets = [0, 16], sizes = [16, 256], strides = [1, 1]} : vector<16x290xf32> to vector<16x256xf32>
    %102 = vector.broadcast %92 : vector<1x256xf32> to vector<16x256xf32>
    %103 = arith.mulf %101, %102 : vector<16x256xf32>
    %104 = vector.extract_strided_slice %90 {offsets = [0, 17], sizes = [16, 256], strides = [1, 1]} : vector<16x290xf32> to vector<16x256xf32>
    %105 = vector.extract_strided_slice %90 {offsets = [0, 18], sizes = [16, 256], strides = [1, 1]} : vector<16x290xf32> to vector<16x256xf32>
    %106 = vector.broadcast %93 : vector<1x256xf32> to vector<16x256xf32>
    %107 = arith.mulf %105, %106 : vector<16x256xf32>
    %108 = vector.extract_strided_slice %90 {offsets = [0, 32], sizes = [16, 256], strides = [1, 1]} : vector<16x290xf32> to vector<16x256xf32>
    %109 = vector.broadcast %92 : vector<1x256xf32> to vector<16x256xf32>
    %110 = arith.mulf %108, %109 : vector<16x256xf32>
    %111 = vector.extract_strided_slice %90 {offsets = [0, 33], sizes = [16, 256], strides = [1, 1]} : vector<16x290xf32> to vector<16x256xf32>
    %112 = vector.extract_strided_slice %90 {offsets = [0, 34], sizes = [16, 256], strides = [1, 1]} : vector<16x290xf32> to vector<16x256xf32>
    %113 = vector.broadcast %93 : vector<1x256xf32> to vector<16x256xf32>
    %114 = arith.mulf %112, %113 : vector<16x256xf32>
    %115 = tpu.concatenate %96, %97, %100, %103, %104, %107, %110, %111, %114 in 0 : vector<16x256xf32>, vector<16x256xf32>, vector<16x256xf32>, vector<16x256xf32>, vector<16x256xf32>, vector<16x256xf32>, vector<16x256xf32>, vector<16x256xf32>, vector<16x256xf32> -> vector<144x256xf32>
    %116 = arith.truncf %115 : vector<144x256xf32> to vector<144x256xbf16>
    %c0_28 = arith.constant 0 : index
    %c0_29 = arith.constant 0 : index
    %117 = vector.load %arg11[%c0_28, %c0_29] : memref<16x144xbf16, #tpu.memory_space<vmem>>, vector<16x144xbf16>
    %cst_30 = arith.constant dense<0.000000e+00> : vector<16x256xf32>
    %118 = tpu.matmul %117, %116, %cst_30 {dimension_numbers = #tpu.dot_dimension_numbers<[1], [0], [0], [1], [0, 0, 1, 1], [], []>} : vector<16x144xbf16>, vector<144x256xbf16>, vector<16x256xf32> -> vector<16x256xf32>
    %cst_31 = arith.constant dense<0.000000e+00> : vector<16xf32>
    %119 = vector.multi_reduction <add>, %118, %cst_31 [1] : vector<16x256xf32> to vector<16xf32>
    %120 = vector.shape_cast %119 : vector<16xf32> to vector<16x1xf32>
    %cst_32 = arith.constant 3.906250e-03 : f32
    %121 = vector.broadcast %cst_32 : f32 to vector<16x1xf32>
    %122 = arith.mulf %120, %121 : vector<16x1xf32>
    %123 = arith.mulf %118, %118 : vector<16x256xf32>
    %cst_33 = arith.constant dense<0.000000e+00> : vector<16xf32>
    %124 = vector.multi_reduction <add>, %123, %cst_33 [1] : vector<16x256xf32> to vector<16xf32>
    %125 = vector.shape_cast %124 : vector<16xf32> to vector<16x1xf32>
    %cst_34 = arith.constant 3.906250e-03 : f32
    %126 = vector.broadcast %cst_34 : f32 to vector<16x1xf32>
    %127 = arith.mulf %125, %126 : vector<16x1xf32>
    %128 = arith.mulf %122, %122 : vector<16x1xf32>
    %129 = arith.subf %127, %128 : vector<16x1xf32>
    %130 = vector.broadcast %122 : vector<16x1xf32> to vector<16x256xf32>
    %131 = arith.subf %118, %130 : vector<16x256xf32>
    %cst_35 = arith.constant 0.000000e+00 : f32
    %132 = vector.broadcast %cst_35 : f32 to vector<16x1xf32>
    %133 = arith.maximumf %129, %132 : vector<16x1xf32>
    %cst_36 = arith.constant 9.99999974E-6 : f32
    %134 = vector.broadcast %cst_36 : f32 to vector<16x1xf32>
    %135 = arith.addf %133, %134 : vector<16x1xf32>
    %136 = math.rsqrt %135 : vector<16x1xf32>
    %137 = vector.broadcast %136 : vector<16x1xf32> to vector<16x256xf32>
    %138 = arith.mulf %131, %137 : vector<16x256xf32>
    %cst_37 = arith.constant 0.000000e+00 : f32
    %139 = vector.broadcast %cst_37 : f32 to vector<16x256xf32>
    %140 = arith.cmpf oge, %138, %139 : vector<16x256xf32>
    %cst_38 = arith.constant 2.000000e-01 : f32
    %141 = vector.broadcast %cst_38 : f32 to vector<16x256xf32>
    %142 = arith.mulf %141, %138 : vector<16x256xf32>
    %143 = arith.select %140, %138, %142 : vector<16x256xi1>, vector<16x256xf32>
    %cst_39 = arith.constant 0.000000e+00 : f32
    %144 = vector.broadcast %cst_39 : f32 to vector<16x17xf32>
    %145 = tpu.concatenate %144, %143, %144 in 1 : vector<16x17xf32>, vector<16x256xf32>, vector<16x17xf32> -> vector<16x290xf32>
    %c0_40 = arith.constant 0 : index
    %c0_41 = arith.constant 0 : index
    %146 = vector.load %arg2[%c0_40, %c0_41] : memref<2x256xf32, #tpu.memory_space<vmem>>, vector<2x256xf32>
    %147 = vector.extract_strided_slice %146 {offsets = [0, 0], sizes = [1, 256], strides = [1, 1]} : vector<2x256xf32> to vector<1x256xf32>
    %148 = vector.extract_strided_slice %146 {offsets = [1, 0], sizes = [1, 256], strides = [1, 1]} : vector<2x256xf32> to vector<1x256xf32>
    %149 = vector.extract_strided_slice %145 {offsets = [0, 0], sizes = [16, 256], strides = [1, 1]} : vector<16x290xf32> to vector<16x256xf32>
    %150 = vector.broadcast %147 : vector<1x256xf32> to vector<16x256xf32>
    %151 = arith.mulf %149, %150 : vector<16x256xf32>
    %152 = vector.extract_strided_slice %145 {offsets = [0, 1], sizes = [16, 256], strides = [1, 1]} : vector<16x290xf32> to vector<16x256xf32>
    %153 = vector.extract_strided_slice %145 {offsets = [0, 2], sizes = [16, 256], strides = [1, 1]} : vector<16x290xf32> to vector<16x256xf32>
    %154 = vector.broadcast %148 : vector<1x256xf32> to vector<16x256xf32>
    %155 = arith.mulf %153, %154 : vector<16x256xf32>
    %156 = vector.extract_strided_slice %145 {offsets = [0, 16], sizes = [16, 256], strides = [1, 1]} : vector<16x290xf32> to vector<16x256xf32>
    %157 = vector.broadcast %147 : vector<1x256xf32> to vector<16x256xf32>
    %158 = arith.mulf %156, %157 : vector<16x256xf32>
    %159 = vector.extract_strided_slice %145 {offsets = [0, 17], sizes = [16, 256], strides = [1, 1]} : vector<16x290xf32> to vector<16x256xf32>
    %160 = vector.extract_strided_slice %145 {offsets = [0, 18], sizes = [16, 256], strides = [1, 1]} : vector<16x290xf32> to vector<16x256xf32>
    %161 = vector.broadcast %148 : vector<1x256xf32> to vector<16x256xf32>
    %162 = arith.mulf %160, %161 : vector<16x256xf32>
    %163 = vector.extract_strided_slice %145 {offsets = [0, 32], sizes = [16, 256], strides = [1, 1]} : vector<16x290xf32> to vector<16x256xf32>
    %164 = vector.broadcast %147 : vector<1x256xf32> to vector<16x256xf32>
    %165 = arith.mulf %163, %164 : vector<16x256xf32>
    %166 = vector.extract_strided_slice %145 {offsets = [0, 33], sizes = [16, 256], strides = [1, 1]} : vector<16x290xf32> to vector<16x256xf32>
    %167 = vector.extract_strided_slice %145 {offsets = [0, 34], sizes = [16, 256], strides = [1, 1]} : vector<16x290xf32> to vector<16x256xf32>
    %168 = vector.broadcast %148 : vector<1x256xf32> to vector<16x256xf32>
    %169 = arith.mulf %167, %168 : vector<16x256xf32>
    %170 = tpu.concatenate %151, %152, %155, %158, %159, %162, %165, %166, %169 in 0 : vector<16x256xf32>, vector<16x256xf32>, vector<16x256xf32>, vector<16x256xf32>, vector<16x256xf32>, vector<16x256xf32>, vector<16x256xf32>, vector<16x256xf32>, vector<16x256xf32> -> vector<144x256xf32>
    %171 = arith.truncf %170 : vector<144x256xf32> to vector<144x256xbf16>
    %c0_42 = arith.constant 0 : index
    %c0_43 = arith.constant 0 : index
    %172 = vector.load %arg12[%c0_42, %c0_43] : memref<16x144xbf16, #tpu.memory_space<vmem>>, vector<16x144xbf16>
    %cst_44 = arith.constant dense<0.000000e+00> : vector<16x256xf32>
    %173 = tpu.matmul %172, %171, %cst_44 {dimension_numbers = #tpu.dot_dimension_numbers<[1], [0], [0], [1], [0, 0, 1, 1], [], []>} : vector<16x144xbf16>, vector<144x256xbf16>, vector<16x256xf32> -> vector<16x256xf32>
    %cst_45 = arith.constant dense<0.000000e+00> : vector<16xf32>
    %174 = vector.multi_reduction <add>, %173, %cst_45 [1] : vector<16x256xf32> to vector<16xf32>
    %175 = vector.shape_cast %174 : vector<16xf32> to vector<16x1xf32>
    %cst_46 = arith.constant 3.906250e-03 : f32
    %176 = vector.broadcast %cst_46 : f32 to vector<16x1xf32>
    %177 = arith.mulf %175, %176 : vector<16x1xf32>
    %178 = arith.mulf %173, %173 : vector<16x256xf32>
    %cst_47 = arith.constant dense<0.000000e+00> : vector<16xf32>
    %179 = vector.multi_reduction <add>, %178, %cst_47 [1] : vector<16x256xf32> to vector<16xf32>
    %180 = vector.shape_cast %179 : vector<16xf32> to vector<16x1xf32>
    %cst_48 = arith.constant 3.906250e-03 : f32
    %181 = vector.broadcast %cst_48 : f32 to vector<16x1xf32>
    %182 = arith.mulf %180, %181 : vector<16x1xf32>
    %183 = arith.mulf %177, %177 : vector<16x1xf32>
    %184 = arith.subf %182, %183 : vector<16x1xf32>
    %185 = vector.broadcast %177 : vector<16x1xf32> to vector<16x256xf32>
    %186 = arith.subf %173, %185 : vector<16x256xf32>
    %cst_49 = arith.constant 0.000000e+00 : f32
    %187 = vector.broadcast %cst_49 : f32 to vector<16x1xf32>
    %188 = arith.maximumf %184, %187 : vector<16x1xf32>
    %cst_50 = arith.constant 9.99999974E-6 : f32
    %189 = vector.broadcast %cst_50 : f32 to vector<16x1xf32>
    %190 = arith.addf %188, %189 : vector<16x1xf32>
    %191 = math.rsqrt %190 : vector<16x1xf32>
    %192 = vector.broadcast %191 : vector<16x1xf32> to vector<16x256xf32>
    %193 = arith.mulf %186, %192 : vector<16x256xf32>
    %cst_51 = arith.constant 0.000000e+00 : f32
    %194 = vector.broadcast %cst_51 : f32 to vector<16x256xf32>
    %195 = arith.cmpf oge, %193, %194 : vector<16x256xf32>
    %cst_52 = arith.constant 2.000000e-01 : f32
    %196 = vector.broadcast %cst_52 : f32 to vector<16x256xf32>
    %197 = arith.mulf %196, %193 : vector<16x256xf32>
    %198 = arith.select %195, %193, %197 : vector<16x256xi1>, vector<16x256xf32>
    %cst_53 = arith.constant 0.000000e+00 : f32
    %199 = vector.broadcast %cst_53 : f32 to vector<16x17xf32>
    %200 = tpu.concatenate %199, %198, %199 in 1 : vector<16x17xf32>, vector<16x256xf32>, vector<16x17xf32> -> vector<16x290xf32>
    %c0_54 = arith.constant 0 : index
    %c0_55 = arith.constant 0 : index
    %201 = vector.load %arg2[%c0_54, %c0_55] : memref<2x256xf32, #tpu.memory_space<vmem>>, vector<2x256xf32>
    %202 = vector.extract_strided_slice %201 {offsets = [0, 0], sizes = [1, 256], strides = [1, 1]} : vector<2x256xf32> to vector<1x256xf32>
    %203 = vector.extract_strided_slice %201 {offsets = [1, 0], sizes = [1, 256], strides = [1, 1]} : vector<2x256xf32> to vector<1x256xf32>
    %204 = vector.extract_strided_slice %200 {offsets = [0, 0], sizes = [16, 256], strides = [1, 1]} : vector<16x290xf32> to vector<16x256xf32>
    %205 = vector.broadcast %202 : vector<1x256xf32> to vector<16x256xf32>
    %206 = arith.mulf %204, %205 : vector<16x256xf32>
    %207 = vector.extract_strided_slice %200 {offsets = [0, 1], sizes = [16, 256], strides = [1, 1]} : vector<16x290xf32> to vector<16x256xf32>
    %208 = vector.extract_strided_slice %200 {offsets = [0, 2], sizes = [16, 256], strides = [1, 1]} : vector<16x290xf32> to vector<16x256xf32>
    %209 = vector.broadcast %203 : vector<1x256xf32> to vector<16x256xf32>
    %210 = arith.mulf %208, %209 : vector<16x256xf32>
    %211 = vector.extract_strided_slice %200 {offsets = [0, 16], sizes = [16, 256], strides = [1, 1]} : vector<16x290xf32> to vector<16x256xf32>
    %212 = vector.broadcast %202 : vector<1x256xf32> to vector<16x256xf32>
    %213 = arith.mulf %211, %212 : vector<16x256xf32>
    %214 = vector.extract_strided_slice %200 {offsets = [0, 17], sizes = [16, 256], strides = [1, 1]} : vector<16x290xf32> to vector<16x256xf32>
    %215 = vector.extract_strided_slice %200 {offsets = [0, 18], sizes = [16, 256], strides = [1, 1]} : vector<16x290xf32> to vector<16x256xf32>
    %216 = vector.broadcast %203 : vector<1x256xf32> to vector<16x256xf32>
    %217 = arith.mulf %215, %216 : vector<16x256xf32>
    %218 = vector.extract_strided_slice %200 {offsets = [0, 32], sizes = [16, 256], strides = [1, 1]} : vector<16x290xf32> to vector<16x256xf32>
    %219 = vector.broadcast %202 : vector<1x256xf32> to vector<16x256xf32>
    %220 = arith.mulf %218, %219 : vector<16x256xf32>
    %221 = vector.extract_strided_slice %200 {offsets = [0, 33], sizes = [16, 256], strides = [1, 1]} : vector<16x290xf32> to vector<16x256xf32>
    %222 = vector.extract_strided_slice %200 {offsets = [0, 34], sizes = [16, 256], strides = [1, 1]} : vector<16x290xf32> to vector<16x256xf32>
    %223 = vector.broadcast %203 : vector<1x256xf32> to vector<16x256xf32>
    %224 = arith.mulf %222, %223 : vector<16x256xf32>
    %225 = tpu.concatenate %206, %207, %210, %213, %214, %217, %220, %221, %224 in 0 : vector<16x256xf32>, vector<16x256xf32>, vector<16x256xf32>, vector<16x256xf32>, vector<16x256xf32>, vector<16x256xf32>, vector<16x256xf32>, vector<16x256xf32>, vector<16x256xf32> -> vector<144x256xf32>
    %226 = arith.truncf %225 : vector<144x256xf32> to vector<144x256xbf16>
    %c0_56 = arith.constant 0 : index
    %c0_57 = arith.constant 0 : index
    %227 = vector.load %arg13[%c0_56, %c0_57] : memref<16x144xbf16, #tpu.memory_space<vmem>>, vector<16x144xbf16>
    %cst_58 = arith.constant dense<0.000000e+00> : vector<16x256xf32>
    %228 = tpu.matmul %227, %226, %cst_58 {dimension_numbers = #tpu.dot_dimension_numbers<[1], [0], [0], [1], [0, 0, 1, 1], [], []>} : vector<16x144xbf16>, vector<144x256xbf16>, vector<16x256xf32> -> vector<16x256xf32>
    %cst_59 = arith.constant dense<0.000000e+00> : vector<16xf32>
    %229 = vector.multi_reduction <add>, %228, %cst_59 [1] : vector<16x256xf32> to vector<16xf32>
    %230 = vector.shape_cast %229 : vector<16xf32> to vector<16x1xf32>
    %cst_60 = arith.constant 3.906250e-03 : f32
    %231 = vector.broadcast %cst_60 : f32 to vector<16x1xf32>
    %232 = arith.mulf %230, %231 : vector<16x1xf32>
    %233 = arith.mulf %228, %228 : vector<16x256xf32>
    %cst_61 = arith.constant dense<0.000000e+00> : vector<16xf32>
    %234 = vector.multi_reduction <add>, %233, %cst_61 [1] : vector<16x256xf32> to vector<16xf32>
    %235 = vector.shape_cast %234 : vector<16xf32> to vector<16x1xf32>
    %cst_62 = arith.constant 3.906250e-03 : f32
    %236 = vector.broadcast %cst_62 : f32 to vector<16x1xf32>
    %237 = arith.mulf %235, %236 : vector<16x1xf32>
    %238 = arith.mulf %232, %232 : vector<16x1xf32>
    %239 = arith.subf %237, %238 : vector<16x1xf32>
    %240 = vector.broadcast %232 : vector<16x1xf32> to vector<16x256xf32>
    %241 = arith.subf %228, %240 : vector<16x256xf32>
    %cst_63 = arith.constant 0.000000e+00 : f32
    %242 = vector.broadcast %cst_63 : f32 to vector<16x1xf32>
    %243 = arith.maximumf %239, %242 : vector<16x1xf32>
    %cst_64 = arith.constant 9.99999974E-6 : f32
    %244 = vector.broadcast %cst_64 : f32 to vector<16x1xf32>
    %245 = arith.addf %243, %244 : vector<16x1xf32>
    %246 = math.rsqrt %245 : vector<16x1xf32>
    %247 = vector.broadcast %246 : vector<16x1xf32> to vector<16x256xf32>
    %248 = arith.mulf %241, %247 : vector<16x256xf32>
    %cst_65 = arith.constant 0.000000e+00 : f32
    %249 = vector.broadcast %cst_65 : f32 to vector<16x256xf32>
    %250 = arith.cmpf oge, %248, %249 : vector<16x256xf32>
    %cst_66 = arith.constant 2.000000e-01 : f32
    %251 = vector.broadcast %cst_66 : f32 to vector<16x256xf32>
    %252 = arith.mulf %251, %248 : vector<16x256xf32>
    %253 = arith.select %250, %248, %252 : vector<16x256xi1>, vector<16x256xf32>
    %cst_67 = arith.constant 0.000000e+00 : f32
    %254 = vector.broadcast %cst_67 : f32 to vector<16x17xf32>
    %255 = tpu.concatenate %254, %253, %254 in 1 : vector<16x17xf32>, vector<16x256xf32>, vector<16x17xf32> -> vector<16x290xf32>
    %c0_68 = arith.constant 0 : index
    %c0_69 = arith.constant 0 : index
    %256 = vector.load %arg2[%c0_68, %c0_69] : memref<2x256xf32, #tpu.memory_space<vmem>>, vector<2x256xf32>
    %257 = vector.extract_strided_slice %256 {offsets = [0, 0], sizes = [1, 256], strides = [1, 1]} : vector<2x256xf32> to vector<1x256xf32>
    %258 = vector.extract_strided_slice %256 {offsets = [1, 0], sizes = [1, 256], strides = [1, 1]} : vector<2x256xf32> to vector<1x256xf32>
    %259 = vector.extract_strided_slice %255 {offsets = [0, 0], sizes = [16, 256], strides = [1, 1]} : vector<16x290xf32> to vector<16x256xf32>
    %260 = vector.broadcast %257 : vector<1x256xf32> to vector<16x256xf32>
    %261 = arith.mulf %259, %260 : vector<16x256xf32>
    %262 = vector.extract_strided_slice %255 {offsets = [0, 1], sizes = [16, 256], strides = [1, 1]} : vector<16x290xf32> to vector<16x256xf32>
    %263 = vector.extract_strided_slice %255 {offsets = [0, 2], sizes = [16, 256], strides = [1, 1]} : vector<16x290xf32> to vector<16x256xf32>
    %264 = vector.broadcast %258 : vector<1x256xf32> to vector<16x256xf32>
    %265 = arith.mulf %263, %264 : vector<16x256xf32>
    %266 = vector.extract_strided_slice %255 {offsets = [0, 16], sizes = [16, 256], strides = [1, 1]} : vector<16x290xf32> to vector<16x256xf32>
    %267 = vector.broadcast %257 : vector<1x256xf32> to vector<16x256xf32>
    %268 = arith.mulf %266, %267 : vector<16x256xf32>
    %269 = vector.extract_strided_slice %255 {offsets = [0, 17], sizes = [16, 256], strides = [1, 1]} : vector<16x290xf32> to vector<16x256xf32>
    %270 = vector.extract_strided_slice %255 {offsets = [0, 18], sizes = [16, 256], strides = [1, 1]} : vector<16x290xf32> to vector<16x256xf32>
    %271 = vector.broadcast %258 : vector<1x256xf32> to vector<16x256xf32>
    %272 = arith.mulf %270, %271 : vector<16x256xf32>
    %273 = vector.extract_strided_slice %255 {offsets = [0, 32], sizes = [16, 256], strides = [1, 1]} : vector<16x290xf32> to vector<16x256xf32>
    %274 = vector.broadcast %257 : vector<1x256xf32> to vector<16x256xf32>
    %275 = arith.mulf %273, %274 : vector<16x256xf32>
    %276 = vector.extract_strided_slice %255 {offsets = [0, 33], sizes = [16, 256], strides = [1, 1]} : vector<16x290xf32> to vector<16x256xf32>
    %277 = vector.extract_strided_slice %255 {offsets = [0, 34], sizes = [16, 256], strides = [1, 1]} : vector<16x290xf32> to vector<16x256xf32>
    %278 = vector.broadcast %258 : vector<1x256xf32> to vector<16x256xf32>
    %279 = arith.mulf %277, %278 : vector<16x256xf32>
    %280 = tpu.concatenate %261, %262, %265, %268, %269, %272, %275, %276, %279 in 0 : vector<16x256xf32>, vector<16x256xf32>, vector<16x256xf32>, vector<16x256xf32>, vector<16x256xf32>, vector<16x256xf32>, vector<16x256xf32>, vector<16x256xf32>, vector<16x256xf32> -> vector<144x256xf32>
    %281 = arith.truncf %280 : vector<144x256xf32> to vector<144x256xbf16>
    %c0_70 = arith.constant 0 : index
    %c0_71 = arith.constant 0 : index
    %282 = vector.load %arg14[%c0_70, %c0_71] : memref<16x144xbf16, #tpu.memory_space<vmem>>, vector<16x144xbf16>
    %cst_72 = arith.constant dense<0.000000e+00> : vector<16x256xf32>
    %283 = tpu.matmul %282, %281, %cst_72 {dimension_numbers = #tpu.dot_dimension_numbers<[1], [0], [0], [1], [0, 0, 1, 1], [], []>} : vector<16x144xbf16>, vector<144x256xbf16>, vector<16x256xf32> -> vector<16x256xf32>
    %cst_73 = arith.constant dense<0.000000e+00> : vector<16xf32>
    %284 = vector.multi_reduction <add>, %283, %cst_73 [1] : vector<16x256xf32> to vector<16xf32>
    %285 = vector.shape_cast %284 : vector<16xf32> to vector<16x1xf32>
    %cst_74 = arith.constant 3.906250e-03 : f32
    %286 = vector.broadcast %cst_74 : f32 to vector<16x1xf32>
    %287 = arith.mulf %285, %286 : vector<16x1xf32>
    %288 = arith.mulf %283, %283 : vector<16x256xf32>
    %cst_75 = arith.constant dense<0.000000e+00> : vector<16xf32>
    %289 = vector.multi_reduction <add>, %288, %cst_75 [1] : vector<16x256xf32> to vector<16xf32>
    %290 = vector.shape_cast %289 : vector<16xf32> to vector<16x1xf32>
    %cst_76 = arith.constant 3.906250e-03 : f32
    %291 = vector.broadcast %cst_76 : f32 to vector<16x1xf32>
    %292 = arith.mulf %290, %291 : vector<16x1xf32>
    %293 = arith.mulf %287, %287 : vector<16x1xf32>
    %294 = arith.subf %292, %293 : vector<16x1xf32>
    %295 = vector.broadcast %287 : vector<16x1xf32> to vector<16x256xf32>
    %296 = arith.subf %283, %295 : vector<16x256xf32>
    %cst_77 = arith.constant 0.000000e+00 : f32
    %297 = vector.broadcast %cst_77 : f32 to vector<16x1xf32>
    %298 = arith.maximumf %294, %297 : vector<16x1xf32>
    %cst_78 = arith.constant 9.99999974E-6 : f32
    %299 = vector.broadcast %cst_78 : f32 to vector<16x1xf32>
    %300 = arith.addf %298, %299 : vector<16x1xf32>
    %301 = math.rsqrt %300 : vector<16x1xf32>
    %302 = vector.broadcast %301 : vector<16x1xf32> to vector<16x256xf32>
    %303 = arith.mulf %296, %302 : vector<16x256xf32>
    %cst_79 = arith.constant 0.000000e+00 : f32
    %304 = vector.broadcast %cst_79 : f32 to vector<16x256xf32>
    %305 = arith.cmpf oge, %303, %304 : vector<16x256xf32>
    %cst_80 = arith.constant 2.000000e-01 : f32
    %306 = vector.broadcast %cst_80 : f32 to vector<16x256xf32>
    %307 = arith.mulf %306, %303 : vector<16x256xf32>
    %308 = arith.select %305, %303, %307 : vector<16x256xi1>, vector<16x256xf32>
    %cst_81 = arith.constant 0.000000e+00 : f32
    %309 = vector.broadcast %cst_81 : f32 to vector<16x17xf32>
    %310 = tpu.concatenate %309, %308, %309 in 1 : vector<16x17xf32>, vector<16x256xf32>, vector<16x17xf32> -> vector<16x290xf32>
    %c0_82 = arith.constant 0 : index
    %c0_83 = arith.constant 0 : index
    %311 = vector.load %arg2[%c0_82, %c0_83] : memref<2x256xf32, #tpu.memory_space<vmem>>, vector<2x256xf32>
    %312 = vector.extract_strided_slice %311 {offsets = [0, 0], sizes = [1, 256], strides = [1, 1]} : vector<2x256xf32> to vector<1x256xf32>
    %313 = vector.extract_strided_slice %311 {offsets = [1, 0], sizes = [1, 256], strides = [1, 1]} : vector<2x256xf32> to vector<1x256xf32>
    %314 = vector.extract_strided_slice %310 {offsets = [0, 0], sizes = [16, 256], strides = [1, 1]} : vector<16x290xf32> to vector<16x256xf32>
    %315 = vector.broadcast %312 : vector<1x256xf32> to vector<16x256xf32>
    %316 = arith.mulf %314, %315 : vector<16x256xf32>
    %317 = vector.extract_strided_slice %310 {offsets = [0, 1], sizes = [16, 256], strides = [1, 1]} : vector<16x290xf32> to vector<16x256xf32>
    %318 = vector.extract_strided_slice %310 {offsets = [0, 2], sizes = [16, 256], strides = [1, 1]} : vector<16x290xf32> to vector<16x256xf32>
    %319 = vector.broadcast %313 : vector<1x256xf32> to vector<16x256xf32>
    %320 = arith.mulf %318, %319 : vector<16x256xf32>
    %321 = vector.extract_strided_slice %310 {offsets = [0, 16], sizes = [16, 256], strides = [1, 1]} : vector<16x290xf32> to vector<16x256xf32>
    %322 = vector.broadcast %312 : vector<1x256xf32> to vector<16x256xf32>
    %323 = arith.mulf %321, %322 : vector<16x256xf32>
    %324 = vector.extract_strided_slice %310 {offsets = [0, 17], sizes = [16, 256], strides = [1, 1]} : vector<16x290xf32> to vector<16x256xf32>
    %325 = vector.extract_strided_slice %310 {offsets = [0, 18], sizes = [16, 256], strides = [1, 1]} : vector<16x290xf32> to vector<16x256xf32>
    %326 = vector.broadcast %313 : vector<1x256xf32> to vector<16x256xf32>
    %327 = arith.mulf %325, %326 : vector<16x256xf32>
    %328 = vector.extract_strided_slice %310 {offsets = [0, 32], sizes = [16, 256], strides = [1, 1]} : vector<16x290xf32> to vector<16x256xf32>
    %329 = vector.broadcast %312 : vector<1x256xf32> to vector<16x256xf32>
    %330 = arith.mulf %328, %329 : vector<16x256xf32>
    %331 = vector.extract_strided_slice %310 {offsets = [0, 33], sizes = [16, 256], strides = [1, 1]} : vector<16x290xf32> to vector<16x256xf32>
    %332 = vector.extract_strided_slice %310 {offsets = [0, 34], sizes = [16, 256], strides = [1, 1]} : vector<16x290xf32> to vector<16x256xf32>
    %333 = vector.broadcast %313 : vector<1x256xf32> to vector<16x256xf32>
    %334 = arith.mulf %332, %333 : vector<16x256xf32>
    %335 = tpu.concatenate %316, %317, %320, %323, %324, %327, %330, %331, %334 in 0 : vector<16x256xf32>, vector<16x256xf32>, vector<16x256xf32>, vector<16x256xf32>, vector<16x256xf32>, vector<16x256xf32>, vector<16x256xf32>, vector<16x256xf32>, vector<16x256xf32> -> vector<144x256xf32>
    %336 = arith.truncf %335 : vector<144x256xf32> to vector<144x256xbf16>
    %c0_84 = arith.constant 0 : index
    %c0_85 = arith.constant 0 : index
    %337 = vector.load %arg15[%c0_84, %c0_85] : memref<16x144xbf16, #tpu.memory_space<vmem>>, vector<16x144xbf16>
    %cst_86 = arith.constant dense<0.000000e+00> : vector<16x256xf32>
    %338 = tpu.matmul %337, %336, %cst_86 {dimension_numbers = #tpu.dot_dimension_numbers<[1], [0], [0], [1], [0, 0, 1, 1], [], []>} : vector<16x144xbf16>, vector<144x256xbf16>, vector<16x256xf32> -> vector<16x256xf32>
    %cst_87 = arith.constant dense<0.000000e+00> : vector<16xf32>
    %339 = vector.multi_reduction <add>, %338, %cst_87 [1] : vector<16x256xf32> to vector<16xf32>
    %340 = vector.shape_cast %339 : vector<16xf32> to vector<16x1xf32>
    %cst_88 = arith.constant 3.906250e-03 : f32
    %341 = vector.broadcast %cst_88 : f32 to vector<16x1xf32>
    %342 = arith.mulf %340, %341 : vector<16x1xf32>
    %343 = arith.mulf %338, %338 : vector<16x256xf32>
    %cst_89 = arith.constant dense<0.000000e+00> : vector<16xf32>
    %344 = vector.multi_reduction <add>, %343, %cst_89 [1] : vector<16x256xf32> to vector<16xf32>
    %345 = vector.shape_cast %344 : vector<16xf32> to vector<16x1xf32>
    %cst_90 = arith.constant 3.906250e-03 : f32
    %346 = vector.broadcast %cst_90 : f32 to vector<16x1xf32>
    %347 = arith.mulf %345, %346 : vector<16x1xf32>
    %348 = arith.mulf %342, %342 : vector<16x1xf32>
    %349 = arith.subf %347, %348 : vector<16x1xf32>
    %350 = vector.broadcast %342 : vector<16x1xf32> to vector<16x256xf32>
    %351 = arith.subf %338, %350 : vector<16x256xf32>
    %cst_91 = arith.constant 0.000000e+00 : f32
    %352 = vector.broadcast %cst_91 : f32 to vector<16x1xf32>
    %353 = arith.maximumf %349, %352 : vector<16x1xf32>
    %cst_92 = arith.constant 9.99999974E-6 : f32
    %354 = vector.broadcast %cst_92 : f32 to vector<16x1xf32>
    %355 = arith.addf %353, %354 : vector<16x1xf32>
    %356 = math.rsqrt %355 : vector<16x1xf32>
    %357 = vector.broadcast %356 : vector<16x1xf32> to vector<16x256xf32>
    %358 = arith.mulf %351, %357 : vector<16x256xf32>
    %cst_93 = arith.constant 0.000000e+00 : f32
    %359 = vector.broadcast %cst_93 : f32 to vector<16x256xf32>
    %360 = arith.cmpf oge, %358, %359 : vector<16x256xf32>
    %cst_94 = arith.constant 2.000000e-01 : f32
    %361 = vector.broadcast %cst_94 : f32 to vector<16x256xf32>
    %362 = arith.mulf %361, %358 : vector<16x256xf32>
    %363 = arith.select %360, %358, %362 : vector<16x256xi1>, vector<16x256xf32>
    %cst_95 = arith.constant 0.000000e+00 : f32
    %364 = vector.broadcast %cst_95 : f32 to vector<16x17xf32>
    %365 = tpu.concatenate %364, %363, %364 in 1 : vector<16x17xf32>, vector<16x256xf32>, vector<16x17xf32> -> vector<16x290xf32>
    %c0_96 = arith.constant 0 : index
    %c0_97 = arith.constant 0 : index
    %366 = vector.load %arg2[%c0_96, %c0_97] : memref<2x256xf32, #tpu.memory_space<vmem>>, vector<2x256xf32>
    %367 = vector.extract_strided_slice %366 {offsets = [0, 0], sizes = [1, 256], strides = [1, 1]} : vector<2x256xf32> to vector<1x256xf32>
    %368 = vector.extract_strided_slice %366 {offsets = [1, 0], sizes = [1, 256], strides = [1, 1]} : vector<2x256xf32> to vector<1x256xf32>
    %369 = vector.extract_strided_slice %365 {offsets = [0, 0], sizes = [16, 256], strides = [1, 1]} : vector<16x290xf32> to vector<16x256xf32>
    %370 = vector.broadcast %367 : vector<1x256xf32> to vector<16x256xf32>
    %371 = arith.mulf %369, %370 : vector<16x256xf32>
    %372 = vector.extract_strided_slice %365 {offsets = [0, 1], sizes = [16, 256], strides = [1, 1]} : vector<16x290xf32> to vector<16x256xf32>
    %373 = vector.extract_strided_slice %365 {offsets = [0, 2], sizes = [16, 256], strides = [1, 1]} : vector<16x290xf32> to vector<16x256xf32>
    %374 = vector.broadcast %368 : vector<1x256xf32> to vector<16x256xf32>
    %375 = arith.mulf %373, %374 : vector<16x256xf32>
    %376 = vector.extract_strided_slice %365 {offsets = [0, 16], sizes = [16, 256], strides = [1, 1]} : vector<16x290xf32> to vector<16x256xf32>
    %377 = vector.broadcast %367 : vector<1x256xf32> to vector<16x256xf32>
    %378 = arith.mulf %376, %377 : vector<16x256xf32>
    %379 = vector.extract_strided_slice %365 {offsets = [0, 17], sizes = [16, 256], strides = [1, 1]} : vector<16x290xf32> to vector<16x256xf32>
    %380 = vector.extract_strided_slice %365 {offsets = [0, 18], sizes = [16, 256], strides = [1, 1]} : vector<16x290xf32> to vector<16x256xf32>
    %381 = vector.broadcast %368 : vector<1x256xf32> to vector<16x256xf32>
    %382 = arith.mulf %380, %381 : vector<16x256xf32>
    %383 = vector.extract_strided_slice %365 {offsets = [0, 32], sizes = [16, 256], strides = [1, 1]} : vector<16x290xf32> to vector<16x256xf32>
    %384 = vector.broadcast %367 : vector<1x256xf32> to vector<16x256xf32>
    %385 = arith.mulf %383, %384 : vector<16x256xf32>
    %386 = vector.extract_strided_slice %365 {offsets = [0, 33], sizes = [16, 256], strides = [1, 1]} : vector<16x290xf32> to vector<16x256xf32>
    %387 = vector.extract_strided_slice %365 {offsets = [0, 34], sizes = [16, 256], strides = [1, 1]} : vector<16x290xf32> to vector<16x256xf32>
    %388 = vector.broadcast %368 : vector<1x256xf32> to vector<16x256xf32>
    %389 = arith.mulf %387, %388 : vector<16x256xf32>
    %390 = tpu.concatenate %371, %372, %375, %378, %379, %382, %385, %386, %389 in 0 : vector<16x256xf32>, vector<16x256xf32>, vector<16x256xf32>, vector<16x256xf32>, vector<16x256xf32>, vector<16x256xf32>, vector<16x256xf32>, vector<16x256xf32>, vector<16x256xf32> -> vector<144x256xf32>
    %391 = arith.truncf %390 : vector<144x256xf32> to vector<144x256xbf16>
    %c0_98 = arith.constant 0 : index
    %c0_99 = arith.constant 0 : index
    %392 = vector.load %arg16[%c0_98, %c0_99] : memref<16x144xbf16, #tpu.memory_space<vmem>>, vector<16x144xbf16>
    %cst_100 = arith.constant dense<0.000000e+00> : vector<16x256xf32>
    %393 = tpu.matmul %392, %391, %cst_100 {dimension_numbers = #tpu.dot_dimension_numbers<[1], [0], [0], [1], [0, 0, 1, 1], [], []>} : vector<16x144xbf16>, vector<144x256xbf16>, vector<16x256xf32> -> vector<16x256xf32>
    %cst_101 = arith.constant dense<0.000000e+00> : vector<16xf32>
    %394 = vector.multi_reduction <add>, %393, %cst_101 [1] : vector<16x256xf32> to vector<16xf32>
    %395 = vector.shape_cast %394 : vector<16xf32> to vector<16x1xf32>
    %cst_102 = arith.constant 3.906250e-03 : f32
    %396 = vector.broadcast %cst_102 : f32 to vector<16x1xf32>
    %397 = arith.mulf %395, %396 : vector<16x1xf32>
    %398 = arith.mulf %393, %393 : vector<16x256xf32>
    %cst_103 = arith.constant dense<0.000000e+00> : vector<16xf32>
    %399 = vector.multi_reduction <add>, %398, %cst_103 [1] : vector<16x256xf32> to vector<16xf32>
    %400 = vector.shape_cast %399 : vector<16xf32> to vector<16x1xf32>
    %cst_104 = arith.constant 3.906250e-03 : f32
    %401 = vector.broadcast %cst_104 : f32 to vector<16x1xf32>
    %402 = arith.mulf %400, %401 : vector<16x1xf32>
    %403 = arith.mulf %397, %397 : vector<16x1xf32>
    %404 = arith.subf %402, %403 : vector<16x1xf32>
    %405 = vector.broadcast %397 : vector<16x1xf32> to vector<16x256xf32>
    %406 = arith.subf %393, %405 : vector<16x256xf32>
    %cst_105 = arith.constant 0.000000e+00 : f32
    %407 = vector.broadcast %cst_105 : f32 to vector<16x1xf32>
    %408 = arith.maximumf %404, %407 : vector<16x1xf32>
    %cst_106 = arith.constant 9.99999974E-6 : f32
    %409 = vector.broadcast %cst_106 : f32 to vector<16x1xf32>
    %410 = arith.addf %408, %409 : vector<16x1xf32>
    %411 = math.rsqrt %410 : vector<16x1xf32>
    %412 = vector.broadcast %411 : vector<16x1xf32> to vector<16x256xf32>
    %413 = arith.mulf %406, %412 : vector<16x256xf32>
    %cst_107 = arith.constant 0.000000e+00 : f32
    %414 = vector.broadcast %cst_107 : f32 to vector<16x256xf32>
    %415 = arith.cmpf oge, %413, %414 : vector<16x256xf32>
    %cst_108 = arith.constant 2.000000e-01 : f32
    %416 = vector.broadcast %cst_108 : f32 to vector<16x256xf32>
    %417 = arith.mulf %416, %413 : vector<16x256xf32>
    %418 = arith.select %415, %413, %417 : vector<16x256xi1>, vector<16x256xf32>
    %cst_109 = arith.constant 0.000000e+00 : f32
    %419 = vector.broadcast %cst_109 : f32 to vector<16x17xf32>
    %420 = tpu.concatenate %419, %418, %419 in 1 : vector<16x17xf32>, vector<16x256xf32>, vector<16x17xf32> -> vector<16x290xf32>
    %c0_110 = arith.constant 0 : index
    %c0_111 = arith.constant 0 : index
    %421 = vector.load %arg2[%c0_110, %c0_111] : memref<2x256xf32, #tpu.memory_space<vmem>>, vector<2x256xf32>
    %422 = vector.extract_strided_slice %421 {offsets = [0, 0], sizes = [1, 256], strides = [1, 1]} : vector<2x256xf32> to vector<1x256xf32>
    %423 = vector.extract_strided_slice %421 {offsets = [1, 0], sizes = [1, 256], strides = [1, 1]} : vector<2x256xf32> to vector<1x256xf32>
    %424 = vector.extract_strided_slice %420 {offsets = [0, 0], sizes = [16, 256], strides = [1, 1]} : vector<16x290xf32> to vector<16x256xf32>
    %425 = vector.broadcast %422 : vector<1x256xf32> to vector<16x256xf32>
    %426 = arith.mulf %424, %425 : vector<16x256xf32>
    %427 = vector.extract_strided_slice %420 {offsets = [0, 1], sizes = [16, 256], strides = [1, 1]} : vector<16x290xf32> to vector<16x256xf32>
    %428 = vector.extract_strided_slice %420 {offsets = [0, 2], sizes = [16, 256], strides = [1, 1]} : vector<16x290xf32> to vector<16x256xf32>
    %429 = vector.broadcast %423 : vector<1x256xf32> to vector<16x256xf32>
    %430 = arith.mulf %428, %429 : vector<16x256xf32>
    %431 = vector.extract_strided_slice %420 {offsets = [0, 16], sizes = [16, 256], strides = [1, 1]} : vector<16x290xf32> to vector<16x256xf32>
    %432 = vector.broadcast %422 : vector<1x256xf32> to vector<16x256xf32>
    %433 = arith.mulf %431, %432 : vector<16x256xf32>
    %434 = vector.extract_strided_slice %420 {offsets = [0, 17], sizes = [16, 256], strides = [1, 1]} : vector<16x290xf32> to vector<16x256xf32>
    %435 = vector.extract_strided_slice %420 {offsets = [0, 18], sizes = [16, 256], strides = [1, 1]} : vector<16x290xf32> to vector<16x256xf32>
    %436 = vector.broadcast %423 : vector<1x256xf32> to vector<16x256xf32>
    %437 = arith.mulf %435, %436 : vector<16x256xf32>
    %438 = vector.extract_strided_slice %420 {offsets = [0, 32], sizes = [16, 256], strides = [1, 1]} : vector<16x290xf32> to vector<16x256xf32>
    %439 = vector.broadcast %422 : vector<1x256xf32> to vector<16x256xf32>
    %440 = arith.mulf %438, %439 : vector<16x256xf32>
    %441 = vector.extract_strided_slice %420 {offsets = [0, 33], sizes = [16, 256], strides = [1, 1]} : vector<16x290xf32> to vector<16x256xf32>
    %442 = vector.extract_strided_slice %420 {offsets = [0, 34], sizes = [16, 256], strides = [1, 1]} : vector<16x290xf32> to vector<16x256xf32>
    %443 = vector.broadcast %423 : vector<1x256xf32> to vector<16x256xf32>
    %444 = arith.mulf %442, %443 : vector<16x256xf32>
    %445 = tpu.concatenate %426, %427, %430, %433, %434, %437, %440, %441, %444 in 0 : vector<16x256xf32>, vector<16x256xf32>, vector<16x256xf32>, vector<16x256xf32>, vector<16x256xf32>, vector<16x256xf32>, vector<16x256xf32>, vector<16x256xf32>, vector<16x256xf32> -> vector<144x256xf32>
    %446 = arith.truncf %445 : vector<144x256xf32> to vector<144x256xbf16>
    %c0_112 = arith.constant 0 : index
    %c0_113 = arith.constant 0 : index
    %447 = vector.load %arg17[%c0_112, %c0_113] : memref<16x144xbf16, #tpu.memory_space<vmem>>, vector<16x144xbf16>
    %cst_114 = arith.constant dense<0.000000e+00> : vector<16x256xf32>
    %448 = tpu.matmul %447, %446, %cst_114 {dimension_numbers = #tpu.dot_dimension_numbers<[1], [0], [0], [1], [0, 0, 1, 1], [], []>} : vector<16x144xbf16>, vector<144x256xbf16>, vector<16x256xf32> -> vector<16x256xf32>
    %cst_115 = arith.constant dense<0.000000e+00> : vector<16xf32>
    %449 = vector.multi_reduction <add>, %448, %cst_115 [1] : vector<16x256xf32> to vector<16xf32>
    %450 = vector.shape_cast %449 : vector<16xf32> to vector<16x1xf32>
    %cst_116 = arith.constant 3.906250e-03 : f32
    %451 = vector.broadcast %cst_116 : f32 to vector<16x1xf32>
    %452 = arith.mulf %450, %451 : vector<16x1xf32>
    %453 = arith.mulf %448, %448 : vector<16x256xf32>
    %cst_117 = arith.constant dense<0.000000e+00> : vector<16xf32>
    %454 = vector.multi_reduction <add>, %453, %cst_117 [1] : vector<16x256xf32> to vector<16xf32>
    %455 = vector.shape_cast %454 : vector<16xf32> to vector<16x1xf32>
    %cst_118 = arith.constant 3.906250e-03 : f32
    %456 = vector.broadcast %cst_118 : f32 to vector<16x1xf32>
    %457 = arith.mulf %455, %456 : vector<16x1xf32>
    %458 = arith.mulf %452, %452 : vector<16x1xf32>
    %459 = arith.subf %457, %458 : vector<16x1xf32>
    %460 = vector.broadcast %452 : vector<16x1xf32> to vector<16x256xf32>
    %461 = arith.subf %448, %460 : vector<16x256xf32>
    %cst_119 = arith.constant 0.000000e+00 : f32
    %462 = vector.broadcast %cst_119 : f32 to vector<16x1xf32>
    %463 = arith.maximumf %459, %462 : vector<16x1xf32>
    %cst_120 = arith.constant 9.99999974E-6 : f32
    %464 = vector.broadcast %cst_120 : f32 to vector<16x1xf32>
    %465 = arith.addf %463, %464 : vector<16x1xf32>
    %466 = math.rsqrt %465 : vector<16x1xf32>
    %467 = vector.broadcast %466 : vector<16x1xf32> to vector<16x256xf32>
    %468 = arith.mulf %461, %467 : vector<16x256xf32>
    %cst_121 = arith.constant 0.000000e+00 : f32
    %469 = vector.broadcast %cst_121 : f32 to vector<16x256xf32>
    %470 = arith.cmpf oge, %468, %469 : vector<16x256xf32>
    %cst_122 = arith.constant 2.000000e-01 : f32
    %471 = vector.broadcast %cst_122 : f32 to vector<16x256xf32>
    %472 = arith.mulf %471, %468 : vector<16x256xf32>
    %473 = arith.select %470, %468, %472 : vector<16x256xi1>, vector<16x256xf32>
    %c0_123 = arith.constant 0 : index
    %c0_124 = arith.constant 0 : index
    %474 = vector.load %arg18[%c0_123, %c0_124] : memref<1x16xbf16, #tpu.memory_space<vmem>>, vector<1x16xbf16>
    %475 = arith.truncf %473 : vector<16x256xf32> to vector<16x256xbf16>
    %cst_125 = arith.constant dense<0.000000e+00> : vector<1x256xf32>
    %476 = tpu.matmul %474, %475, %cst_125 {dimension_numbers = #tpu.dot_dimension_numbers<[1], [0], [0], [1], [0, 0, 1, 1], [], []>} : vector<1x16xbf16>, vector<16x256xbf16>, vector<1x256xf32> -> vector<1x256xf32>
    %c0_126 = arith.constant 0 : index
    %c0_127 = arith.constant 0 : index
    %477 = vector.load %arg19[%c0_126, %c0_127] : memref<1x1xf32, #tpu.memory_space<vmem>>, vector<1x1xf32>
    %478 = vector.broadcast %477 : vector<1x1xf32> to vector<1x256xf32>
    %479 = arith.addf %476, %478 : vector<1x256xf32>
    %cst_128 = arith.constant 0.000000e+00 : f32
    %480 = vector.broadcast %cst_128 : f32 to vector<1x17xf32>
    %481 = tpu.concatenate %480, %1, %480 in 1 : vector<1x17xf32>, vector<1x256xf32>, vector<1x17xf32> -> vector<1x290xf32>
    %c0_129 = arith.constant 0 : index
    %c0_130 = arith.constant 0 : index
    %482 = vector.load %arg2[%c0_129, %c0_130] : memref<2x256xf32, #tpu.memory_space<vmem>>, vector<2x256xf32>
    %483 = vector.extract_strided_slice %482 {offsets = [0, 0], sizes = [1, 256], strides = [1, 1]} : vector<2x256xf32> to vector<1x256xf32>
    %484 = vector.extract_strided_slice %482 {offsets = [1, 0], sizes = [1, 256], strides = [1, 1]} : vector<2x256xf32> to vector<1x256xf32>
    %485 = vector.extract_strided_slice %481 {offsets = [0, 0], sizes = [1, 256], strides = [1, 1]} : vector<1x290xf32> to vector<1x256xf32>
    %486 = arith.mulf %485, %483 : vector<1x256xf32>
    %487 = vector.extract_strided_slice %481 {offsets = [0, 1], sizes = [1, 256], strides = [1, 1]} : vector<1x290xf32> to vector<1x256xf32>
    %488 = vector.extract_strided_slice %481 {offsets = [0, 2], sizes = [1, 256], strides = [1, 1]} : vector<1x290xf32> to vector<1x256xf32>
    %489 = arith.mulf %488, %484 : vector<1x256xf32>
    %490 = vector.extract_strided_slice %481 {offsets = [0, 16], sizes = [1, 256], strides = [1, 1]} : vector<1x290xf32> to vector<1x256xf32>
    %491 = arith.mulf %490, %483 : vector<1x256xf32>
    %492 = vector.extract_strided_slice %481 {offsets = [0, 17], sizes = [1, 256], strides = [1, 1]} : vector<1x290xf32> to vector<1x256xf32>
    %493 = vector.extract_strided_slice %481 {offsets = [0, 18], sizes = [1, 256], strides = [1, 1]} : vector<1x290xf32> to vector<1x256xf32>
    %494 = arith.mulf %493, %484 : vector<1x256xf32>
    %495 = vector.extract_strided_slice %481 {offsets = [0, 32], sizes = [1, 256], strides = [1, 1]} : vector<1x290xf32> to vector<1x256xf32>
    %496 = arith.mulf %495, %483 : vector<1x256xf32>
    %497 = vector.extract_strided_slice %481 {offsets = [0, 33], sizes = [1, 256], strides = [1, 1]} : vector<1x290xf32> to vector<1x256xf32>
    %498 = vector.extract_strided_slice %481 {offsets = [0, 34], sizes = [1, 256], strides = [1, 1]} : vector<1x290xf32> to vector<1x256xf32>
    %499 = arith.mulf %498, %484 : vector<1x256xf32>
    %500 = tpu.concatenate %486, %487, %489, %491, %492, %494, %496, %497, %499 in 0 : vector<1x256xf32>, vector<1x256xf32>, vector<1x256xf32>, vector<1x256xf32>, vector<1x256xf32>, vector<1x256xf32>, vector<1x256xf32>, vector<1x256xf32>, vector<1x256xf32> -> vector<9x256xf32>
    %501 = arith.truncf %500 : vector<9x256xf32> to vector<9x256xbf16>
    %c0_131 = arith.constant 0 : index
    %c0_132 = arith.constant 0 : index
    %502 = vector.load %arg20[%c0_131, %c0_132] : memref<8x9xbf16, #tpu.memory_space<vmem>>, vector<8x9xbf16>
    %cst_133 = arith.constant dense<0.000000e+00> : vector<8x256xf32>
    %503 = tpu.matmul %502, %501, %cst_133 {dimension_numbers = #tpu.dot_dimension_numbers<[1], [0], [0], [1], [0, 0, 1, 1], [], []>} : vector<8x9xbf16>, vector<9x256xbf16>, vector<8x256xf32> -> vector<8x256xf32>
    %c0_134 = arith.constant 0 : index
    %c0_135 = arith.constant 0 : index
    %504 = vector.load %arg21[%c0_134, %c0_135] : memref<8x1xf32, #tpu.memory_space<vmem>>, vector<8x1xf32>
    %505 = vector.broadcast %504 : vector<8x1xf32> to vector<8x256xf32>
    %506 = arith.addf %503, %505 : vector<8x256xf32>
    %cst_136 = arith.constant 0.000000e+00 : f32
    %507 = vector.broadcast %cst_136 : f32 to vector<8x256xf32>
    %508 = arith.maximumf %506, %507 : vector<8x256xf32>
    %cst_137 = arith.constant 0.000000e+00 : f32
    %509 = vector.broadcast %cst_137 : f32 to vector<8x17xf32>
    %510 = tpu.concatenate %509, %508, %509 in 1 : vector<8x17xf32>, vector<8x256xf32>, vector<8x17xf32> -> vector<8x290xf32>
    %c0_138 = arith.constant 0 : index
    %c0_139 = arith.constant 0 : index
    %511 = vector.load %arg2[%c0_138, %c0_139] : memref<2x256xf32, #tpu.memory_space<vmem>>, vector<2x256xf32>
    %512 = vector.extract_strided_slice %511 {offsets = [0, 0], sizes = [1, 256], strides = [1, 1]} : vector<2x256xf32> to vector<1x256xf32>
    %513 = vector.extract_strided_slice %511 {offsets = [1, 0], sizes = [1, 256], strides = [1, 1]} : vector<2x256xf32> to vector<1x256xf32>
    %514 = vector.extract_strided_slice %510 {offsets = [0, 0], sizes = [8, 256], strides = [1, 1]} : vector<8x290xf32> to vector<8x256xf32>
    %515 = vector.broadcast %512 : vector<1x256xf32> to vector<8x256xf32>
    %516 = arith.mulf %514, %515 : vector<8x256xf32>
    %517 = vector.extract_strided_slice %510 {offsets = [0, 1], sizes = [8, 256], strides = [1, 1]} : vector<8x290xf32> to vector<8x256xf32>
    %518 = vector.extract_strided_slice %510 {offsets = [0, 2], sizes = [8, 256], strides = [1, 1]} : vector<8x290xf32> to vector<8x256xf32>
    %519 = vector.broadcast %513 : vector<1x256xf32> to vector<8x256xf32>
    %520 = arith.mulf %518, %519 : vector<8x256xf32>
    %521 = vector.extract_strided_slice %510 {offsets = [0, 16], sizes = [8, 256], strides = [1, 1]} : vector<8x290xf32> to vector<8x256xf32>
    %522 = vector.broadcast %512 : vector<1x256xf32> to vector<8x256xf32>
    %523 = arith.mulf %521, %522 : vector<8x256xf32>
    %524 = vector.extract_strided_slice %510 {offsets = [0, 17], sizes = [8, 256], strides = [1, 1]} : vector<8x290xf32> to vector<8x256xf32>
    %525 = vector.extract_strided_slice %510 {offsets = [0, 18], sizes = [8, 256], strides = [1, 1]} : vector<8x290xf32> to vector<8x256xf32>
    %526 = vector.broadcast %513 : vector<1x256xf32> to vector<8x256xf32>
    %527 = arith.mulf %525, %526 : vector<8x256xf32>
    %528 = vector.extract_strided_slice %510 {offsets = [0, 32], sizes = [8, 256], strides = [1, 1]} : vector<8x290xf32> to vector<8x256xf32>
    %529 = vector.broadcast %512 : vector<1x256xf32> to vector<8x256xf32>
    %530 = arith.mulf %528, %529 : vector<8x256xf32>
    %531 = vector.extract_strided_slice %510 {offsets = [0, 33], sizes = [8, 256], strides = [1, 1]} : vector<8x290xf32> to vector<8x256xf32>
    %532 = vector.extract_strided_slice %510 {offsets = [0, 34], sizes = [8, 256], strides = [1, 1]} : vector<8x290xf32> to vector<8x256xf32>
    %533 = vector.broadcast %513 : vector<1x256xf32> to vector<8x256xf32>
    %534 = arith.mulf %532, %533 : vector<8x256xf32>
    %535 = tpu.concatenate %516, %517, %520, %523, %524, %527, %530, %531, %534 in 0 : vector<8x256xf32>, vector<8x256xf32>, vector<8x256xf32>, vector<8x256xf32>, vector<8x256xf32>, vector<8x256xf32>, vector<8x256xf32>, vector<8x256xf32>, vector<8x256xf32> -> vector<72x256xf32>
    %536 = arith.truncf %535 : vector<72x256xf32> to vector<72x256xbf16>
    %c0_140 = arith.constant 0 : index
    %c0_141 = arith.constant 0 : index
    %537 = vector.load %arg22[%c0_140, %c0_141] : memref<8x72xbf16, #tpu.memory_space<vmem>>, vector<8x72xbf16>
    %cst_142 = arith.constant dense<0.000000e+00> : vector<8x256xf32>
    %538 = tpu.matmul %537, %536, %cst_142 {dimension_numbers = #tpu.dot_dimension_numbers<[1], [0], [0], [1], [0, 0, 1, 1], [], []>} : vector<8x72xbf16>, vector<72x256xbf16>, vector<8x256xf32> -> vector<8x256xf32>
    %c0_143 = arith.constant 0 : index
    %c0_144 = arith.constant 0 : index
    %539 = vector.load %arg23[%c0_143, %c0_144] : memref<8x1xf32, #tpu.memory_space<vmem>>, vector<8x1xf32>
    %540 = vector.broadcast %539 : vector<8x1xf32> to vector<8x256xf32>
    %541 = arith.addf %538, %540 : vector<8x256xf32>
    %cst_145 = arith.constant 0.000000e+00 : f32
    %542 = vector.broadcast %cst_145 : f32 to vector<8x256xf32>
    %543 = arith.maximumf %541, %542 : vector<8x256xf32>
    %544 = arith.truncf %543 : vector<8x256xf32> to vector<8x256xbf16>
    %c0_146 = arith.constant 0 : index
    %c0_147 = arith.constant 0 : index
    %545 = vector.load %arg5[%c0_146, %c0_147] : memref<256x64xbf16, #tpu.memory_space<vmem>>, vector<256x64xbf16>
    %cst_148 = arith.constant dense<0.000000e+00> : vector<8x64xf32>
    %546 = tpu.matmul %544, %545, %cst_148 {dimension_numbers = #tpu.dot_dimension_numbers<[1], [0], [0], [1], [0, 0, 1, 1], [], []>} : vector<8x256xbf16>, vector<256x64xbf16>, vector<8x64xf32> -> vector<8x64xf32>
    %cst_149 = arith.constant 0.000000e+00 : f32
    %547 = vector.broadcast %cst_149 : f32 to vector<8x9xf32>
    %548 = tpu.concatenate %547, %546, %547 in 1 : vector<8x9xf32>, vector<8x64xf32>, vector<8x9xf32> -> vector<8x82xf32>
    %c0_150 = arith.constant 0 : index
    %c0_151 = arith.constant 0 : index
    %549 = vector.load %arg3[%c0_150, %c0_151] : memref<2x64xf32, #tpu.memory_space<vmem>>, vector<2x64xf32>
    %550 = vector.extract_strided_slice %549 {offsets = [0, 0], sizes = [1, 64], strides = [1, 1]} : vector<2x64xf32> to vector<1x64xf32>
    %551 = vector.extract_strided_slice %549 {offsets = [1, 0], sizes = [1, 64], strides = [1, 1]} : vector<2x64xf32> to vector<1x64xf32>
    %552 = vector.extract_strided_slice %548 {offsets = [0, 0], sizes = [8, 64], strides = [1, 1]} : vector<8x82xf32> to vector<8x64xf32>
    %553 = vector.broadcast %550 : vector<1x64xf32> to vector<8x64xf32>
    %554 = arith.mulf %552, %553 : vector<8x64xf32>
    %555 = vector.extract_strided_slice %548 {offsets = [0, 1], sizes = [8, 64], strides = [1, 1]} : vector<8x82xf32> to vector<8x64xf32>
    %556 = vector.extract_strided_slice %548 {offsets = [0, 2], sizes = [8, 64], strides = [1, 1]} : vector<8x82xf32> to vector<8x64xf32>
    %557 = vector.broadcast %551 : vector<1x64xf32> to vector<8x64xf32>
    %558 = arith.mulf %556, %557 : vector<8x64xf32>
    %559 = vector.extract_strided_slice %548 {offsets = [0, 8], sizes = [8, 64], strides = [1, 1]} : vector<8x82xf32> to vector<8x64xf32>
    %560 = vector.broadcast %550 : vector<1x64xf32> to vector<8x64xf32>
    %561 = arith.mulf %559, %560 : vector<8x64xf32>
    %562 = vector.extract_strided_slice %548 {offsets = [0, 9], sizes = [8, 64], strides = [1, 1]} : vector<8x82xf32> to vector<8x64xf32>
    %563 = vector.extract_strided_slice %548 {offsets = [0, 10], sizes = [8, 64], strides = [1, 1]} : vector<8x82xf32> to vector<8x64xf32>
    %564 = vector.broadcast %551 : vector<1x64xf32> to vector<8x64xf32>
    %565 = arith.mulf %563, %564 : vector<8x64xf32>
    %566 = vector.extract_strided_slice %548 {offsets = [0, 16], sizes = [8, 64], strides = [1, 1]} : vector<8x82xf32> to vector<8x64xf32>
    %567 = vector.broadcast %550 : vector<1x64xf32> to vector<8x64xf32>
    %568 = arith.mulf %566, %567 : vector<8x64xf32>
    %569 = vector.extract_strided_slice %548 {offsets = [0, 17], sizes = [8, 64], strides = [1, 1]} : vector<8x82xf32> to vector<8x64xf32>
    %570 = vector.extract_strided_slice %548 {offsets = [0, 18], sizes = [8, 64], strides = [1, 1]} : vector<8x82xf32> to vector<8x64xf32>
    %571 = vector.broadcast %551 : vector<1x64xf32> to vector<8x64xf32>
    %572 = arith.mulf %570, %571 : vector<8x64xf32>
    %573 = tpu.concatenate %554, %555, %558, %561, %562, %565, %568, %569, %572 in 0 : vector<8x64xf32>, vector<8x64xf32>, vector<8x64xf32>, vector<8x64xf32>, vector<8x64xf32>, vector<8x64xf32>, vector<8x64xf32>, vector<8x64xf32>, vector<8x64xf32> -> vector<72x64xf32>
    %574 = arith.truncf %573 : vector<72x64xf32> to vector<72x64xbf16>
    %c0_152 = arith.constant 0 : index
    %c0_153 = arith.constant 0 : index
    %575 = vector.load %arg24[%c0_152, %c0_153] : memref<8x72xbf16, #tpu.memory_space<vmem>>, vector<8x72xbf16>
    %cst_154 = arith.constant dense<0.000000e+00> : vector<8x64xf32>
    %576 = tpu.matmul %575, %574, %cst_154 {dimension_numbers = #tpu.dot_dimension_numbers<[1], [0], [0], [1], [0, 0, 1, 1], [], []>} : vector<8x72xbf16>, vector<72x64xbf16>, vector<8x64xf32> -> vector<8x64xf32>
    %c0_155 = arith.constant 0 : index
    %c0_156 = arith.constant 0 : index
    %577 = vector.load %arg25[%c0_155, %c0_156] : memref<8x1xf32, #tpu.memory_space<vmem>>, vector<8x1xf32>
    %578 = vector.broadcast %577 : vector<8x1xf32> to vector<8x64xf32>
    %579 = arith.addf %576, %578 : vector<8x64xf32>
    %cst_157 = arith.constant 0.000000e+00 : f32
    %580 = vector.broadcast %cst_157 : f32 to vector<8x64xf32>
    %581 = arith.maximumf %579, %580 : vector<8x64xf32>
    %582 = arith.truncf %581 : vector<8x64xf32> to vector<8x64xbf16>
    %c0_158 = arith.constant 0 : index
    %c0_159 = arith.constant 0 : index
    %583 = vector.load %arg6[%c0_158, %c0_159] : memref<64x16xbf16, #tpu.memory_space<vmem>>, vector<64x16xbf16>
    %cst_160 = arith.constant dense<0.000000e+00> : vector<8x16xf32>
    %584 = tpu.matmul %582, %583, %cst_160 {dimension_numbers = #tpu.dot_dimension_numbers<[1], [0], [0], [1], [0, 0, 1, 1], [], []>} : vector<8x64xbf16>, vector<64x16xbf16>, vector<8x16xf32> -> vector<8x16xf32>
    %cst_161 = arith.constant 0.000000e+00 : f32
    %585 = vector.broadcast %cst_161 : f32 to vector<8x5xf32>
    %586 = tpu.concatenate %585, %584, %585 in 1 : vector<8x5xf32>, vector<8x16xf32>, vector<8x5xf32> -> vector<8x26xf32>
    %c0_162 = arith.constant 0 : index
    %c0_163 = arith.constant 0 : index
    %587 = vector.load %arg4[%c0_162, %c0_163] : memref<2x16xf32, #tpu.memory_space<vmem>>, vector<2x16xf32>
    %588 = vector.extract_strided_slice %587 {offsets = [0, 0], sizes = [1, 16], strides = [1, 1]} : vector<2x16xf32> to vector<1x16xf32>
    %589 = vector.extract_strided_slice %587 {offsets = [1, 0], sizes = [1, 16], strides = [1, 1]} : vector<2x16xf32> to vector<1x16xf32>
    %590 = vector.extract_strided_slice %586 {offsets = [0, 0], sizes = [8, 16], strides = [1, 1]} : vector<8x26xf32> to vector<8x16xf32>
    %591 = vector.broadcast %588 : vector<1x16xf32> to vector<8x16xf32>
    %592 = arith.mulf %590, %591 : vector<8x16xf32>
    %593 = vector.extract_strided_slice %586 {offsets = [0, 1], sizes = [8, 16], strides = [1, 1]} : vector<8x26xf32> to vector<8x16xf32>
    %594 = vector.extract_strided_slice %586 {offsets = [0, 2], sizes = [8, 16], strides = [1, 1]} : vector<8x26xf32> to vector<8x16xf32>
    %595 = vector.broadcast %589 : vector<1x16xf32> to vector<8x16xf32>
    %596 = arith.mulf %594, %595 : vector<8x16xf32>
    %597 = vector.extract_strided_slice %586 {offsets = [0, 4], sizes = [8, 16], strides = [1, 1]} : vector<8x26xf32> to vector<8x16xf32>
    %598 = vector.broadcast %588 : vector<1x16xf32> to vector<8x16xf32>
    %599 = arith.mulf %597, %598 : vector<8x16xf32>
    %600 = vector.extract_strided_slice %586 {offsets = [0, 5], sizes = [8, 16], strides = [1, 1]} : vector<8x26xf32> to vector<8x16xf32>
    %601 = vector.extract_strided_slice %586 {offsets = [0, 6], sizes = [8, 16], strides = [1, 1]} : vector<8x26xf32> to vector<8x16xf32>
    %602 = vector.broadcast %589 : vector<1x16xf32> to vector<8x16xf32>
    %603 = arith.mulf %601, %602 : vector<8x16xf32>
    %604 = vector.extract_strided_slice %586 {offsets = [0, 8], sizes = [8, 16], strides = [1, 1]} : vector<8x26xf32> to vector<8x16xf32>
    %605 = vector.broadcast %588 : vector<1x16xf32> to vector<8x16xf32>
    %606 = arith.mulf %604, %605 : vector<8x16xf32>
    %607 = vector.extract_strided_slice %586 {offsets = [0, 9], sizes = [8, 16], strides = [1, 1]} : vector<8x26xf32> to vector<8x16xf32>
    %608 = vector.extract_strided_slice %586 {offsets = [0, 10], sizes = [8, 16], strides = [1, 1]} : vector<8x26xf32> to vector<8x16xf32>
    %609 = vector.broadcast %589 : vector<1x16xf32> to vector<8x16xf32>
    %610 = arith.mulf %608, %609 : vector<8x16xf32>
    %611 = tpu.concatenate %592, %593, %596, %599, %600, %603, %606, %607, %610 in 0 : vector<8x16xf32>, vector<8x16xf32>, vector<8x16xf32>, vector<8x16xf32>, vector<8x16xf32>, vector<8x16xf32>, vector<8x16xf32>, vector<8x16xf32>, vector<8x16xf32> -> vector<72x16xf32>
    %612 = arith.truncf %611 : vector<72x16xf32> to vector<72x16xbf16>
    %c0_164 = arith.constant 0 : index
    %c0_165 = arith.constant 0 : index
    %613 = vector.load %arg26[%c0_164, %c0_165] : memref<8x72xbf16, #tpu.memory_space<vmem>>, vector<8x72xbf16>
    %cst_166 = arith.constant dense<0.000000e+00> : vector<8x16xf32>
    %614 = tpu.matmul %613, %612, %cst_166 {dimension_numbers = #tpu.dot_dimension_numbers<[1], [0], [0], [1], [0, 0, 1, 1], [], []>} : vector<8x72xbf16>, vector<72x16xbf16>, vector<8x16xf32> -> vector<8x16xf32>
    %c0_167 = arith.constant 0 : index
    %c0_168 = arith.constant 0 : index
    %615 = vector.load %arg27[%c0_167, %c0_168] : memref<8x1xf32, #tpu.memory_space<vmem>>, vector<8x1xf32>
    %616 = vector.broadcast %615 : vector<8x1xf32> to vector<8x16xf32>
    %617 = arith.addf %614, %616 : vector<8x16xf32>
    %cst_169 = arith.constant 0.000000e+00 : f32
    %618 = vector.broadcast %cst_169 : f32 to vector<8x16xf32>
    %619 = arith.maximumf %617, %618 : vector<8x16xf32>
    %620 = arith.truncf %619 : vector<8x16xf32> to vector<8x16xbf16>
    %c0_170 = arith.constant 0 : index
    %c0_171 = arith.constant 0 : index
    %621 = vector.load %arg7[%c0_170, %c0_171] : memref<16x256xbf16, #tpu.memory_space<vmem>>, vector<16x256xbf16>
    %cst_172 = arith.constant dense<0.000000e+00> : vector<8x256xf32>
    %622 = tpu.matmul %620, %621, %cst_172 {dimension_numbers = #tpu.dot_dimension_numbers<[1], [0], [0], [1], [0, 0, 1, 1], [], []>} : vector<8x16xbf16>, vector<16x256xbf16>, vector<8x256xf32> -> vector<8x256xf32>
    %cst_173 = arith.constant 0.000000e+00 : f32
    %623 = vector.broadcast %cst_173 : f32 to vector<8x17xf32>
    %624 = tpu.concatenate %623, %622, %623 in 1 : vector<8x17xf32>, vector<8x256xf32>, vector<8x17xf32> -> vector<8x290xf32>
    %c0_174 = arith.constant 0 : index
    %c0_175 = arith.constant 0 : index
    %625 = vector.load %arg2[%c0_174, %c0_175] : memref<2x256xf32, #tpu.memory_space<vmem>>, vector<2x256xf32>
    %626 = vector.extract_strided_slice %625 {offsets = [0, 0], sizes = [1, 256], strides = [1, 1]} : vector<2x256xf32> to vector<1x256xf32>
    %627 = vector.extract_strided_slice %625 {offsets = [1, 0], sizes = [1, 256], strides = [1, 1]} : vector<2x256xf32> to vector<1x256xf32>
    %628 = vector.extract_strided_slice %624 {offsets = [0, 0], sizes = [8, 256], strides = [1, 1]} : vector<8x290xf32> to vector<8x256xf32>
    %629 = vector.broadcast %626 : vector<1x256xf32> to vector<8x256xf32>
    %630 = arith.mulf %628, %629 : vector<8x256xf32>
    %631 = vector.extract_strided_slice %624 {offsets = [0, 1], sizes = [8, 256], strides = [1, 1]} : vector<8x290xf32> to vector<8x256xf32>
    %632 = vector.extract_strided_slice %624 {offsets = [0, 2], sizes = [8, 256], strides = [1, 1]} : vector<8x290xf32> to vector<8x256xf32>
    %633 = vector.broadcast %627 : vector<1x256xf32> to vector<8x256xf32>
    %634 = arith.mulf %632, %633 : vector<8x256xf32>
    %635 = vector.extract_strided_slice %624 {offsets = [0, 16], sizes = [8, 256], strides = [1, 1]} : vector<8x290xf32> to vector<8x256xf32>
    %636 = vector.broadcast %626 : vector<1x256xf32> to vector<8x256xf32>
    %637 = arith.mulf %635, %636 : vector<8x256xf32>
    %638 = vector.extract_strided_slice %624 {offsets = [0, 17], sizes = [8, 256], strides = [1, 1]} : vector<8x290xf32> to vector<8x256xf32>
    %639 = vector.extract_strided_slice %624 {offsets = [0, 18], sizes = [8, 256], strides = [1, 1]} : vector<8x290xf32> to vector<8x256xf32>
    %640 = vector.broadcast %627 : vector<1x256xf32> to vector<8x256xf32>
    %641 = arith.mulf %639, %640 : vector<8x256xf32>
    %642 = vector.extract_strided_slice %624 {offsets = [0, 32], sizes = [8, 256], strides = [1, 1]} : vector<8x290xf32> to vector<8x256xf32>
    %643 = vector.broadcast %626 : vector<1x256xf32> to vector<8x256xf32>
    %644 = arith.mulf %642, %643 : vector<8x256xf32>
    %645 = vector.extract_strided_slice %624 {offsets = [0, 33], sizes = [8, 256], strides = [1, 1]} : vector<8x290xf32> to vector<8x256xf32>
    %646 = vector.extract_strided_slice %624 {offsets = [0, 34], sizes = [8, 256], strides = [1, 1]} : vector<8x290xf32> to vector<8x256xf32>
    %647 = vector.broadcast %627 : vector<1x256xf32> to vector<8x256xf32>
    %648 = arith.mulf %646, %647 : vector<8x256xf32>
    %649 = tpu.concatenate %630, %631, %634, %637, %638, %641, %644, %645, %648 in 0 : vector<8x256xf32>, vector<8x256xf32>, vector<8x256xf32>, vector<8x256xf32>, vector<8x256xf32>, vector<8x256xf32>, vector<8x256xf32>, vector<8x256xf32>, vector<8x256xf32> -> vector<72x256xf32>
    %650 = arith.truncf %649 : vector<72x256xf32> to vector<72x256xbf16>
    %c0_176 = arith.constant 0 : index
    %c0_177 = arith.constant 0 : index
    %651 = vector.load %arg28[%c0_176, %c0_177] : memref<1x72xbf16, #tpu.memory_space<vmem>>, vector<1x72xbf16>
    %cst_178 = arith.constant dense<0.000000e+00> : vector<1x256xf32>
    %652 = tpu.matmul %651, %650, %cst_178 {dimension_numbers = #tpu.dot_dimension_numbers<[1], [0], [0], [1], [0, 0, 1, 1], [], []>} : vector<1x72xbf16>, vector<72x256xbf16>, vector<1x256xf32> -> vector<1x256xf32>
    %c0_179 = arith.constant 0 : index
    %c0_180 = arith.constant 0 : index
    %653 = vector.load %arg29[%c0_179, %c0_180] : memref<1x1xf32, #tpu.memory_space<vmem>>, vector<1x1xf32>
    %654 = vector.broadcast %653 : vector<1x1xf32> to vector<1x256xf32>
    %655 = arith.addf %652, %654 : vector<1x256xf32>
    %656 = arith.negf %655 : vector<1x256xf32>
    %657 = math.exp %656 : vector<1x256xf32>
    %cst_181 = arith.constant 1.000000e+00 : f32
    %658 = vector.broadcast %cst_181 : f32 to vector<1x256xf32>
    %659 = arith.addf %658, %657 : vector<1x256xf32>
    %660 = arith.divf %658, %659 : vector<1x256xf32>
    %661 = arith.mulf %479, %660 : vector<1x256xf32>
    %cst_182 = arith.constant dense<0.000000e+00> : vector<1xf32>
    %662 = vector.multi_reduction <add>, %661, %cst_182 [1] : vector<1x256xf32> to vector<1xf32>
    %663 = vector.shape_cast %662 : vector<1xf32> to vector<1x1xf32>
    %cst_183 = arith.constant dense<0.000000e+00> : vector<1xf32>
    %664 = vector.multi_reduction <add>, %660, %cst_183 [1] : vector<1x256xf32> to vector<1xf32>
    %665 = vector.shape_cast %664 : vector<1xf32> to vector<1x1xf32>
    %666 = arith.divf %663, %665 : vector<1x1xf32>
    %667 = vector.shape_cast %666 : vector<1x1xf32> to vector<1x1x1xf32>
    %c0_184 = arith.constant 0 : index
    %c0_185 = arith.constant 0 : index
    %c0_186 = arith.constant 0 : index
    %668 = vector.load %arg30[%c0_184, %c0_185, %c0_186] : memref<1x1x1xf32, #tpu.memory_space<vmem>>, vector<1x1x1xf32>
    tpu.vector_store %arg30[%c0_184, %c0_185, %c0_186], %667 {strides = array<i32>} : memref<1x1x1xf32, #tpu.memory_space<vmem>>, vector<1x1x1xf32>,
    return
  }
  func.func @transform_0(%arg0: i32) -> (i32, i32, i32) {
    %c0_i32 = arith.constant 0 : i32
    %c0_i32_0 = arith.constant 0 : i32
    %c0_i32_1 = arith.constant 0 : i32
    return %arg0, %c0_i32, %c0_i32_0 : i32, i32, i32
  }
  func.func @transform_1(%arg0: i32) -> (i32, i32) {
    %c0_i32 = arith.constant 0 : i32
    %c0_i32_0 = arith.constant 0 : i32
    %c0_i32_1 = arith.constant 0 : i32
    return %c0_i32, %c0_i32_0 : i32, i32
  }
  func.func @transform_2(%arg0: i32) -> (i32, i32) {
    %c0_i32 = arith.constant 0 : i32
    %c0_i32_0 = arith.constant 0 : i32
    %c0_i32_1 = arith.constant 0 : i32
    return %c0_i32, %c0_i32_0 : i32, i32
  }
  func.func @transform_3(%arg0: i32) -> (i32, i32) {
    %c0_i32 = arith.constant 0 : i32
    %c0_i32_0 = arith.constant 0 : i32
    %c0_i32_1 = arith.constant 0 : i32
    return %c0_i32, %c0_i32_0 : i32, i32
  }
  func.func @transform_4(%arg0: i32) -> (i32, i32) {
    %c0_i32 = arith.constant 0 : i32
    %c0_i32_0 = arith.constant 0 : i32
    %c0_i32_1 = arith.constant 0 : i32
    return %c0_i32, %c0_i32_0 : i32, i32
  }
  func.func @transform_5(%arg0: i32) -> (i32, i32) {
    %c0_i32 = arith.constant 0 : i32
    %c0_i32_0 = arith.constant 0 : i32
    %c0_i32_1 = arith.constant 0 : i32
    return %c0_i32, %c0_i32_0 : i32, i32
  }
  func.func @transform_6(%arg0: i32) -> (i32, i32) {
    %c0_i32 = arith.constant 0 : i32
    %c0_i32_0 = arith.constant 0 : i32
    %c0_i32_1 = arith.constant 0 : i32
    return %c0_i32, %c0_i32_0 : i32, i32
  }
  func.func @transform_7(%arg0: i32) -> (i32, i32) {
    %c0_i32 = arith.constant 0 : i32
    %c0_i32_0 = arith.constant 0 : i32
    %c0_i32_1 = arith.constant 0 : i32
    return %c0_i32, %c0_i32_0 : i32, i32
  }
  func.func @transform_8(%arg0: i32) -> (i32, i32) {
    %c0_i32 = arith.constant 0 : i32
    %c0_i32_0 = arith.constant 0 : i32
    %c0_i32_1 = arith.constant 0 : i32
    return %c0_i32, %c0_i32_0 : i32, i32
  }
  func.func @transform_9(%arg0: i32) -> (i32, i32) {
    %c0_i32 = arith.constant 0 : i32
    %c0_i32_0 = arith.constant 0 : i32
    %c0_i32_1 = arith.constant 0 : i32
    return %c0_i32, %c0_i32_0 : i32, i32
  }
  func.func @transform_10(%arg0: i32) -> (i32, i32) {
    %c0_i32 = arith.constant 0 : i32
    %c0_i32_0 = arith.constant 0 : i32
    %c0_i32_1 = arith.constant 0 : i32
    return %c0_i32, %c0_i32_0 : i32, i32
  }
  func.func @transform_11(%arg0: i32) -> (i32, i32) {
    %c0_i32 = arith.constant 0 : i32
    %c0_i32_0 = arith.constant 0 : i32
    %c0_i32_1 = arith.constant 0 : i32
    return %c0_i32, %c0_i32_0 : i32, i32
  }
  func.func @transform_12(%arg0: i32) -> (i32, i32) {
    %c0_i32 = arith.constant 0 : i32
    %c0_i32_0 = arith.constant 0 : i32
    %c0_i32_1 = arith.constant 0 : i32
    return %c0_i32, %c0_i32_0 : i32, i32
  }
  func.func @transform_13(%arg0: i32) -> (i32, i32) {
    %c0_i32 = arith.constant 0 : i32
    %c0_i32_0 = arith.constant 0 : i32
    %c0_i32_1 = arith.constant 0 : i32
    return %c0_i32, %c0_i32_0 : i32, i32
  }
  func.func @transform_14(%arg0: i32) -> (i32, i32) {
    %c0_i32 = arith.constant 0 : i32
    %c0_i32_0 = arith.constant 0 : i32
    %c0_i32_1 = arith.constant 0 : i32
    return %c0_i32, %c0_i32_0 : i32, i32
  }
  func.func @transform_15(%arg0: i32) -> (i32, i32) {
    %c0_i32 = arith.constant 0 : i32
    %c0_i32_0 = arith.constant 0 : i32
    %c0_i32_1 = arith.constant 0 : i32
    return %c0_i32, %c0_i32_0 : i32, i32
  }
  func.func @transform_16(%arg0: i32) -> (i32, i32) {
    %c0_i32 = arith.constant 0 : i32
    %c0_i32_0 = arith.constant 0 : i32
    %c0_i32_1 = arith.constant 0 : i32
    return %c0_i32, %c0_i32_0 : i32, i32
  }
  func.func @transform_17(%arg0: i32) -> (i32, i32) {
    %c0_i32 = arith.constant 0 : i32
    %c0_i32_0 = arith.constant 0 : i32
    %c0_i32_1 = arith.constant 0 : i32
    return %c0_i32, %c0_i32_0 : i32, i32
  }
  func.func @transform_18(%arg0: i32) -> (i32, i32) {
    %c0_i32 = arith.constant 0 : i32
    %c0_i32_0 = arith.constant 0 : i32
    %c0_i32_1 = arith.constant 0 : i32
    return %c0_i32, %c0_i32_0 : i32, i32
  }
  func.func @transform_19(%arg0: i32) -> (i32, i32) {
    %c0_i32 = arith.constant 0 : i32
    %c0_i32_0 = arith.constant 0 : i32
    %c0_i32_1 = arith.constant 0 : i32
    return %c0_i32, %c0_i32_0 : i32, i32
  }
  func.func @transform_20(%arg0: i32) -> (i32, i32) {
    %c0_i32 = arith.constant 0 : i32
    %c0_i32_0 = arith.constant 0 : i32
    %c0_i32_1 = arith.constant 0 : i32
    return %c0_i32, %c0_i32_0 : i32, i32
  }
  func.func @transform_21(%arg0: i32) -> (i32, i32) {
    %c0_i32 = arith.constant 0 : i32
    %c0_i32_0 = arith.constant 0 : i32
    %c0_i32_1 = arith.constant 0 : i32
    return %c0_i32, %c0_i32_0 : i32, i32
  }
  func.func @transform_22(%arg0: i32) -> (i32, i32) {
    %c0_i32 = arith.constant 0 : i32
    %c0_i32_0 = arith.constant 0 : i32
    %c0_i32_1 = arith.constant 0 : i32
    return %c0_i32, %c0_i32_0 : i32, i32
  }
  func.func @transform_23(%arg0: i32) -> (i32, i32) {
    %c0_i32 = arith.constant 0 : i32
    %c0_i32_0 = arith.constant 0 : i32
    %c0_i32_1 = arith.constant 0 : i32
    return %c0_i32, %c0_i32_0 : i32, i32
  }
  func.func @transform_24(%arg0: i32) -> (i32, i32) {
    %c0_i32 = arith.constant 0 : i32
    %c0_i32_0 = arith.constant 0 : i32
    %c0_i32_1 = arith.constant 0 : i32
    return %c0_i32, %c0_i32_0 : i32, i32
  }
  func.func @transform_25(%arg0: i32) -> (i32, i32) {
    %c0_i32 = arith.constant 0 : i32
    %c0_i32_0 = arith.constant 0 : i32
    %c0_i32_1 = arith.constant 0 : i32
    return %c0_i32, %c0_i32_0 : i32, i32
  }
  func.func @transform_26(%arg0: i32) -> (i32, i32) {
    %c0_i32 = arith.constant 0 : i32
    %c0_i32_0 = arith.constant 0 : i32
    %c0_i32_1 = arith.constant 0 : i32
    return %c0_i32, %c0_i32_0 : i32, i32
  }
  func.func @transform_27(%arg0: i32) -> (i32, i32) {
    %c0_i32 = arith.constant 0 : i32
    %c0_i32_0 = arith.constant 0 : i32
    %c0_i32_1 = arith.constant 0 : i32
    return %c0_i32, %c0_i32_0 : i32, i32
  }
  func.func @transform_28(%arg0: i32) -> (i32, i32) {
    %c0_i32 = arith.constant 0 : i32
    %c0_i32_0 = arith.constant 0 : i32
    %c0_i32_1 = arith.constant 0 : i32
    return %c0_i32, %c0_i32_0 : i32, i32
  }
  func.func @transform_29(%arg0: i32) -> (i32, i32, i32) {
    %c0_i32 = arith.constant 0 : i32
    %c0_i32_0 = arith.constant 0 : i32
    %c0_i32_1 = arith.constant 0 : i32
    return %arg0, %c0_i32, %c0_i32_0 : i32, i32, i32
  }
}

</mosaic_0001>

<llo_original>
// kernel: attention_pixel_discriminator.1
$region0: #{attention_pixel_discriminator.1}
  #allocation0 [shape = 'u32[]', space=smem, size = 0x4, offset = 0x4, fixed_abs, tag = 'smem constant byte address 0x4 - core index']
  #allocation1 [shape = 'u32[72,128]{1,0:T(1,128)}', space=vmem, size = 0x9000, scoped, tag = 'internal scratch']
  #allocation2 [shape = 'f32[1,1]{1,0:T(1,128)S(1)}', space=vmem, size = 0x200, scoped, tag = 'scoped memory for attention_pixel_discriminator.1']
  #allocation3 [shape = 'f32[1,1]{1,0:T(1,128)S(1)}', space=vmem, size = 0x200, scoped, tag = 'scoped memory for attention_pixel_discriminator.1']
  %s0 = inlined_call_operand.smem [shape: u32[30], index: -1, kind: input, shape index: {}]
  %s1 = sld [smem:[%s0]]
  %s2 = scalar_lea.smem %s0, 1
  %s3 = sld [smem:[%s2]]
  %s4 = scalar_lea.smem %s0, 2
  %s5 = sld [smem:[%s4]]
  %s6 = scalar_lea.smem %s0, 3
  %s7 = sld [smem:[%s6]]
  %s8 = scalar_lea.smem %s0, 4
  %s9 = sld [smem:[%s8]]
  %s10 = scalar_lea.smem %s0, 5
  %s11 = sld [smem:[%s10]]
  %s12 = scalar_lea.smem %s0, 6
  %s13 = sld [smem:[%s12]]
  %s14 = scalar_lea.smem %s0, 7
  %s15 = sld [smem:[%s14]]
  %s16 = scalar_lea.smem %s0, 8
  %s17 = sld [smem:[%s16]]
  %s18 = scalar_lea.smem %s0, 9
  %s19 = sld [smem:[%s18]]
  %s20 = scalar_lea.smem %s0, 10
  %s21 = sld [smem:[%s20]]
  %s22 = scalar_lea.smem %s0, 11
  %s23 = sld [smem:[%s22]]
  %s24 = scalar_lea.smem %s0, 12
  %s25 = sld [smem:[%s24]]
  %s26 = scalar_lea.smem %s0, 13
  %s27 = sld [smem:[%s26]]
  %s28 = scalar_lea.smem %s0, 14
  %s29 = sld [smem:[%s28]]
  %s30 = scalar_lea.smem %s0, 15
  %s31 = sld [smem:[%s30]]
  %s32 = scalar_lea.smem %s0, 16
  %s33 = sld [smem:[%s32]]
  %s34 = scalar_lea.smem %s0, 17
  %s35 = sld [smem:[%s34]]
  %s36 = scalar_lea.smem %s0, 18
  %s37 = sld [smem:[%s36]]
  %s38 = scalar_lea.smem %s0, 19
  %s39 = sld [smem:[%s38]]
  %s40 = scalar_lea.smem %s0, 20
  %s41 = sld [smem:[%s40]]
  %s42 = scalar_lea.smem %s0, 21
  %s43 = sld [smem:[%s42]]
  %s44 = scalar_lea.smem %s0, 22
  %s45 = sld [smem:[%s44]]
  %s46 = scalar_lea.smem %s0, 23
  %s47 = sld [smem:[%s46]]
  %s48 = scalar_lea.smem %s0, 24
  %s49 = sld [smem:[%s48]]
  %s50 = scalar_lea.smem %s0, 25
  %s51 = sld [smem:[%s50]]
  %s52 = scalar_lea.smem %s0, 26
  %s53 = sld [smem:[%s52]]
  %s54 = scalar_lea.smem %s0, 27
  %s55 = sld [smem:[%s54]]
  %s56 = scalar_lea.smem %s0, 28
  %s57 = sld [smem:[%s56]]
  %s58 = scalar_lea.smem %s0, 29
  %s59 = sld [smem:[%s58]]
  %s60 = sld [smem:[#allocation0]]
  $region149: #{attention_pixel_discriminator.1} parent=0
    _
  %s62 = ssub.s32 1, %s60
  %s63 = scalar_select 0, %s62, %s60
  %v64 = vstv %s37
  %65 = vst [vmem:[#allocation2] sm:$0x1] %v64
  %v66 = vstv %s57
  %67 = vst [vmem:[#allocation3] sm:$0x1] %v66
  loop: start=0, step=1, limit=4
  $region2: #{attention_pixel_discriminator.1} parent=0 // loop_pre_header
    _
  $region3: #{attention_pixel_discriminator.1} parent=0 // loop_header
    %s69 = sphi 0, %s73
    %p70 = scmp.ge.s32.totalorder %s69, 4
    %s79 = sphi 0, %s81
    %s82 = sphi 0, %s79
    %s83 = sphi 0, %s82
    %s99 = sphi 0, %s83
    %s103 = sphi 0, %s103
    %s105 = sphi 0, %s103
    %s106 = sphi 0, %s105
    %s120 = sphi 0, %s106
    %s124 = sphi 0, %s124
    %s126 = sphi 0, %s124
    %s127 = sphi 0, %s126
    %s141 = sphi 0, %s127
    %s145 = sphi 0, %s145
    %s147 = sphi 0, %s145
    %s148 = sphi 0, %s147
    %s162 = sphi 0, %s148
    %s166 = sphi 0, %s166
    %s168 = sphi 0, %s166
    %s169 = sphi 0, %s168
    %s183 = sphi 0, %s169
    %s187 = sphi 0, %s187
    %s189 = sphi 0, %s187
    %s190 = sphi 0, %s189
    %s204 = sphi 0, %s190
    %s208 = sphi 0, %s208
    %s210 = sphi 0, %s208
    %s211 = sphi 0, %s210
    %s225 = sphi 0, %s211
    %s229 = sphi 0, %s229
    %s231 = sphi 0, %s229
    %s232 = sphi 0, %s231
    %s246 = sphi 0, %s232
    %s250 = sphi 0, %s250
    %s252 = sphi 0, %s250
    %s253 = sphi 0, %s252
    %s267 = sphi 0, %s253
    %s271 = sphi 0, %s271
    %s273 = sphi 0, %s271
    %s274 = sphi 0, %s273
    %s288 = sphi 0, %s274
    %s292 = sphi 0, %s292
    %s294 = sphi 0, %s292
    %s295 = sphi 0, %s294
    %s309 = sphi 0, %s295
    %s313 = sphi 0, %s313
    %s315 = sphi 0, %s313
    %s316 = sphi 0, %s315
    %s330 = sphi 0, %s316
    %s334 = sphi 0, %s334
    %s336 = sphi 0, %s334
    %s337 = sphi 0, %s336
    %s351 = sphi 0, %s337
    %s355 = sphi 0, %s355
    %s357 = sphi 0, %s355
    %s358 = sphi 0, %s357
    %s372 = sphi 0, %s358
    %s376 = sphi 0, %s376
    %s378 = sphi 0, %s376
    %s379 = sphi 0, %s378
    %s393 = sphi 0, %s379
    %s397 = sphi 0, %s397
    %s399 = sphi 0, %s397
    %s400 = sphi 0, %s399
    %s414 = sphi 0, %s400
    %s418 = sphi 0, %s418
    %s420 = sphi 0, %s418
    %s421 = sphi 0, %s420
    %s435 = sphi 0, %s421
    %s439 = sphi 0, %s439
    %s441 = sphi 0, %s439
    %s442 = sphi 0, %s441
    %s456 = sphi 0, %s442
    %s460 = sphi 0, %s460
    %s462 = sphi 0, %s460
    %s463 = sphi 0, %s462
    %s477 = sphi 0, %s463
    %s481 = sphi 0, %s481
    %s483 = sphi 0, %s481
    %s484 = sphi 0, %s483
    %s498 = sphi 0, %s484
    %s502 = sphi 0, %s502
    %s504 = sphi 0, %s502
    %s505 = sphi 0, %s504
    %s519 = sphi 0, %s505
    %s523 = sphi 0, %s523
    %s525 = sphi 0, %s523
    %s526 = sphi 0, %s525
    %s540 = sphi 0, %s526
    %s544 = sphi 0, %s544
    %s546 = sphi 0, %s544
    %s547 = sphi 0, %s546
    %s561 = sphi 0, %s547
    %s565 = sphi 0, %s565
    %s567 = sphi 0, %s565
    %s568 = sphi 0, %s567
    %s582 = sphi 0, %s568
    %s586 = sphi 0, %s586
    %s588 = sphi 0, %s586
    %s589 = sphi 0, %s588
    %s603 = sphi 0, %s589
    %s607 = sphi 0, %s607
    %s609 = sphi 0, %s607
    %s610 = sphi 0, %s609
    %s624 = sphi 0, %s610
    %s628 = sphi 0, %s628
    %s630 = sphi 0, %s628
    %s631 = sphi 0, %s630
    %s645 = sphi 0, %s631
    %s649 = sphi 0, %s649
    %s651 = sphi 0, %s649
    %s652 = sphi 0, %s651
    %s666 = sphi 0, %s652
    %s670 = sphi 0, %s670
    %s672 = sphi 0, %s670
    %s673 = sphi 0, %s672
    %s687 = sphi 0, %s673
    %s693 = sphi 0, %s695
    %s696 = sphi 0, %s693
    %s697 = sphi 0, %s696
    %s713 = sphi 0, %s697
  $region4: #{attention_pixel_discriminator.1} parent=0 // loop_header_branch
    %72 = sbr.rel (%p70) target = $region8
  $region5: #{attention_pixel_discriminator.1} parent=0 // loop_body
    %s74 = ssub.s32 %s69, 1
    %s75 = ssub.s32 %s69, 2
    %s76 = sadd.s32 %s69, 1
    %s77 = ssub.s32 %s69, %s76
    %p78 = scmp.eq.s32.totalorder %s77, 0
    %s80 = sadd.s32 %s79, 1
    %s81 = scalar_select %p78, %s79, %s80
    %p84 = pneg %p78
    %p85 = scmp.eq.s32.totalorder %s69, 1
    %p86 = por %p84, %p85
    %p87 = scmp.ne.s32.totalorder %s79, %s82
    %p88 = scmp.eq.s32.totalorder %s69, 0
    %p89 = por %p87, %p88
    %p90 = scmp.ne.s32.totalorder %s79, %s82
    %p91 = scmp.eq.s32.totalorder %s74, 1
    %p92 = por %p90, %p91
    %p93 = scmp.ne.s32.totalorder %s82, %s83
    %p94 = scmp.eq.s32.totalorder %s74, 0
    %p95 = por %p93, %p94
    %p96 = scmp.ne.s32.totalorder %s82, %s83
    %p97 = scmp.eq.s32.totalorder %s75, 1
    %p98 = por %p96, %p97
    %p100 = scmp.ne.s32.totalorder %s83, %s99
    %p101 = scmp.eq.s32.totalorder %s75, 0
    %p102 = por %p100, %p101
    %s104 = sadd.s32 %s103, 1
    %p107 = scmp.eq.s32.totalorder %s69, 1
    %p108 = scmp.ne.s32.totalorder %s103, %s105
    %p109 = scmp.eq.s32.totalorder %s69, 0
    %p110 = por %p108, %p109
    %p111 = scmp.ne.s32.totalorder %s103, %s105
    %p112 = scmp.eq.s32.totalorder %s74, 1
    %p113 = por %p111, %p112
    %p114 = scmp.ne.s32.totalorder %s105, %s106
    %p115 = scmp.eq.s32.totalorder %s74, 0
    %p116 = por %p114, %p115
    %p117 = scmp.ne.s32.totalorder %s105, %s106
    %p118 = scmp.eq.s32.totalorder %s75, 1
    %p119 = por %p117, %p118
    %p121 = scmp.ne.s32.totalorder %s106, %s120
    %p122 = scmp.eq.s32.totalorder %s75, 0
    %p123 = por %p121, %p122
    %s125 = sadd.s32 %s124, 1
    %p128 = scmp.eq.s32.totalorder %s69, 1
    %p129 = scmp.ne.s32.totalorder %s124, %s126
    %p130 = scmp.eq.s32.totalorder %s69, 0
    %p131 = por %p129, %p130
    %p132 = scmp.ne.s32.totalorder %s124, %s126
    %p133 = scmp.eq.s32.totalorder %s74, 1
    %p134 = por %p132, %p133
    %p135 = scmp.ne.s32.totalorder %s126, %s127
    %p136 = scmp.eq.s32.totalorder %s74, 0
    %p137 = por %p135, %p136
    %p138 = scmp.ne.s32.totalorder %s126, %s127
    %p139 = scmp.eq.s32.totalorder %s75, 1
    %p140 = por %p138, %p139
    %p142 = scmp.ne.s32.totalorder %s127, %s141
    %p143 = scmp.eq.s32.totalorder %s75, 0
    %p144 = por %p142, %p143
    %s146 = sadd.s32 %s145, 1
    %p149 = scmp.eq.s32.totalorder %s69, 1
    %p150 = scmp.ne.s32.totalorder %s145, %s147
    %p151 = scmp.eq.s32.totalorder %s69, 0
    %p152 = por %p150, %p151
    %p153 = scmp.ne.s32.totalorder %s145, %s147
    %p154 = scmp.eq.s32.totalorder %s74, 1
    %p155 = por %p153, %p154
    %p156 = scmp.ne.s32.totalorder %s147, %s148
    %p157 = scmp.eq.s32.totalorder %s74, 0
    %p158 = por %p156, %p157
    %p159 = scmp.ne.s32.totalorder %s147, %s148
    %p160 = scmp.eq.s32.totalorder %s75, 1
    %p161 = por %p159, %p160
    %p163 = scmp.ne.s32.totalorder %s148, %s162
    %p164 = scmp.eq.s32.totalorder %s75, 0
    %p165 = por %p163, %p164
    %s167 = sadd.s32 %s166, 1
    %p170 = scmp.eq.s32.totalorder %s69, 1
    %p171 = scmp.ne.s32.totalorder %s166, %s168
    %p172 = scmp.eq.s32.totalorder %s69, 0
    %p173 = por %p171, %p172
    %p174 = scmp.ne.s32.totalorder %s166, %s168
    %p175 = scmp.eq.s32.totalorder %s74, 1
    %p176 = por %p174, %p175
    %p177 = scmp.ne.s32.totalorder %s168, %s169
    %p178 = scmp.eq.s32.totalorder %s74, 0
    %p179 = por %p177, %p178
    %p180 = scmp.ne.s32.totalorder %s168, %s169
    %p181 = scmp.eq.s32.totalorder %s75, 1
    %p182 = por %p180, %p181
    %p184 = scmp.ne.s32.totalorder %s169, %s183
    %p185 = scmp.eq.s32.totalorder %s75, 0
    %p186 = por %p184, %p185
    %s188 = sadd.s32 %s187, 1
    %p191 = scmp.eq.s32.totalorder %s69, 1
    %p192 = scmp.ne.s32.totalorder %s187, %s189
    %p193 = scmp.eq.s32.totalorder %s69, 0
    %p194 = por %p192, %p193
    %p195 = scmp.ne.s32.totalorder %s187, %s189
    %p196 = scmp.eq.s32.totalorder %s74, 1
    %p197 = por %p195, %p196
    %p198 = scmp.ne.s32.totalorder %s189, %s190
    %p199 = scmp.eq.s32.totalorder %s74, 0
    %p200 = por %p198, %p199
    %p201 = scmp.ne.s32.totalorder %s189, %s190
    %p202 = scmp.eq.s32.totalorder %s75, 1
    %p203 = por %p201, %p202
    %p205 = scmp.ne.s32.totalorder %s190, %s204
    %p206 = scmp.eq.s32.totalorder %s75, 0
    %p207 = por %p205, %p206
    %s209 = sadd.s32 %s208, 1
    %p212 = scmp.eq.s32.totalorder %s69, 1
    %p213 = scmp.ne.s32.totalorder %s208, %s210
    %p214 = scmp.eq.s32.totalorder %s69, 0
    %p215 = por %p213, %p214
    %p216 = scmp.ne.s32.totalorder %s208, %s210
    %p217 = scmp.eq.s32.totalorder %s74, 1
    %p218 = por %p216, %p217
    %p219 = scmp.ne.s32.totalorder %s210, %s211
    %p220 = scmp.eq.s32.totalorder %s74, 0
    %p221 = por %p219, %p220
    %p222 = scmp.ne.s32.totalorder %s210, %s211
    %p223 = scmp.eq.s32.totalorder %s75, 1
    %p224 = por %p222, %p223
    %p226 = scmp.ne.s32.totalorder %s211, %s225
    %p227 = scmp.eq.s32.totalorder %s75, 0
    %p228 = por %p226, %p227
    %s230 = sadd.s32 %s229, 1
    %p233 = scmp.eq.s32.totalorder %s69, 1
    %p234 = scmp.ne.s32.totalorder %s229, %s231
    %p235 = scmp.eq.s32.totalorder %s69, 0
    %p236 = por %p234, %p235
    %p237 = scmp.ne.s32.totalorder %s229, %s231
    %p238 = scmp.eq.s32.totalorder %s74, 1
    %p239 = por %p237, %p238
    %p240 = scmp.ne.s32.totalorder %s231, %s232
    %p241 = scmp.eq.s32.totalorder %s74, 0
    %p242 = por %p240, %p241
    %p243 = scmp.ne.s32.totalorder %s231, %s232
    %p244 = scmp.eq.s32.totalorder %s75, 1
    %p245 = por %p243, %p244
    %p247 = scmp.ne.s32.totalorder %s232, %s246
    %p248 = scmp.eq.s32.totalorder %s75, 0
    %p249 = por %p247, %p248
    %s251 = sadd.s32 %s250, 1
    %p254 = scmp.eq.s32.totalorder %s69, 1
    %p255 = scmp.ne.s32.totalorder %s250, %s252
    %p256 = scmp.eq.s32.totalorder %s69, 0
    %p257 = por %p255, %p256
    %p258 = scmp.ne.s32.totalorder %s250, %s252
    %p259 = scmp.eq.s32.totalorder %s74, 1
    %p260 = por %p258, %p259
    %p261 = scmp.ne.s32.totalorder %s252, %s253
    %p262 = scmp.eq.s32.totalorder %s74, 0
    %p263 = por %p261, %p262
    %p264 = scmp.ne.s32.totalorder %s252, %s253
    %p265 = scmp.eq.s32.totalorder %s75, 1
    %p266 = por %p264, %p265
    %p268 = scmp.ne.s32.totalorder %s253, %s267
    %p269 = scmp.eq.s32.totalorder %s75, 0
    %p270 = por %p268, %p269
    %s272 = sadd.s32 %s271, 1
    %p275 = scmp.eq.s32.totalorder %s69, 1
    %p276 = scmp.ne.s32.totalorder %s271, %s273
    %p277 = scmp.eq.s32.totalorder %s69, 0
    %p278 = por %p276, %p277
    %p279 = scmp.ne.s32.totalorder %s271, %s273
    %p280 = scmp.eq.s32.totalorder %s74, 1
    %p281 = por %p279, %p280
    %p282 = scmp.ne.s32.totalorder %s273, %s274
    %p283 = scmp.eq.s32.totalorder %s74, 0
    %p284 = por %p282, %p283
    %p285 = scmp.ne.s32.totalorder %s273, %s274
    %p286 = scmp.eq.s32.totalorder %s75, 1
    %p287 = por %p285, %p286
    %p289 = scmp.ne.s32.totalorder %s274, %s288
    %p290 = scmp.eq.s32.totalorder %s75, 0
    %p291 = por %p289, %p290
    %s293 = sadd.s32 %s292, 1
    %p296 = scmp.eq.s32.totalorder %s69, 1
    %p297 = scmp.ne.s32.totalorder %s292, %s294
    %p298 = scmp.eq.s32.totalorder %s69, 0
    %p299 = por %p297, %p298
    %p300 = scmp.ne.s32.totalorder %s292, %s294
    %p301 = scmp.eq.s32.totalorder %s74, 1
    %p302 = por %p300, %p301
    %p303 = scmp.ne.s32.totalorder %s294, %s295
    %p304 = scmp.eq.s32.totalorder %s74, 0
    %p305 = por %p303, %p304
    %p306 = scmp.ne.s32.totalorder %s294, %s295
    %p307 = scmp.eq.s32.totalorder %s75, 1
    %p308 = por %p306, %p307
    %p310 = scmp.ne.s32.totalorder %s295, %s309
    %p311 = scmp.eq.s32.totalorder %s75, 0
    %p312 = por %p310, %p311
    %s314 = sadd.s32 %s313, 1
    %p317 = scmp.eq.s32.totalorder %s69, 1
    %p318 = scmp.ne.s32.totalorder %s313, %s315
    %p319 = scmp.eq.s32.totalorder %s69, 0
    %p320 = por %p318, %p319
    %p321 = scmp.ne.s32.totalorder %s313, %s315
    %p322 = scmp.eq.s32.totalorder %s74, 1
    %p323 = por %p321, %p322
    %p324 = scmp.ne.s32.totalorder %s315, %s316
    %p325 = scmp.eq.s32.totalorder %s74, 0
    %p326 = por %p324, %p325
    %p327 = scmp.ne.s32.totalorder %s315, %s316
    %p328 = scmp.eq.s32.totalorder %s75, 1
    %p329 = por %p327, %p328
    %p331 = scmp.ne.s32.totalorder %s316, %s330
    %p332 = scmp.eq.s32.totalorder %s75, 0
    %p333 = por %p331, %p332
    %s335 = sadd.s32 %s334, 1
    %p338 = scmp.eq.s32.totalorder %s69, 1
    %p339 = scmp.ne.s32.totalorder %s334, %s336
    %p340 = scmp.eq.s32.totalorder %s69, 0
    %p341 = por %p339, %p340
    %p342 = scmp.ne.s32.totalorder %s334, %s336
    %p343 = scmp.eq.s32.totalorder %s74, 1
    %p344 = por %p342, %p343
    %p345 = scmp.ne.s32.totalorder %s336, %s337
    %p346 = scmp.eq.s32.totalorder %s74, 0
    %p347 = por %p345, %p346
    %p348 = scmp.ne.s32.totalorder %s336, %s337
    %p349 = scmp.eq.s32.totalorder %s75, 1
    %p350 = por %p348, %p349
    %p352 = scmp.ne.s32.totalorder %s337, %s351
    %p353 = scmp.eq.s32.totalorder %s75, 0
    %p354 = por %p352, %p353
    %s356 = sadd.s32 %s355, 1
    %p359 = scmp.eq.s32.totalorder %s69, 1
    %p360 = scmp.ne.s32.totalorder %s355, %s357
    %p361 = scmp.eq.s32.totalorder %s69, 0
    %p362 = por %p360, %p361
    %p363 = scmp.ne.s32.totalorder %s355, %s357
    %p364 = scmp.eq.s32.totalorder %s74, 1
    %p365 = por %p363, %p364
    %p366 = scmp.ne.s32.totalorder %s357, %s358
    %p367 = scmp.eq.s32.totalorder %s74, 0
    %p368 = por %p366, %p367
    %p369 = scmp.ne.s32.totalorder %s357, %s358
    %p370 = scmp.eq.s32.totalorder %s75, 1
    %p371 = por %p369, %p370
    %p373 = scmp.ne.s32.totalorder %s358, %s372
    %p374 = scmp.eq.s32.totalorder %s75, 0
    %p375 = por %p373, %p374
    %s377 = sadd.s32 %s376, 1
    %p380 = scmp.eq.s32.totalorder %s69, 1
    %p381 = scmp.ne.s32.totalorder %s376, %s378
    %p382 = scmp.eq.s32.totalorder %s69, 0
    %p383 = por %p381, %p382
    %p384 = scmp.ne.s32.totalorder %s376, %s378
    %p385 = scmp.eq.s32.totalorder %s74, 1
    %p386 = por %p384, %p385
    %p387 = scmp.ne.s32.totalorder %s378, %s379
    %p388 = scmp.eq.s32.totalorder %s74, 0
    %p389 = por %p387, %p388
    %p390 = scmp.ne.s32.totalorder %s378, %s379
    %p391 = scmp.eq.s32.totalorder %s75, 1
    %p392 = por %p390, %p391
    %p394 = scmp.ne.s32.totalorder %s379, %s393
    %p395 = scmp.eq.s32.totalorder %s75, 0
    %p396 = por %p394, %p395
    %s398 = sadd.s32 %s397, 1
    %p401 = scmp.eq.s32.totalorder %s69, 1
    %p402 = scmp.ne.s32.totalorder %s397, %s399
    %p403 = scmp.eq.s32.totalorder %s69, 0
    %p404 = por %p402, %p403
    %p405 = scmp.ne.s32.totalorder %s397, %s399
    %p406 = scmp.eq.s32.totalorder %s74, 1
    %p407 = por %p405, %p406
    %p408 = scmp.ne.s32.totalorder %s399, %s400
    %p409 = scmp.eq.s32.totalorder %s74, 0
    %p410 = por %p408, %p409
    %p411 = scmp.ne.s32.totalorder %s399, %s400
    %p412 = scmp.eq.s32.totalorder %s75, 1
    %p413 = por %p411, %p412
    %p415 = scmp.ne.s32.totalorder %s400, %s414
    %p416 = scmp.eq.s32.totalorder %s75, 0
    %p417 = por %p415, %p416
    %s419 = sadd.s32 %s418, 1
    %p422 = scmp.eq.s32.totalorder %s69, 1
    %p423 = scmp.ne.s32.totalorder %s418, %s420
    %p424 = scmp.eq.s32.totalorder %s69, 0
    %p425 = por %p423, %p424
    %p426 = scmp.ne.s32.totalorder %s418, %s420
    %p427 = scmp.eq.s32.totalorder %s74, 1
    %p428 = por %p426, %p427
    %p429 = scmp.ne.s32.totalorder %s420, %s421
    %p430 = scmp.eq.s32.totalorder %s74, 0
    %p431 = por %p429, %p430
    %p432 = scmp.ne.s32.totalorder %s420, %s421
    %p433 = scmp.eq.s32.totalorder %s75, 1
    %p434 = por %p432, %p433
    %p436 = scmp.ne.s32.totalorder %s421, %s435
    %p437 = scmp.eq.s32.totalorder %s75, 0
    %p438 = por %p436, %p437
    %s440 = sadd.s32 %s439, 1
    %p443 = scmp.eq.s32.totalorder %s69, 1
    %p444 = scmp.ne.s32.totalorder %s439, %s441
    %p445 = scmp.eq.s32.totalorder %s69, 0
    %p446 = por %p444, %p445
    %p447 = scmp.ne.s32.totalorder %s439, %s441
    %p448 = scmp.eq.s32.totalorder %s74, 1
    %p449 = por %p447, %p448
    %p450 = scmp.ne.s32.totalorder %s441, %s442
    %p451 = scmp.eq.s32.totalorder %s74, 0
    %p452 = por %p450, %p451
    %p453 = scmp.ne.s32.totalorder %s441, %s442
    %p454 = scmp.eq.s32.totalorder %s75, 1
    %p455 = por %p453, %p454
    %p457 = scmp.ne.s32.totalorder %s442, %s456
    %p458 = scmp.eq.s32.totalorder %s75, 0
    %p459 = por %p457, %p458
    %s461 = sadd.s32 %s460, 1
    %p464 = scmp.eq.s32.totalorder %s69, 1
    %p465 = scmp.ne.s32.totalorder %s460, %s462
    %p466 = scmp.eq.s32.totalorder %s69, 0
    %p467 = por %p465, %p466
    %p468 = scmp.ne.s32.totalorder %s460, %s462
    %p469 = scmp.eq.s32.totalorder %s74, 1
    %p470 = por %p468, %p469
    %p471 = scmp.ne.s32.totalorder %s462, %s463
    %p472 = scmp.eq.s32.totalorder %s74, 0
    %p473 = por %p471, %p472
    %p474 = scmp.ne.s32.totalorder %s462, %s463
    %p475 = scmp.eq.s32.totalorder %s75, 1
    %p476 = por %p474, %p475
    %p478 = scmp.ne.s32.totalorder %s463, %s477
    %p479 = scmp.eq.s32.totalorder %s75, 0
    %p480 = por %p478, %p479
    %s482 = sadd.s32 %s481, 1
    %p485 = scmp.eq.s32.totalorder %s69, 1
    %p486 = scmp.ne.s32.totalorder %s481, %s483
    %p487 = scmp.eq.s32.totalorder %s69, 0
    %p488 = por %p486, %p487
    %p489 = scmp.ne.s32.totalorder %s481, %s483
    %p490 = scmp.eq.s32.totalorder %s74, 1
    %p491 = por %p489, %p490
    %p492 = scmp.ne.s32.totalorder %s483, %s484
    %p493 = scmp.eq.s32.totalorder %s74, 0
    %p494 = por %p492, %p493
    %p495 = scmp.ne.s32.totalorder %s483, %s484
    %p496 = scmp.eq.s32.totalorder %s75, 1
    %p497 = por %p495, %p496
    %p499 = scmp.ne.s32.totalorder %s484, %s498
    %p500 = scmp.eq.s32.totalorder %s75, 0
    %p501 = por %p499, %p500
    %s503 = sadd.s32 %s502, 1
    %p506 = scmp.eq.s32.totalorder %s69, 1
    %p507 = scmp.ne.s32.totalorder %s502, %s504
    %p508 = scmp.eq.s32.totalorder %s69, 0
    %p509 = por %p507, %p508
    %p510 = scmp.ne.s32.totalorder %s502, %s504
    %p511 = scmp.eq.s32.totalorder %s74, 1
    %p512 = por %p510, %p511
    %p513 = scmp.ne.s32.totalorder %s504, %s505
    %p514 = scmp.eq.s32.totalorder %s74, 0
    %p515 = por %p513, %p514
    %p516 = scmp.ne.s32.totalorder %s504, %s505
    %p517 = scmp.eq.s32.totalorder %s75, 1
    %p518 = por %p516, %p517
    %p520 = scmp.ne.s32.totalorder %s505, %s519
    %p521 = scmp.eq.s32.totalorder %s75, 0
    %p522 = por %p520, %p521
    %s524 = sadd.s32 %s523, 1
    %p527 = scmp.eq.s32.totalorder %s69, 1
    %p528 = scmp.ne.s32.totalorder %s523, %s525
    %p529 = scmp.eq.s32.totalorder %s69, 0
    %p530 = por %p528, %p529
    %p531 = scmp.ne.s32.totalorder %s523, %s525
    %p532 = scmp.eq.s32.totalorder %s74, 1
    %p533 = por %p531, %p532
    %p534 = scmp.ne.s32.totalorder %s525, %s526
    %p535 = scmp.eq.s32.totalorder %s74, 0
    %p536 = por %p534, %p535
    %p537 = scmp.ne.s32.totalorder %s525, %s526
    %p538 = scmp.eq.s32.totalorder %s75, 1
    %p539 = por %p537, %p538
    %p541 = scmp.ne.s32.totalorder %s526, %s540
    %p542 = scmp.eq.s32.totalorder %s75, 0
    %p543 = por %p541, %p542
    %s545 = sadd.s32 %s544, 1
    %p548 = scmp.eq.s32.totalorder %s69, 1
    %p549 = scmp.ne.s32.totalorder %s544, %s546
    %p550 = scmp.eq.s32.totalorder %s69, 0
    %p551 = por %p549, %p550
    %p552 = scmp.ne.s32.totalorder %s544, %s546
    %p553 = scmp.eq.s32.totalorder %s74, 1
    %p554 = por %p552, %p553
    %p555 = scmp.ne.s32.totalorder %s546, %s547
    %p556 = scmp.eq.s32.totalorder %s74, 0
    %p557 = por %p555, %p556
    %p558 = scmp.ne.s32.totalorder %s546, %s547
    %p559 = scmp.eq.s32.totalorder %s75, 1
    %p560 = por %p558, %p559
    %p562 = scmp.ne.s32.totalorder %s547, %s561
    %p563 = scmp.eq.s32.totalorder %s75, 0
    %p564 = por %p562, %p563
    %s566 = sadd.s32 %s565, 1
    %p569 = scmp.eq.s32.totalorder %s69, 1
    %p570 = scmp.ne.s32.totalorder %s565, %s567
    %p571 = scmp.eq.s32.totalorder %s69, 0
    %p572 = por %p570, %p571
    %p573 = scmp.ne.s32.totalorder %s565, %s567
    %p574 = scmp.eq.s32.totalorder %s74, 1
    %p575 = por %p573, %p574
    %p576 = scmp.ne.s32.totalorder %s567, %s568
    %p577 = scmp.eq.s32.totalorder %s74, 0
    %p578 = por %p576, %p577
    %p579 = scmp.ne.s32.totalorder %s567, %s568
    %p580 = scmp.eq.s32.totalorder %s75, 1
    %p581 = por %p579, %p580
    %p583 = scmp.ne.s32.totalorder %s568, %s582
    %p584 = scmp.eq.s32.totalorder %s75, 0
    %p585 = por %p583, %p584
    %s587 = sadd.s32 %s586, 1
    %p590 = scmp.eq.s32.totalorder %s69, 1
    %p591 = scmp.ne.s32.totalorder %s586, %s588
    %p592 = scmp.eq.s32.totalorder %s69, 0
    %p593 = por %p591, %p592
    %p594 = scmp.ne.s32.totalorder %s586, %s588
    %p595 = scmp.eq.s32.totalorder %s74, 1
    %p596 = por %p594, %p595
    %p597 = scmp.ne.s32.totalorder %s588, %s589
    %p598 = scmp.eq.s32.totalorder %s74, 0
    %p599 = por %p597, %p598
    %p600 = scmp.ne.s32.totalorder %s588, %s589
    %p601 = scmp.eq.s32.totalorder %s75, 1
    %p602 = por %p600, %p601
    %p604 = scmp.ne.s32.totalorder %s589, %s603
    %p605 = scmp.eq.s32.totalorder %s75, 0
    %p606 = por %p604, %p605
    %s608 = sadd.s32 %s607, 1
    %p611 = scmp.eq.s32.totalorder %s69, 1
    %p612 = scmp.ne.s32.totalorder %s607, %s609
    %p613 = scmp.eq.s32.totalorder %s69, 0
    %p614 = por %p612, %p613
    %p615 = scmp.ne.s32.totalorder %s607, %s609
    %p616 = scmp.eq.s32.totalorder %s74, 1
    %p617 = por %p615, %p616
    %p618 = scmp.ne.s32.totalorder %s609, %s610
    %p619 = scmp.eq.s32.totalorder %s74, 0
    %p620 = por %p618, %p619
    %p621 = scmp.ne.s32.totalorder %s609, %s610
    %p622 = scmp.eq.s32.totalorder %s75, 1
    %p623 = por %p621, %p622
    %p625 = scmp.ne.s32.totalorder %s610, %s624
    %p626 = scmp.eq.s32.totalorder %s75, 0
    %p627 = por %p625, %p626
    %s629 = sadd.s32 %s628, 1
    %p632 = scmp.eq.s32.totalorder %s69, 1
    %p633 = scmp.ne.s32.totalorder %s628, %s630
    %p634 = scmp.eq.s32.totalorder %s69, 0
    %p635 = por %p633, %p634
    %p636 = scmp.ne.s32.totalorder %s628, %s630
    %p637 = scmp.eq.s32.totalorder %s74, 1
    %p638 = por %p636, %p637
    %p639 = scmp.ne.s32.totalorder %s630, %s631
    %p640 = scmp.eq.s32.totalorder %s74, 0
    %p641 = por %p639, %p640
    %p642 = scmp.ne.s32.totalorder %s630, %s631
    %p643 = scmp.eq.s32.totalorder %s75, 1
    %p644 = por %p642, %p643
    %p646 = scmp.ne.s32.totalorder %s631, %s645
    %p647 = scmp.eq.s32.totalorder %s75, 0
    %p648 = por %p646, %p647
    %s650 = sadd.s32 %s649, 1
    %p653 = scmp.eq.s32.totalorder %s69, 1
    %p654 = scmp.ne.s32.totalorder %s649, %s651
    %p655 = scmp.eq.s32.totalorder %s69, 0
    %p656 = por %p654, %p655
    %p657 = scmp.ne.s32.totalorder %s649, %s651
    %p658 = scmp.eq.s32.totalorder %s74, 1
    %p659 = por %p657, %p658
    %p660 = scmp.ne.s32.totalorder %s651, %s652
    %p661 = scmp.eq.s32.totalorder %s74, 0
    %p662 = por %p660, %p661
    %p663 = scmp.ne.s32.totalorder %s651, %s652
    %p664 = scmp.eq.s32.totalorder %s75, 1
    %p665 = por %p663, %p664
    %p667 = scmp.ne.s32.totalorder %s652, %s666
    %p668 = scmp.eq.s32.totalorder %s75, 0
    %p669 = por %p667, %p668
    %s671 = sadd.s32 %s670, 1
    %p674 = scmp.eq.s32.totalorder %s69, 1
    %p675 = scmp.ne.s32.totalorder %s670, %s672
    %p676 = scmp.eq.s32.totalorder %s69, 0
    %p677 = por %p675, %p676
    %p678 = scmp.ne.s32.totalorder %s670, %s672
    %p679 = scmp.eq.s32.totalorder %s74, 1
    %p680 = por %p678, %p679
    %p681 = scmp.ne.s32.totalorder %s672, %s673
    %p682 = scmp.eq.s32.totalorder %s74, 0
    %p683 = por %p681, %p682
    %p684 = scmp.ne.s32.totalorder %s672, %s673
    %p685 = scmp.eq.s32.totalorder %s75, 1
    %p686 = por %p684, %p685
    %p688 = scmp.ne.s32.totalorder %s673, %s687
    %p689 = scmp.eq.s32.totalorder %s75, 0
    %p690 = por %p688, %p689
    %s691 = ssub.s32 %s69, %s76
    %p692 = scmp.eq.s32.totalorder %s691, 0
    %s694 = sadd.s32 %s693, 1
    %s695 = scalar_select %p692, %s693, %s694
    %p698 = pneg %p692
    %p699 = scmp.eq.s32.totalorder %s69, 1
    %p700 = por %p698, %p699
    %p701 = scmp.ne.s32.totalorder %s693, %s696
    %p702 = scmp.eq.s32.totalorder %s69, 0
    %p703 = por %p701, %p702
    %p704 = scmp.ne.s32.totalorder %s693, %s696
    %p705 = scmp.eq.s32.totalorder %s74, 1
    %p706 = por %p704, %p705
    %p707 = scmp.ne.s32.totalorder %s696, %s697
    %p708 = scmp.eq.s32.totalorder %s74, 0
    %p709 = por %p707, %p708
    %p710 = scmp.ne.s32.totalorder %s696, %s697
    %p711 = scmp.eq.s32.totalorder %s75, 1
    %p712 = por %p710, %p711
    %p714 = scmp.ne.s32.totalorder %s697, %s713
    %p715 = scmp.eq.s32.totalorder %s75, 0
    %p716 = por %p714, %p715
    %p717 = scmp.le.s32.totalorder 1, %s69
    %p718 = scmp.lt.s32.totalorder %s69, 3
    %p719 = pnand %p717, %p718
    %p720 = pneg %p719
    // Predicated region
    $region9: #{attention_pixel_discriminator.1} parent=5 // pred_check
      _
    $region10: #{attention_pixel_discriminator.1} parent=5 // pred_check_branch
      %722 = sbr.rel (%p719) target = $region12
    $region11: #{attention_pixel_discriminator.1} parent=5 // pred_region
      %s723 = ssub.s32 %s69, 1
      // Predicated region
      $region13: #{attention_pixel_discriminator.1} parent=11 // pred_check
        %p724 = pneg %p116
      $region14: #{attention_pixel_discriminator.1} parent=11 // pred_check_branch
        %726 = sbr.rel (%p724) target = $region16
      $region15: #{attention_pixel_discriminator.1} parent=11 // pred_region
        _
      $region16: #{attention_pixel_discriminator.1} parent=11 // pred_fallthru
        _
      // Predicated region
      $region17: #{attention_pixel_discriminator.1} parent=11 // pred_check
        %p727 = pneg %p137
      $region18: #{attention_pixel_discriminator.1} parent=11 // pred_check_branch
        %729 = sbr.rel (%p727) target = $region20
      $region19: #{attention_pixel_discriminator.1} parent=11 // pred_region
        _
      $region20: #{attention_pixel_discriminator.1} parent=11 // pred_fallthru
        _
      // Predicated region
      $region21: #{attention_pixel_discriminator.1} parent=11 // pred_check
        %p730 = pneg %p158
      $region22: #{attention_pixel_discriminator.1} parent=11 // pred_check_branch
        %732 = sbr.rel (%p730) target = $region24
      $region23: #{attention_pixel_discriminator.1} parent=11 // pred_region
        _
      $region24: #{attention_pixel_discriminator.1} parent=11 // pred_fallthru
        _
      // Predicated region
      $region25: #{attention_pixel_discriminator.1} parent=11 // pred_check
        %p733 = pneg %p179
      $region26: #{attention_pixel_discriminator.1} parent=11 // pred_check_branch
        %735 = sbr.rel (%p733) target = $region28
      $region27: #{attention_pixel_discriminator.1} parent=11 // pred_region
        _
      $region28: #{attention_pixel_discriminator.1} parent=11 // pred_fallthru
        _
      // Predicated region
      $region29: #{attention_pixel_discriminator.1} parent=11 // pred_check
        %p736 = pneg %p200
      $region30: #{attention_pixel_discriminator.1} parent=11 // pred_check_branch
        %738 = sbr.rel (%p736) target = $region32
      $region31: #{attention_pixel_discriminator.1} parent=11 // pred_region
        _
      $region32: #{attention_pixel_discriminator.1} parent=11 // pred_fallthru
        _
      // Predicated region
      $region33: #{attention_pixel_discriminator.1} parent=11 // pred_check
        %p739 = pneg %p221
      $region34: #{attention_pixel_discriminator.1} parent=11 // pred_check_branch
        %741 = sbr.rel (%p739) target = $region36
      $region35: #{attention_pixel_discriminator.1} parent=11 // pred_region
        _
      $region36: #{attention_pixel_discriminator.1} parent=11 // pred_fallthru
        _
      // Predicated region
      $region37: #{attention_pixel_discriminator.1} parent=11 // pred_check
        %p742 = pneg %p242
      $region38: #{attention_pixel_discriminator.1} parent=11 // pred_check_branch
        %744 = sbr.rel (%p742) target = $region40
      $region39: #{attention_pixel_discriminator.1} parent=11 // pred_region
        _
      $region40: #{attention_pixel_discriminator.1} parent=11 // pred_fallthru
        _
      // Predicated region
      $region41: #{attention_pixel_discriminator.1} parent=11 // pred_check
        %p745 = pneg %p263
      $region42: #{attention_pixel_discriminator.1} parent=11 // pred_check_branch
        %747 = sbr.rel (%p745) target = $region44
      $region43: #{attention_pixel_discriminator.1} parent=11 // pred_region
        _
      $region44: #{attention_pixel_discriminator.1} parent=11 // pred_fallthru
        _
      // Predicated region
      $region45: #{attention_pixel_discriminator.1} parent=11 // pred_check
        %p748 = pneg %p284
      $region46: #{attention_pixel_discriminator.1} parent=11 // pred_check_branch
        %750 = sbr.rel (%p748) target = $region48
      $region47: #{attention_pixel_discriminator.1} parent=11 // pred_region
        _
      $region48: #{attention_pixel_discriminator.1} parent=11 // pred_fallthru
        _
      // Predicated region
      $region49: #{attention_pixel_discriminator.1} parent=11 // pred_check
        %p751 = pneg %p305
      $region50: #{attention_pixel_discriminator.1} parent=11 // pred_check_branch
        %753 = sbr.rel (%p751) target = $region52
      $region51: #{attention_pixel_discriminator.1} parent=11 // pred_region
        _
      $region52: #{attention_pixel_discriminator.1} parent=11 // pred_fallthru
        _
      // Predicated region
      $region53: #{attention_pixel_discriminator.1} parent=11 // pred_check
        %p754 = pneg %p326
      $region54: #{attention_pixel_discriminator.1} parent=11 // pred_check_branch
        %756 = sbr.rel (%p754) target = $region56
      $region55: #{attention_pixel_discriminator.1} parent=11 // pred_region
        _
      $region56: #{attention_pixel_discriminator.1} parent=11 // pred_fallthru
        _
      // Predicated region
      $region57: #{attention_pixel_discriminator.1} parent=11 // pred_check
        %p757 = pneg %p347
      $region58: #{attention_pixel_discriminator.1} parent=11 // pred_check_branch
        %759 = sbr.rel (%p757) target = $region60
      $region59: #{attention_pixel_discriminator.1} parent=11 // pred_region
        _
      $region60: #{attention_pixel_discriminator.1} parent=11 // pred_fallthru
        _
      // Predicated region
      $region61: #{attention_pixel_discriminator.1} parent=11 // pred_check
        %p760 = pneg %p368
      $region62: #{attention_pixel_discriminator.1} parent=11 // pred_check_branch
        %762 = sbr.rel (%p760) target = $region64
      $region63: #{attention_pixel_discriminator.1} parent=11 // pred_region
        _
      $region64: #{attention_pixel_discriminator.1} parent=11 // pred_fallthru
        _
      // Predicated region
      $region65: #{attention_pixel_discriminator.1} parent=11 // pred_check
        %p763 = pneg %p389
      $region66: #{attention_pixel_discriminator.1} parent=11 // pred_check_branch
        %765 = sbr.rel (%p763) target = $region68
      $region67: #{attention_pixel_discriminator.1} parent=11 // pred_region
        _
      $region68: #{attention_pixel_discriminator.1} parent=11 // pred_fallthru
        _
      // Predicated region
      $region69: #{attention_pixel_discriminator.1} parent=11 // pred_check
        %p766 = pneg %p410
      $region70: #{attention_pixel_discriminator.1} parent=11 // pred_check_branch
        %768 = sbr.rel (%p766) target = $region72
      $region71: #{attention_pixel_discriminator.1} parent=11 // pred_region
        _
      $region72: #{attention_pixel_discriminator.1} parent=11 // pred_fallthru
        _
      // Predicated region
      $region73: #{attention_pixel_discriminator.1} parent=11 // pred_check
        %p769 = pneg %p431
      $region74: #{attention_pixel_discriminator.1} parent=11 // pred_check_branch
        %771 = sbr.rel (%p769) target = $region76
      $region75: #{attention_pixel_discriminator.1} parent=11 // pred_region
        _
      $region76: #{attention_pixel_discriminator.1} parent=11 // pred_fallthru
        _
      // Predicated region
      $region77: #{attention_pixel_discriminator.1} parent=11 // pred_check
        %p772 = pneg %p452
      $region78: #{attention_pixel_discriminator.1} parent=11 // pred_check_branch
        %774 = sbr.rel (%p772) target = $region80
      $region79: #{attention_pixel_discriminator.1} parent=11 // pred_region
        _
      $region80: #{attention_pixel_discriminator.1} parent=11 // pred_fallthru
        _
      // Predicated region
      $region81: #{attention_pixel_discriminator.1} parent=11 // pred_check
        %p775 = pneg %p473
      $region82: #{attention_pixel_discriminator.1} parent=11 // pred_check_branch
        %777 = sbr.rel (%p775) target = $region84
      $region83: #{attention_pixel_discriminator.1} parent=11 // pred_region
        _
      $region84: #{attention_pixel_discriminator.1} parent=11 // pred_fallthru
        _
      // Predicated region
      $region85: #{attention_pixel_discriminator.1} parent=11 // pred_check
        %p778 = pneg %p494
      $region86: #{attention_pixel_discriminator.1} parent=11 // pred_check_branch
        %780 = sbr.rel (%p778) target = $region88
      $region87: #{attention_pixel_discriminator.1} parent=11 // pred_region
        _
      $region88: #{attention_pixel_discriminator.1} parent=11 // pred_fallthru
        _
      // Predicated region
      $region89: #{attention_pixel_discriminator.1} parent=11 // pred_check
        %p781 = pneg %p515
      $region90: #{attention_pixel_discriminator.1} parent=11 // pred_check_branch
        %783 = sbr.rel (%p781) target = $region92
      $region91: #{attention_pixel_discriminator.1} parent=11 // pred_region
        _
      $region92: #{attention_pixel_discriminator.1} parent=11 // pred_fallthru
        _
      // Predicated region
      $region93: #{attention_pixel_discriminator.1} parent=11 // pred_check
        %p784 = pneg %p536
      $region94: #{attention_pixel_discriminator.1} parent=11 // pred_check_branch
        %786 = sbr.rel (%p784) target = $region96
      $region95: #{attention_pixel_discriminator.1} parent=11 // pred_region
        _
      $region96: #{attention_pixel_discriminator.1} parent=11 // pred_fallthru
        _
      // Predicated region
      $region97: #{attention_pixel_discriminator.1} parent=11 // pred_check
        %p787 = pneg %p557
      $region98: #{attention_pixel_discriminator.1} parent=11 // pred_check_branch
        %789 = sbr.rel (%p787) target = $region100
      $region99: #{attention_pixel_discriminator.1} parent=11 // pred_region
        _
      $region100: #{attention_pixel_discriminator.1} parent=11 // pred_fallthru
        _
      // Predicated region
      $region101: #{attention_pixel_discriminator.1} parent=11 // pred_check
        %p790 = pneg %p578
      $region102: #{attention_pixel_discriminator.1} parent=11 // pred_check_branch
        %792 = sbr.rel (%p790) target = $region104
      $region103: #{attention_pixel_discriminator.1} parent=11 // pred_region
        _
      $region104: #{attention_pixel_discriminator.1} parent=11 // pred_fallthru
        _
      // Predicated region
      $region105: #{attention_pixel_discriminator.1} parent=11 // pred_check
        %p793 = pneg %p599
      $region106: #{attention_pixel_discriminator.1} parent=11 // pred_check_branch
        %795 = sbr.rel (%p793) target = $region108
      $region107: #{attention_pixel_discriminator.1} parent=11 // pred_region
        _
      $region108: #{attention_pixel_discriminator.1} parent=11 // pred_fallthru
        _
      // Predicated region
      $region109: #{attention_pixel_discriminator.1} parent=11 // pred_check
        %p796 = pneg %p620
      $region110: #{attention_pixel_discriminator.1} parent=11 // pred_check_branch
        %798 = sbr.rel (%p796) target = $region112
      $region111: #{attention_pixel_discriminator.1} parent=11 // pred_region
        _
      $region112: #{attention_pixel_discriminator.1} parent=11 // pred_fallthru
        _
      // Predicated region
      $region113: #{attention_pixel_discriminator.1} parent=11 // pred_check
        %p799 = pneg %p641
      $region114: #{attention_pixel_discriminator.1} parent=11 // pred_check_branch
        %801 = sbr.rel (%p799) target = $region116
      $region115: #{attention_pixel_discriminator.1} parent=11 // pred_region
        _
      $region116: #{attention_pixel_discriminator.1} parent=11 // pred_fallthru
        _
      // Predicated region
      $region117: #{attention_pixel_discriminator.1} parent=11 // pred_check
        %p802 = pneg %p662
      $region118: #{attention_pixel_discriminator.1} parent=11 // pred_check_branch
        %804 = sbr.rel (%p802) target = $region120
      $region119: #{attention_pixel_discriminator.1} parent=11 // pred_region
        _
      $region120: #{attention_pixel_discriminator.1} parent=11 // pred_fallthru
        _
      // Predicated region
      $region121: #{attention_pixel_discriminator.1} parent=11 // pred_check
        %p805 = pneg %p683
      $region122: #{attention_pixel_discriminator.1} parent=11 // pred_check_branch
        %807 = sbr.rel (%p805) target = $region124
      $region123: #{attention_pixel_discriminator.1} parent=11 // pred_region
        _
      $region124: #{attention_pixel_discriminator.1} parent=11 // pred_fallthru
        _
    $region12: #{attention_pixel_discriminator.1} parent=5 // pred_fallthru
      _
    %p808 = scmp.lt.s32.totalorder %s69, 2
    // Predicated region
    $region125: #{attention_pixel_discriminator.1} parent=5 // pred_check
      %p809 = pneg %p808
    $region126: #{attention_pixel_discriminator.1} parent=5 // pred_check_branch
      %811 = sbr.rel (%p809) target = $region128
    $region127: #{attention_pixel_discriminator.1} parent=5 // pred_region
      // Predicated region
      $region129: #{attention_pixel_discriminator.1} parent=127 // pred_check
        %p812 = pneg %p89
      $region130: #{attention_pixel_discriminator.1} parent=127 // pred_check_branch
        %814 = sbr.rel (%p812) target = $region132
      $region131: #{attention_pixel_discriminator.1} parent=127 // pred_region
        %p815 = scmp.lt.s32.totalorder %s69, 1
        %s816 = scalar_select %p815, %s69, 1
        %s817 = smul.addr %s816, 2
        %s818 = scalar_lea.vmem %s1, %s817
      $region132: #{attention_pixel_discriminator.1} parent=127 // pred_fallthru
        _
    $region128: #{attention_pixel_discriminator.1} parent=5 // pred_fallthru
      _
    %p819 = scmp.le.s32.totalorder 1, %s69
    %p820 = scmp.lt.s32.totalorder %s69, 3
    %p821 = pnand %p819, %p820
    %p822 = pneg %p821
    // Predicated region
    $region133: #{attention_pixel_discriminator.1} parent=5 // pred_check
      _
    $region134: #{attention_pixel_discriminator.1} parent=5 // pred_check_branch
      %824 = sbr.rel (%p821) target = $region136
    $region135: #{attention_pixel_discriminator.1} parent=5 // pred_region
      %s825 = ssub.s32 %s69, 1
      %p826 = scmp.lt.s32.totalorder %s74, 1
      %s827 = scalar_select %p826, %s74, 1
      %s828 = smul.addr %s827, 2
      %s829 = scalar_lea.vmem %s1, %s828
      %p830 = pneg %p95
      %p831 = pneg %p92
      %p832 = pneg %p116
      %p833 = pneg %p113
      %p834 = pneg %p137
      %p835 = pneg %p134
      %p836 = pneg %p158
      %p837 = pneg %p155
      %p838 = pneg %p179
      %p839 = pneg %p176
      %p840 = pneg %p200
      %p841 = pneg %p197
      %p842 = pneg %p221
      %p843 = pneg %p218
      %p844 = pneg %p242
      %p845 = pneg %p239
      %p846 = pneg %p263
      %p847 = pneg %p260
      %p848 = pneg %p284
      %p849 = pneg %p281
      %p850 = pneg %p305
      %p851 = pneg %p302
      %p852 = pneg %p326
      %p853 = pneg %p323
      %p854 = pneg %p347
      %p855 = pneg %p344
      %p856 = pneg %p368
      %p857 = pneg %p365
      %p858 = pneg %p389
      %p859 = pneg %p386
      %p860 = pneg %p410
      %p861 = pneg %p407
      %p862 = pneg %p431
      %p863 = pneg %p428
      %p864 = pneg %p452
      %p865 = pneg %p449
      %p866 = pneg %p473
      %p867 = pneg %p470
      %p868 = pneg %p494
      %p869 = pneg %p491
      %p870 = pneg %p515
      %p871 = pneg %p512
      %p872 = pneg %p536
      %p873 = pneg %p533
      %p874 = pneg %p557
      %p875 = pneg %p554
      %p876 = pneg %p578
      %p877 = pneg %p575
      %p878 = pneg %p599
      %p879 = pneg %p596
      %p880 = pneg %p620
      %p881 = pneg %p617
      %p882 = pneg %p641
      %p883 = pneg %p638
      %p884 = pneg %p662
      %p885 = pneg %p659
      %p886 = pneg %p683
      %p887 = pneg %p680
      %p888 = pneg %p709
      %p889 = pneg %p706
      %p890 = scmp.lt.s32.totalorder %s74, 1
      %s891 = scalar_select %p890, %s74, 1
      %s892 = scalar_lea.vmem %s59, %s891
      %p893 = scmp.lt.s32.totalorder %s74, 1
      %s894 = scalar_select %p893, %s74, 1
      %s895 = smul.addr %s894, 2
      %s896 = scalar_lea.vmem %s1, %s895
      %p897 = scmp.lt.s32.totalorder %s74, 1
      %s898 = scalar_select %p897, %s74, 1
      %s899 = scalar_lea.vmem %s59, %s898
      %v901 = vld [vmem:[%s896] sm:$0x3]
      %v903 = vperm.slane %v901, 0
      %v904 = vperm.slane %v901, 1
      %905 = vrot.lane.b32.xlu0 %v903, 17
      %v906 = vpop.permute.xlu0 %905
      %907 = vrot.lane.b32.xlu0 %v904, 17
      %v908 = vpop.permute.xlu0 %907
      %vm909 = vcmask 138240
      %v910 = vsel %vm909, %v906, %v908
      %v914 = vsel %vm909, 0.0, %v906
      %v915 = vsel %vm909, %v908, 0.0
      %v916 = vld [vmem:[%s3] sm:$0xf]
      %v918 = vperm.slane %v916, 0
      %v919 = vperm.slane %v916, 2
      %v922 = vmul.f32 %v914, %v918
      %v923 = vmul.f32 %v910, %v919
      %v924 = vperm.slane %v916, 1
      %v925 = vperm.slane %v916, 3
      %926 = vrot.lane.b32.xlu0 %v924, 2
      %v927 = vpop.permute.xlu0 %926
      %928 = vrot.lane.b32.xlu0 %v925, 2
      %v929 = vpop.permute.xlu0 %928
      %vm930 = vcmask 15360
      %v931 = vsel %vm930, %v927, %v929
      %v935 = vmul.f32 %v914, %v927
      %v936 = vmul.f32 %v910, %v931
      %v937 = vmul.f32 %v915, %v929
      %938 = vrot.lane.b32.xlu0 %v918, 16
      %v939 = vpop.permute.xlu0 %938
      %940 = vrot.lane.b32.xlu0 %v919, 16
      %v941 = vpop.permute.xlu0 %940
      %vm942 = vcmask 130048
      %v943 = vsel %vm942, %v939, %v941
      %v947 = vmul.f32 %v914, %v939
      %v948 = vmul.f32 %v910, %v943
      %v949 = vmul.f32 %v915, %v941
      %950 = vrot.lane.b32.xlu0 %v924, 18
      %v951 = vpop.permute.xlu0 %950
      %952 = vrot.lane.b32.xlu0 %v925, 18
      %v953 = vpop.permute.xlu0 %952
      %vm954 = vcmask 146432
      %v955 = vsel %vm954, %v951, %v953
      %v959 = vmul.f32 %v914, %v951
      %v960 = vmul.f32 %v910, %v955
      %v961 = vmul.f32 %v915, %v953
      %962 = vrot.lane.b32.xlu0 %v918, 32
      %v963 = vpop.permute.xlu0 %962
      %964 = vrot.lane.b32.xlu0 %v919, 32
      %v965 = vpop.permute.xlu0 %964
      %vm966 = vcmask 261120
      %v967 = vsel %vm966, %v963, %v965
      %v971 = vmul.f32 %v914, %v963
      %v972 = vmul.f32 %v910, %v967
      %v973 = vmul.f32 %v915, %v965
      %974 = vrot.lane.b32.xlu0 %v924, 34
      %v975 = vpop.permute.xlu0 %974
      %976 = vrot.lane.b32.xlu0 %v925, 34
      %v977 = vpop.permute.xlu0 %976
      %vm978 = vcmask 277504
      %v979 = vsel %vm978, %v975, %v977
      %v983 = vmul.f32 %v914, %v975
      %v984 = vmul.f32 %v910, %v979
      %v985 = vmul.f32 %v915, %v977
      %v988 = vrot.slane %v914, 7
      %v989 = vrot.slane %v910, 7
      %v990 = vrot.slane %v915, 7
      %991 = vrot.lane.b32.xlu0 %v988, 127
      %v992 = vpop.permute.xlu0 %991
      %993 = vrot.lane.b32.xlu0 %v989, 127
      %v994 = vpop.permute.xlu0 %993
      %995 = vrot.lane.b32.xlu0 %v990, 127
      %v996 = vpop.permute.xlu0 %995
      %vm997 = vcmask 1039360
      %v998 = vsel %vm997, %v992, %v994
      %v999 = vsel %vm997, %v994, %v996
      %v1005 = vrot.slane %v935, 6
      %v1006 = vrot.slane %v936, 6
      %v1007 = vrot.slane %v937, 6
      %1008 = vrot.lane.b32.xlu0 %v1005, 126
      %v1009 = vpop.permute.xlu0 %1008
      %1010 = vrot.lane.b32.xlu0 %v1006, 126
      %v1011 = vpop.permute.xlu0 %1010
      %1012 = vrot.lane.b32.xlu0 %v1007, 126
      %v1013 = vpop.permute.xlu0 %1012
      %vm1014 = vcmask 1031168
      %v1015 = vsel %vm1014, %v1009, %v1011
      %v1016 = vsel %vm1014, %v1011, %v1013
      %v1022 = vrot.slane %v947, 5
      %v1023 = vrot.slane %v948, 5
      %v1024 = vrot.slane %v949, 5
      %1025 = vrot.lane.b32.xlu0 %v1022, 112
      %v1026 = vpop.permute.xlu0 %1025
      %1027 = vrot.lane.b32.xlu0 %v1023, 112
      %v1028 = vpop.permute.xlu0 %1027
      %1029 = vrot.lane.b32.xlu0 %v1024, 112
      %v1030 = vpop.permute.xlu0 %1029
      %vm1031 = vcmask 916480
      %v1032 = vsel %vm1031, %v1026, %v1028
      %v1033 = vsel %vm1031, %v1028, %v1030
      %v1036 = vrot.slane %v914, 4
      %v1037 = vrot.slane %v910, 4
      %v1038 = vrot.slane %v915, 4
      %1039 = vrot.lane.b32.xlu0 %v1036, 111
      %v1040 = vpop.permute.xlu0 %1039
      %1041 = vrot.lane.b32.xlu0 %v1037, 111
      %v1042 = vpop.permute.xlu0 %1041
      %1043 = vrot.lane.b32.xlu0 %v1038, 111
      %v1044 = vpop.permute.xlu0 %1043
      %vm1045 = vcmask 908288
      %v1046 = vsel %vm1045, %v1040, %v1042
      %v1047 = vsel %vm1045, %v1042, %v1044
      %v1053 = vrot.slane %v959, 3
      %v1054 = vrot.slane %v960, 3
      %v1055 = vrot.slane %v961, 3
      %1056 = vrot.lane.b32.xlu0 %v1053, 110
      %v1057 = vpop.permute.xlu0 %1056
      %1058 = vrot.lane.b32.xlu0 %v1054, 110
      %v1059 = vpop.permute.xlu0 %1058
      %1060 = vrot.lane.b32.xlu0 %v1055, 110
      %v1061 = vpop.permute.xlu0 %1060
      %vm1062 = vcmask 900096
      %v1063 = vsel %vm1062, %v1057, %v1059
      %v1064 = vsel %vm1062, %v1059, %v1061
      %v1070 = vrot.slane %v971, 2
      %v1071 = vrot.slane %v972, 2
      %v1072 = vrot.slane %v973, 2
      %1073 = vrot.lane.b32.xlu0 %v1070, 96
      %v1074 = vpop.permute.xlu0 %1073
      %1075 = vrot.lane.b32.xlu0 %v1071, 96
      %v1076 = vpop.permute.xlu0 %1075
      %1077 = vrot.lane.b32.xlu0 %v1072, 96
      %v1078 = vpop.permute.xlu0 %1077
      %vm1079 = vcmask 785408
      %v1080 = vsel %vm1079, %v1074, %v1076
      %v1081 = vsel %vm1079, %v1076, %v1078
      %v1084 = vrot.slane %v914, 1
      %v1085 = vrot.slane %v910, 1
      %v1086 = vrot.slane %v915, 1
      %1087 = vrot.lane.b32.xlu0 %v1084, 95
      %v1088 = vpop.permute.xlu0 %1087
      %1089 = vrot.lane.b32.xlu0 %v1085, 95
      %v1090 = vpop.permute.xlu0 %1089
      %1091 = vrot.lane.b32.xlu0 %v1086, 95
      %v1092 = vpop.permute.xlu0 %1091
      %vm1093 = vcmask 777216
      %v1094 = vsel %vm1093, %v1088, %v1090
      %v1095 = vsel %vm1093, %v1090, %v1092
      %1101 = vrot.lane.b32.xlu0 %v983, 94
      %v1102 = vpop.permute.xlu0 %1101
      %1103 = vrot.lane.b32.xlu0 %v984, 94
      %v1104 = vpop.permute.xlu0 %1103
      %1105 = vrot.lane.b32.xlu0 %v985, 94
      %v1106 = vpop.permute.xlu0 %1105
      %vm1107 = vcmask 769024
      %v1108 = vsel %vm1107, %v1102, %v1104
      %v1109 = vsel %vm1107, %v1104, %v1106
      %vm1112 = vcmask 1040384
      %v1113 = vsel %vm1112, %v922, %v998
      %v1114 = vsel %vm1112, %v923, %v999
      %vm1115 = vcmask 1041408
      %v1116 = vsel %vm1115, %v1113, %v1015
      %v1117 = vsel %vm1115, %v1114, %v1016
      %vm1118 = vcmask 1042432
      %v1119 = vsel %vm1118, %v1116, %v1032
      %v1120 = vsel %vm1118, %v1117, %v1033
      %vm1121 = vcmask 1043456
      %v1122 = vsel %vm1121, %v1119, %v1046
      %v1123 = vsel %vm1121, %v1120, %v1047
      %vm1124 = vcmask 1044480
      %v1125 = vsel %vm1124, %v1122, %v1063
      %v1126 = vsel %vm1124, %v1123, %v1064
      %vm1127 = vcmask 1045504
      %v1128 = vsel %vm1127, %v1125, %v1080
      %v1129 = vsel %vm1127, %v1126, %v1081
      %vm1130 = vcmask 1046528
      %v1131 = vsel %vm1130, %v1128, %v1094
      %v1132 = vsel %vm1130, %v1129, %v1095
      %v1133 = vpack.c.bf16 %v1108, %v1131
      %v1134 = vpack.c.bf16 %v1109, %v1132
      %v1135 = vld [vmem:[%s15] sm:$0xf]
      %v1136 = vld [vmem:[%s17] sm:$0xff]
      %1138 = vset.pattern.permute.xlu0 0
      %1139 = vperm.xlu0 %1138, %v1136
      %v1140 = vpop.permute.xlu0 %1139
      %vm1142 = vcmask 72704
      %v1144 = vsel %vm1142, %v1135, 0
      %v1146 = vsel %vm1121, 4294967295, 65535
      %v1147 = vsel %vm1124, %v1146, 0
      %v1149 = vand.u32 %v1133, %v1147
      %v1152 = vand.u32 %v1134, %v1147
      %1154 = vmatpush.bf16.msra.mxu0 0
      %1155 = vmatpush.bf16.msra.mxu0 0
      %1156 = vmatpush.bf16.msra.mxu0 0
      %1157 = vmatpush.bf16.msra.mxu0 0
      %1158 = vmatpush.bf16.msra.mxu0 0
      %1159 = vmatpush.bf16.msra.mxu0 0
      %1160 = vmatpush.bf16.msra.mxu0 0
      %1161 = vmatpush.bf16.msra.mxu0 %v1149
      %1162 = vmatmul.bf16.gmra.mxu0 %v1144
      %v1163 = vpop.f32.mrf.mxu0
      %v1164 = vadd.f32 %v1140, %v1163
      %v1165 = vpop.f32.mrf.mxu0
      %1166 = vdwg.mxu0
      %1167 = vmatpush.bf16.msra.mxu0 0
      %1168 = vmatpush.bf16.msra.mxu0 0
      %1169 = vmatpush.bf16.msra.mxu0 0
      %1170 = vmatpush.bf16.msra.mxu0 0
      %1171 = vmatpush.bf16.msra.mxu0 0
      %1172 = vmatpush.bf16.msra.mxu0 0
      %1173 = vmatpush.bf16.msra.mxu0 0
      %1174 = vmatpush.bf16.msra.mxu0 %v1152
      %1175 = vmatmul.bf16.gmra.mxu0 %v1144
      %v1176 = vpop.f32.mrf.mxu0
      %v1177 = vadd.f32 %v1140, %v1176
      %v1178 = vpop.f32.mrf.mxu0
      %1179 = vdwg.mxu0
      %vm1180 = vcmp.ge.f32.partialorder %v1164, 0.0
      %vm1181 = vcmp.ge.f32.partialorder %v1177, 0.0
      %v1182 = vmul.f32 %v1164, 0.2
      %v1183 = vmul.f32 %v1177, 0.2
      %v1184 = vsel %vm1180, %v1164, %v1182
      %v1185 = vsel %vm1181, %v1177, %v1183
      %1188 = vrot.lane.b32.xlu0 %v1184, 17
      %v1189 = vpop.permute.xlu0 %1188
      %1190 = vrot.lane.b32.xlu0 %v1185, 17
      %v1191 = vpop.permute.xlu0 %1190
      %v1192 = vsel %vm909, %v1189, %v1191
      %v1196 = vsel %vm909, 0.0, %v1189
      %v1197 = vsel %vm909, %v1191, 0.0
      %v1198 = vperm.slane %v918, 0
      %v1199 = vperm.slane %v919, 0
      %v1200 = vmul.f32 %v1196, %v1198
      %v1201 = vmul.f32 %v1192, %v1199
      %v1204 = vperm.slane %v924, 1
      %v1205 = vperm.slane %v925, 1
      %1208 = vrot.lane.b32.xlu0 %v1204, 2
      %v1209 = vpop.permute.xlu0 %1208
      %1210 = vrot.lane.b32.xlu0 %v1205, 2
      %v1211 = vpop.permute.xlu0 %1210
      %v1212 = vsel %vm930, %v1209, %v1211
      %v1216 = vmul.f32 %v1196, %v1209
      %v1217 = vmul.f32 %v1192, %v1212
      %v1218 = vmul.f32 %v1197, %v1211
      %1221 = vrot.lane.b32.xlu0 %v1198, 16
      %v1222 = vpop.permute.xlu0 %1221
      %1223 = vrot.lane.b32.xlu0 %v1199, 16
      %v1224 = vpop.permute.xlu0 %1223
      %v1225 = vsel %vm942, %v1222, %v1224
      %v1229 = vmul.f32 %v1196, %v1222
      %v1230 = vmul.f32 %v1192, %v1225
      %v1231 = vmul.f32 %v1197, %v1224
      %1232 = vrot.lane.b32.xlu0 %v1204, 18
      %v1233 = vpop.permute.xlu0 %1232
      %1234 = vrot.lane.b32.xlu0 %v1205, 18
      %v1235 = vpop.permute.xlu0 %1234
      %v1236 = vsel %vm954, %v1233, %v1235
      %v1240 = vmul.f32 %v1196, %v1233
      %v1241 = vmul.f32 %v1192, %v1236
      %v1242 = vmul.f32 %v1197, %v1235
      %1243 = vrot.lane.b32.xlu0 %v1198, 32
      %v1244 = vpop.permute.xlu0 %1243
      %1245 = vrot.lane.b32.xlu0 %v1199, 32
      %v1246 = vpop.permute.xlu0 %1245
      %v1247 = vsel %vm966, %v1244, %v1246
      %v1251 = vmul.f32 %v1196, %v1244
      %v1252 = vmul.f32 %v1192, %v1247
      %v1253 = vmul.f32 %v1197, %v1246
      %1254 = vrot.lane.b32.xlu0 %v1204, 34
      %v1255 = vpop.permute.xlu0 %1254
      %1256 = vrot.lane.b32.xlu0 %v1205, 34
      %v1257 = vpop.permute.xlu0 %1256
      %v1258 = vsel %vm978, %v1255, %v1257
      %v1262 = vmul.f32 %v1196, %v1255
      %v1263 = vmul.f32 %v1192, %v1258
      %v1264 = vmul.f32 %v1197, %v1257
      %1267 = vrot.lane.b32.xlu0 %v1196, 127
      %v1268 = vpop.permute.xlu0 %1267
      %1269 = vrot.lane.b32.xlu0 %v1192, 127
      %v1270 = vpop.permute.xlu0 %1269
      %1271 = vrot.lane.b32.xlu0 %v1197, 127
      %v1272 = vpop.permute.xlu0 %1271
      %v1273 = vsel %vm997, %v1268, %v1270
      %v1274 = vsel %vm997, %v1270, %v1272
      %1280 = vrot.lane.b32.xlu0 %v1216, 126
      %v1281 = vpop.permute.xlu0 %1280
      %1282 = vrot.lane.b32.xlu0 %v1217, 126
      %v1283 = vpop.permute.xlu0 %1282
      %1284 = vrot.lane.b32.xlu0 %v1218, 126
      %v1285 = vpop.permute.xlu0 %1284
      %v1286 = vsel %vm1014, %v1281, %v1283
      %v1287 = vsel %vm1014, %v1283, %v1285
      %1293 = vrot.lane.b32.xlu0 %v1229, 112
      %v1294 = vpop.permute.xlu0 %1293
      %1295 = vrot.lane.b32.xlu0 %v1230, 112
      %v1296 = vpop.permute.xlu0 %1295
      %1297 = vrot.lane.b32.xlu0 %v1231, 112
      %v1298 = vpop.permute.xlu0 %1297
      %v1299 = vsel %vm1031, %v1294, %v1296
      %v1300 = vsel %vm1031, %v1296, %v1298
      %1303 = vrot.lane.b32.xlu0 %v1196, 111
      %v1304 = vpop.permute.xlu0 %1303
      %1305 = vrot.lane.b32.xlu0 %v1192, 111
      %v1306 = vpop.permute.xlu0 %1305
      %1307 = vrot.lane.b32.xlu0 %v1197, 111
      %v1308 = vpop.permute.xlu0 %1307
      %v1309 = vsel %vm1045, %v1304, %v1306
      %v1310 = vsel %vm1045, %v1306, %v1308
      %1316 = vrot.lane.b32.xlu0 %v1240, 110
      %v1317 = vpop.permute.xlu0 %1316
      %1318 = vrot.lane.b32.xlu0 %v1241, 110
      %v1319 = vpop.permute.xlu0 %1318
      %1320 = vrot.lane.b32.xlu0 %v1242, 110
      %v1321 = vpop.permute.xlu0 %1320
      %v1322 = vsel %vm1062, %v1317, %v1319
      %v1323 = vsel %vm1062, %v1319, %v1321
      %1329 = vrot.lane.b32.xlu0 %v1251, 96
      %v1330 = vpop.permute.xlu0 %1329
      %1331 = vrot.lane.b32.xlu0 %v1252, 96
      %v1332 = vpop.permute.xlu0 %1331
      %1333 = vrot.lane.b32.xlu0 %v1253, 96
      %v1334 = vpop.permute.xlu0 %1333
      %v1335 = vsel %vm1079, %v1330, %v1332
      %v1336 = vsel %vm1079, %v1332, %v1334
      %1339 = vrot.lane.b32.xlu0 %v1196, 95
      %v1340 = vpop.permute.xlu0 %1339
      %1341 = vrot.lane.b32.xlu0 %v1192, 95
      %v1342 = vpop.permute.xlu0 %1341
      %1343 = vrot.lane.b32.xlu0 %v1197, 95
      %v1344 = vpop.permute.xlu0 %1343
      %v1345 = vsel %vm1093, %v1340, %v1342
      %v1346 = vsel %vm1093, %v1342, %v1344
      %1352 = vrot.lane.b32.xlu0 %v1262, 94
      %v1353 = vpop.permute.xlu0 %1352
      %1354 = vrot.lane.b32.xlu0 %v1263, 94
      %v1355 = vpop.permute.xlu0 %1354
      %1356 = vrot.lane.b32.xlu0 %v1264, 94
      %v1357 = vpop.permute.xlu0 %1356
      %v1358 = vsel %vm1107, %v1353, %v1355
      %v1359 = vsel %vm1107, %v1355, %v1357
      %v1362 = vpack.c.bf16 %v1273, %v1200
      %v1363 = vpack.c.bf16 %v1274, %v1201
      %v1364 = vpack.c.bf16 %v1299, %v1286
      %v1365 = vpack.c.bf16 %v1300, %v1287
      %v1366 = vpack.c.bf16 %v1322, %v1309
      %v1367 = vpack.c.bf16 %v1323, %v1310
      %v1368 = vpack.c.bf16 %v1345, %v1335
      %v1369 = vpack.c.bf16 %v1346, %v1336
      %v1370 = vpack.c.bf16 %v1358, %v1358
      %v1371 = vpack.c.bf16 %v1359, %v1359
      %v1372 = vld [vmem:[%s19] sm:$0xf]
      %v1373 = vld [vmem:[%s19 + $0x4] sm:$0xf]
      %v1376 = vunpack.c.l.b16 %v1372
      %v1377 = vunpack.c.l.b16 %v1373
      %v1378 = vpack.c.b16 %v1377, %v1376
      %vm1379 = vcmask 588800
      %v1381 = vsel %vm1379, %v1378, 0
      %v1384 = vsel %vm1121, %v1370, 0
      %v1387 = vsel %vm1121, %v1371, 0
      %1389 = vmatpush.bf16.msra.mxu0 0
      %1390 = vmatpush.bf16.msra.mxu0 0
      %1391 = vmatpush.bf16.msra.mxu0 0
      %1392 = vmatpush.bf16.msra.mxu0 %v1384
      %1393 = vmatpush.bf16.msra.mxu0 %v1368
      %1394 = vmatpush.bf16.msra.mxu0 %v1366
      %1395 = vmatpush.bf16.msra.mxu0 %v1364
      %1396 = vmatpush.bf16.msra.mxu0 %v1362
      %1397 = vmatmul.bf16.gmra.mxu0 %v1381
      %v1398 = vpop.f32.mrf.mxu0
      %v1399 = vadd.f32 0.0, %v1398
      %v1400 = vpop.f32.mrf.mxu0
      %v1401 = vadd.f32 0.0, %v1400
      %1402 = vdwg.mxu0
      %1403 = vmatpush.bf16.msra.mxu0 0
      %1404 = vmatpush.bf16.msra.mxu0 0
      %1405 = vmatpush.bf16.msra.mxu0 0
      %1406 = vmatpush.bf16.msra.mxu0 %v1387
      %1407 = vmatpush.bf16.msra.mxu0 %v1369
      %1408 = vmatpush.bf16.msra.mxu0 %v1367
      %1409 = vmatpush.bf16.msra.mxu0 %v1365
      %1410 = vmatpush.bf16.msra.mxu0 %v1363
      %1411 = vmatmul.bf16.gmra.mxu0 %v1381
      %v1412 = vpop.f32.mrf.mxu0
      %v1413 = vadd.f32 0.0, %v1412
      %v1414 = vpop.f32.mrf.mxu0
      %v1415 = vadd.f32 0.0, %v1414
      %1416 = vdwg.mxu0
      %v1417 = vadd.f32 %v1399, %v1413
      %1418 = vadd.xlane.f32.xlu0 %v1417
      %v1419 = vpop.xlane.xlu0 %1418
      %v1420 = vadd.f32 %v1401, %v1415
      %1421 = vadd.xlane.f32.xlu0 %v1420
      %v1422 = vpop.xlane.xlu0 %1421
      %v1423 = vmul.f32 %v1419, 0.00390625
      %v1424 = vmul.f32 %v1422, 0.00390625
      %v1425 = vmul.f32 %v1399, %v1399
      %v1426 = vmul.f32 %v1413, %v1413
      %v1427 = vmul.f32 %v1401, %v1401
      %v1428 = vmul.f32 %v1415, %v1415
      %v1429 = vadd.f32 %v1425, %v1426
      %1430 = vadd.xlane.f32.xlu0 %v1429
      %v1431 = vpop.xlane.xlu0 %1430
      %v1432 = vadd.f32 %v1427, %v1428
      %1433 = vadd.xlane.f32.xlu0 %v1432
      %v1434 = vpop.xlane.xlu0 %1433
      %v1435 = vmul.f32 %v1431, 0.00390625
      %v1436 = vmul.f32 %v1434, 0.00390625
      %v1437 = vmul.f32 %v1423, %v1423
      %v1438 = vmul.f32 %v1424, %v1424
      %v1439 = vsub.f32 %v1435, %v1437
      %v1440 = vsub.f32 %v1436, %v1438
      %v1441 = vsub.f32 %v1399, %v1423
      %v1442 = vsub.f32 %v1413, %v1423
      %v1443 = vsub.f32 %v1401, %v1424
      %v1444 = vsub.f32 %v1415, %v1424
      %v1445 = vmax.f32 %v1439, 0.0
      %v1446 = vmax.f32 %v1440, 0.0
      %v1447 = vadd.f32 %v1445, 1e-05
      %v1448 = vadd.f32 %v1446, 1e-05
      %v1449 = vrsqrt.pop %v1447
      %v1450 = vmul.f32 %v1449, %v1447
      %v1451 = vmul.f32 %v1450, %v1449
      %v1452 = vmul.f32 0.5, %v1451
      %v1453 = vsub.f32 1.5, %v1452
      %v1454 = vmul.f32 %v1449, %v1453
      %vm1455 = vweird.f32 %v1447
      %vm1456 = vweird.f32 %v1449
      %vm1457 = vmor %vm1455, %vm1456
      %v1458 = vsel %vm1457, %v1449, %v1454
      %v1459 = vrsqrt.pop %v1448
      %v1460 = vmul.f32 %v1459, %v1448
      %v1461 = vmul.f32 %v1460, %v1459
      %v1462 = vmul.f32 0.5, %v1461
      %v1463 = vsub.f32 1.5, %v1462
      %v1464 = vmul.f32 %v1459, %v1463
      %vm1465 = vweird.f32 %v1448
      %vm1466 = vweird.f32 %v1459
      %vm1467 = vmor %vm1465, %vm1466
      %v1468 = vsel %vm1467, %v1459, %v1464
      %v1469 = vmul.f32 %v1441, %v1458
      %v1470 = vmul.f32 %v1442, %v1458
      %v1471 = vmul.f32 %v1443, %v1468
      %v1472 = vmul.f32 %v1444, %v1468
      %vm1473 = vcmp.ge.f32.partialorder %v1469, 0.0
      %vm1474 = vcmp.ge.f32.partialorder %v1470, 0.0
      %vm1475 = vcmp.ge.f32.partialorder %v1471, 0.0
      %vm1476 = vcmp.ge.f32.partialorder %v1472, 0.0
      %v1477 = vmul.f32 %v1469, 0.2
      %v1478 = vmul.f32 %v1470, 0.2
      %v1479 = vmul.f32 %v1471, 0.2
      %v1480 = vmul.f32 %v1472, 0.2
      %v1481 = vsel %vm1473, %v1469, %v1477
      %v1482 = vsel %vm1474, %v1470, %v1478
      %v1483 = vsel %vm1475, %v1471, %v1479
      %v1484 = vsel %vm1476, %v1472, %v1480
      %1489 = vrot.lane.b32.xlu0 %v1481, 17
      %v1490 = vpop.permute.xlu0 %1489
      %1491 = vrot.lane.b32.xlu0 %v1482, 17
      %v1492 = vpop.permute.xlu0 %1491
      %1493 = vrot.lane.b32.xlu0 %v1483, 17
      %v1494 = vpop.permute.xlu0 %1493
      %1495 = vrot.lane.b32.xlu0 %v1484, 17
      %v1496 = vpop.permute.xlu0 %1495
      %v1497 = vsel %vm909, %v1490, %v1492
      %v1498 = vsel %vm909, %v1494, %v1496
      %v1505 = vsel %vm909, 0.0, %v1490
      %v1506 = vsel %vm909, 0.0, %v1494
      %v1507 = vsel %vm909, %v1492, 0.0
      %v1508 = vsel %vm909, %v1496, 0.0
      %v1509 = vmul.f32 %v1505, %v1198
      %v1510 = vmul.f32 %v1497, %v1199
      %v1511 = vmul.f32 %v1506, %v1198
      %v1512 = vmul.f32 %v1498, %v1199
      %v1513 = vmul.f32 %v1505, %v1209
      %v1514 = vmul.f32 %v1497, %v1212
      %v1515 = vmul.f32 %v1507, %v1211
      %v1516 = vmul.f32 %v1506, %v1209
      %v1517 = vmul.f32 %v1498, %v1212
      %v1518 = vmul.f32 %v1508, %v1211
      %v1519 = vmul.f32 %v1505, %v1222
      %v1520 = vmul.f32 %v1497, %v1225
      %v1521 = vmul.f32 %v1507, %v1224
      %v1522 = vmul.f32 %v1506, %v1222
      %v1523 = vmul.f32 %v1498, %v1225
      %v1524 = vmul.f32 %v1508, %v1224
      %v1525 = vmul.f32 %v1505, %v1233
      %v1526 = vmul.f32 %v1497, %v1236
      %v1527 = vmul.f32 %v1507, %v1235
      %v1528 = vmul.f32 %v1506, %v1233
      %v1529 = vmul.f32 %v1498, %v1236
      %v1530 = vmul.f32 %v1508, %v1235
      %v1531 = vmul.f32 %v1505, %v1244
      %v1532 = vmul.f32 %v1497, %v1247
      %v1533 = vmul.f32 %v1507, %v1246
      %v1534 = vmul.f32 %v1506, %v1244
      %v1535 = vmul.f32 %v1498, %v1247
      %v1536 = vmul.f32 %v1508, %v1246
      %v1537 = vmul.f32 %v1505, %v1255
      %v1538 = vmul.f32 %v1497, %v1258
      %v1539 = vmul.f32 %v1507, %v1257
      %v1540 = vmul.f32 %v1506, %v1255
      %v1541 = vmul.f32 %v1498, %v1258
      %v1542 = vmul.f32 %v1508, %v1257
      %1547 = vrot.lane.b32.xlu0 %v1505, 127
      %v1548 = vpop.permute.xlu0 %1547
      %1549 = vrot.lane.b32.xlu0 %v1497, 127
      %v1550 = vpop.permute.xlu0 %1549
      %1551 = vrot.lane.b32.xlu0 %v1507, 127
      %v1552 = vpop.permute.xlu0 %1551
      %1553 = vrot.lane.b32.xlu0 %v1506, 127
      %v1554 = vpop.permute.xlu0 %1553
      %1555 = vrot.lane.b32.xlu0 %v1498, 127
      %v1556 = vpop.permute.xlu0 %1555
      %1557 = vrot.lane.b32.xlu0 %v1508, 127
      %v1558 = vpop.permute.xlu0 %1557
      %v1559 = vsel %vm997, %v1548, %v1550
      %v1560 = vsel %vm997, %v1550, %v1552
      %v1561 = vsel %vm997, %v1554, %v1556
      %v1562 = vsel %vm997, %v1556, %v1558
      %1573 = vrot.lane.b32.xlu0 %v1513, 126
      %v1574 = vpop.permute.xlu0 %1573
      %1575 = vrot.lane.b32.xlu0 %v1514, 126
      %v1576 = vpop.permute.xlu0 %1575
      %1577 = vrot.lane.b32.xlu0 %v1515, 126
      %v1578 = vpop.permute.xlu0 %1577
      %1579 = vrot.lane.b32.xlu0 %v1516, 126
      %v1580 = vpop.permute.xlu0 %1579
      %1581 = vrot.lane.b32.xlu0 %v1517, 126
      %v1582 = vpop.permute.xlu0 %1581
      %1583 = vrot.lane.b32.xlu0 %v1518, 126
      %v1584 = vpop.permute.xlu0 %1583
      %v1585 = vsel %vm1014, %v1574, %v1576
      %v1586 = vsel %vm1014, %v1576, %v1578
      %v1587 = vsel %vm1014, %v1580, %v1582
      %v1588 = vsel %vm1014, %v1582, %v1584
      %1599 = vrot.lane.b32.xlu0 %v1519, 112
      %v1600 = vpop.permute.xlu0 %1599
      %1601 = vrot.lane.b32.xlu0 %v1520, 112
      %v1602 = vpop.permute.xlu0 %1601
      %1603 = vrot.lane.b32.xlu0 %v1521, 112
      %v1604 = vpop.permute.xlu0 %1603
      %1605 = vrot.lane.b32.xlu0 %v1522, 112
      %v1606 = vpop.permute.xlu0 %1605
      %1607 = vrot.lane.b32.xlu0 %v1523, 112
      %v1608 = vpop.permute.xlu0 %1607
      %1609 = vrot.lane.b32.xlu0 %v1524, 112
      %v1610 = vpop.permute.xlu0 %1609
      %v1611 = vsel %vm1031, %v1600, %v1602
      %v1612 = vsel %vm1031, %v1602, %v1604
      %v1613 = vsel %vm1031, %v1606, %v1608
      %v1614 = vsel %vm1031, %v1608, %v1610
      %1619 = vrot.lane.b32.xlu0 %v1505, 111
      %v1620 = vpop.permute.xlu0 %1619
      %1621 = vrot.lane.b32.xlu0 %v1497, 111
      %v1622 = vpop.permute.xlu0 %1621
      %1623 = vrot.lane.b32.xlu0 %v1507, 111
      %v1624 = vpop.permute.xlu0 %1623
      %1625 = vrot.lane.b32.xlu0 %v1506, 111
      %v1626 = vpop.permute.xlu0 %1625
      %1627 = vrot.lane.b32.xlu0 %v1498, 111
      %v1628 = vpop.permute.xlu0 %1627
      %1629 = vrot.lane.b32.xlu0 %v1508, 111
      %v1630 = vpop.permute.xlu0 %1629
      %v1631 = vsel %vm1045, %v1620, %v1622
      %v1632 = vsel %vm1045, %v1622, %v1624
      %v1633 = vsel %vm1045, %v1626, %v1628
      %v1634 = vsel %vm1045, %v1628, %v1630
      %1645 = vrot.lane.b32.xlu0 %v1525, 110
      %v1646 = vpop.permute.xlu0 %1645
      %1647 = vrot.lane.b32.xlu0 %v1526, 110
      %v1648 = vpop.permute.xlu0 %1647
      %1649 = vrot.lane.b32.xlu0 %v1527, 110
      %v1650 = vpop.permute.xlu0 %1649
      %1651 = vrot.lane.b32.xlu0 %v1528, 110
      %v1652 = vpop.permute.xlu0 %1651
      %1653 = vrot.lane.b32.xlu0 %v1529, 110
      %v1654 = vpop.permute.xlu0 %1653
      %1655 = vrot.lane.b32.xlu0 %v1530, 110
      %v1656 = vpop.permute.xlu0 %1655
      %v1657 = vsel %vm1062, %v1646, %v1648
      %v1658 = vsel %vm1062, %v1648, %v1650
      %v1659 = vsel %vm1062, %v1652, %v1654
      %v1660 = vsel %vm1062, %v1654, %v1656
      %1671 = vrot.lane.b32.xlu0 %v1531, 96
      %v1672 = vpop.permute.xlu0 %1671
      %1673 = vrot.lane.b32.xlu0 %v1532, 96
      %v1674 = vpop.permute.xlu0 %1673
      %1675 = vrot.lane.b32.xlu0 %v1533, 96
      %v1676 = vpop.permute.xlu0 %1675
      %1677 = vrot.lane.b32.xlu0 %v1534, 96
      %v1678 = vpop.permute.xlu0 %1677
      %1679 = vrot.lane.b32.xlu0 %v1535, 96
      %v1680 = vpop.permute.xlu0 %1679
      %1681 = vrot.lane.b32.xlu0 %v1536, 96
      %v1682 = vpop.permute.xlu0 %1681
      %v1683 = vsel %vm1079, %v1672, %v1674
      %v1684 = vsel %vm1079, %v1674, %v1676
      %v1685 = vsel %vm1079, %v1678, %v1680
      %v1686 = vsel %vm1079, %v1680, %v1682
      %1691 = vrot.lane.b32.xlu0 %v1505, 95
      %v1692 = vpop.permute.xlu0 %1691
      %1693 = vrot.lane.b32.xlu0 %v1497, 95
      %v1694 = vpop.permute.xlu0 %1693
      %1695 = vrot.lane.b32.xlu0 %v1507, 95
      %v1696 = vpop.permute.xlu0 %1695
      %1697 = vrot.lane.b32.xlu0 %v1506, 95
      %v1698 = vpop.permute.xlu0 %1697
      %1699 = vrot.lane.b32.xlu0 %v1498, 95
      %v1700 = vpop.permute.xlu0 %1699
      %1701 = vrot.lane.b32.xlu0 %v1508, 95
      %v1702 = vpop.permute.xlu0 %1701
      %v1703 = vsel %vm1093, %v1692, %v1694
      %v1704 = vsel %vm1093, %v1694, %v1696
      %v1705 = vsel %vm1093, %v1698, %v1700
      %v1706 = vsel %vm1093, %v1700, %v1702
      %1717 = vrot.lane.b32.xlu0 %v1537, 94
      %v1718 = vpop.permute.xlu0 %1717
      %1719 = vrot.lane.b32.xlu0 %v1538, 94
      %v1720 = vpop.permute.xlu0 %1719
      %1721 = vrot.lane.b32.xlu0 %v1539, 94
      %v1722 = vpop.permute.xlu0 %1721
      %1723 = vrot.lane.b32.xlu0 %v1540, 94
      %v1724 = vpop.permute.xlu0 %1723
      %1725 = vrot.lane.b32.xlu0 %v1541, 94
      %v1726 = vpop.permute.xlu0 %1725
      %1727 = vrot.lane.b32.xlu0 %v1542, 94
      %v1728 = vpop.permute.xlu0 %1727
      %v1729 = vsel %vm1107, %v1718, %v1720
      %v1730 = vsel %vm1107, %v1720, %v1722
      %v1731 = vsel %vm1107, %v1724, %v1726
      %v1732 = vsel %vm1107, %v1726, %v1728
      %v1737 = vpack.c.bf16 %v1511, %v1509
      %v1738 = vpack.c.bf16 %v1512, %v1510
      %v1739 = vpack.c.bf16 %v1561, %v1559
      %v1740 = vpack.c.bf16 %v1562, %v1560
      %v1741 = vpack.c.bf16 %v1587, %v1585
      %v1742 = vpack.c.bf16 %v1588, %v1586
      %v1743 = vpack.c.bf16 %v1613, %v1611
      %v1744 = vpack.c.bf16 %v1614, %v1612
      %v1745 = vpack.c.bf16 %v1633, %v1631
      %v1746 = vpack.c.bf16 %v1634, %v1632
      %v1747 = vpack.c.bf16 %v1659, %v1657
      %v1748 = vpack.c.bf16 %v1660, %v1658
      %v1749 = vpack.c.bf16 %v1685, %v1683
      %v1750 = vpack.c.bf16 %v1686, %v1684
      %v1751 = vpack.c.bf16 %v1705, %v1703
      %v1752 = vpack.c.bf16 %v1706, %v1704
      %v1753 = vpack.c.bf16 %v1731, %v1729
      %v1754 = vpack.c.bf16 %v1732, %v1730
      %v1755 = vld [vmem:[%s21] sm:$0xff]
      %v1756 = vld [vmem:[%s21 + $0x8] sm:$0xff]
      %v1759 = vunpack.c.l.b16 %v1755
      %v1760 = vunpack.c.h.b16 %v1755
      %v1761 = vunpack.c.l.b16 %v1756
      %v1762 = vunpack.c.h.b16 %v1756
      %v1763 = vpack.c.b16 %v1761, %v1759
      %v1764 = vpack.c.b16 %v1762, %v1760
      %v1767 = vsel %vm942, %v1764, 0
      %1769 = vmatpush.bf16.msra.mxu0 %v1751
      %1770 = vmatpush.bf16.msra.mxu0 %v1749
      %1771 = vmatpush.bf16.msra.mxu0 %v1747
      %1772 = vmatpush.bf16.msra.mxu0 %v1745
      %1773 = vmatpush.bf16.msra.mxu0 %v1743
      %1774 = vmatpush.bf16.msra.mxu0 %v1741
      %1775 = vmatpush.bf16.msra.mxu0 %v1739
      %1776 = vmatpush.bf16.msra.mxu0 %v1737
      %1777 = vmatmul.bf16.gmra.mxu0 %v1763
      %v1778 = vpop.f32.mrf.mxu0
      %v1779 = vadd.f32 0.0, %v1778
      %v1780 = vpop.f32.mrf.mxu0
      %v1781 = vadd.f32 0.0, %v1780
      %1782 = vdwg.mxu0
      %1783 = vmatpush.bf16.msra.mxu0 0
      %1784 = vmatpush.bf16.msra.mxu0 0
      %1785 = vmatpush.bf16.msra.mxu0 0
      %1786 = vmatpush.bf16.msra.mxu0 0
      %1787 = vmatpush.bf16.msra.mxu0 0
      %1788 = vmatpush.bf16.msra.mxu0 0
      %1789 = vmatpush.bf16.msra.mxu0 0
      %1790 = vmatpush.bf16.msra.mxu0 %v1753
      %1791 = vmatmul.bf16.gmra.mxu0 %v1767
      %v1792 = vpop.f32.mrf.mxu0
      %v1793 = vadd.f32 %v1779, %v1792
      %v1794 = vpop.f32.mrf.mxu0
      %v1795 = vadd.f32 %v1781, %v1794
      %1796 = vdwg.mxu0
      %1797 = vmatpush.bf16.msra.mxu0 %v1752
      %1798 = vmatpush.bf16.msra.mxu0 %v1750
      %1799 = vmatpush.bf16.msra.mxu0 %v1748
      %1800 = vmatpush.bf16.msra.mxu0 %v1746
      %1801 = vmatpush.bf16.msra.mxu0 %v1744
      %1802 = vmatpush.bf16.msra.mxu0 %v1742
      %1803 = vmatpush.bf16.msra.mxu0 %v1740
      %1804 = vmatpush.bf16.msra.mxu0 %v1738
      %1805 = vmatmul.bf16.gmra.mxu0 %v1763
      %v1806 = vpop.f32.mrf.mxu0
      %v1807 = vadd.f32 0.0, %v1806
      %v1808 = vpop.f32.mrf.mxu0
      %v1809 = vadd.f32 0.0, %v1808
      %1810 = vdwg.mxu0
      %1811 = vmatpush.bf16.msra.mxu0 0
      %1812 = vmatpush.bf16.msra.mxu0 0
      %1813 = vmatpush.bf16.msra.mxu0 0
      %1814 = vmatpush.bf16.msra.mxu0 0
      %1815 = vmatpush.bf16.msra.mxu0 0
      %1816 = vmatpush.bf16.msra.mxu0 0
      %1817 = vmatpush.bf16.msra.mxu0 0
      %1818 = vmatpush.bf16.msra.mxu0 %v1754
      %1819 = vmatmul.bf16.gmra.mxu0 %v1767
      %v1820 = vpop.f32.mrf.mxu0
      %v1821 = vadd.f32 %v1807, %v1820
      %v1822 = vpop.f32.mrf.mxu0
      %v1823 = vadd.f32 %v1809, %v1822
      %1824 = vdwg.mxu0
      %v1825 = vadd.f32 %v1793, %v1821
      %1826 = vadd.xlane.f32.xlu0 %v1825
      %v1827 = vpop.xlane.xlu0 %1826
      %v1828 = vadd.f32 %v1795, %v1823
      %1829 = vadd.xlane.f32.xlu0 %v1828
      %v1830 = vpop.xlane.xlu0 %1829
      %v1831 = vmul.f32 %v1827, 0.00390625
      %v1832 = vmul.f32 %v1830, 0.00390625
      %v1833 = vmul.f32 %v1793, %v1793
      %v1834 = vmul.f32 %v1821, %v1821
      %v1835 = vmul.f32 %v1795, %v1795
      %v1836 = vmul.f32 %v1823, %v1823
      %v1837 = vadd.f32 %v1833, %v1834
      %1838 = vadd.xlane.f32.xlu0 %v1837
      %v1839 = vpop.xlane.xlu0 %1838
      %v1840 = vadd.f32 %v1835, %v1836
      %1841 = vadd.xlane.f32.xlu0 %v1840
      %v1842 = vpop.xlane.xlu0 %1841
      %v1843 = vmul.f32 %v1839, 0.00390625
      %v1844 = vmul.f32 %v1842, 0.00390625
      %v1845 = vmul.f32 %v1831, %v1831
      %v1846 = vmul.f32 %v1832, %v1832
      %v1847 = vsub.f32 %v1843, %v1845
      %v1848 = vsub.f32 %v1844, %v1846
      %v1849 = vsub.f32 %v1793, %v1831
      %v1850 = vsub.f32 %v1821, %v1831
      %v1851 = vsub.f32 %v1795, %v1832
      %v1852 = vsub.f32 %v1823, %v1832
      %v1853 = vmax.f32 %v1847, 0.0
      %v1854 = vmax.f32 %v1848, 0.0
      %v1855 = vadd.f32 %v1853, 1e-05
      %v1856 = vadd.f32 %v1854, 1e-05
      %v1857 = vrsqrt.pop %v1855
      %v1858 = vmul.f32 %v1857, %v1855
      %v1859 = vmul.f32 %v1858, %v1857
      %v1860 = vmul.f32 0.5, %v1859
      %v1861 = vsub.f32 1.5, %v1860
      %v1862 = vmul.f32 %v1857, %v1861
      %vm1863 = vweird.f32 %v1855
      %vm1864 = vweird.f32 %v1857
      %vm1865 = vmor %vm1863, %vm1864
      %v1866 = vsel %vm1865, %v1857, %v1862
      %v1867 = vrsqrt.pop %v1856
      %v1868 = vmul.f32 %v1867, %v1856
      %v1869 = vmul.f32 %v1868, %v1867
      %v1870 = vmul.f32 0.5, %v1869
      %v1871 = vsub.f32 1.5, %v1870
      %v1872 = vmul.f32 %v1867, %v1871
      %vm1873 = vweird.f32 %v1856
      %vm1874 = vweird.f32 %v1867
      %vm1875 = vmor %vm1873, %vm1874
      %v1876 = vsel %vm1875, %v1867, %v1872
      %v1877 = vmul.f32 %v1849, %v1866
      %v1878 = vmul.f32 %v1850, %v1866
      %v1879 = vmul.f32 %v1851, %v1876
      %v1880 = vmul.f32 %v1852, %v1876
      %vm1881 = vcmp.ge.f32.partialorder %v1877, 0.0
      %vm1882 = vcmp.ge.f32.partialorder %v1878, 0.0
      %vm1883 = vcmp.ge.f32.partialorder %v1879, 0.0
      %vm1884 = vcmp.ge.f32.partialorder %v1880, 0.0
      %v1885 = vmul.f32 %v1877, 0.2
      %v1886 = vmul.f32 %v1878, 0.2
      %v1887 = vmul.f32 %v1879, 0.2
      %v1888 = vmul.f32 %v1880, 0.2
      %v1889 = vsel %vm1881, %v1877, %v1885
      %v1890 = vsel %vm1882, %v1878, %v1886
      %v1891 = vsel %vm1883, %v1879, %v1887
      %v1892 = vsel %vm1884, %v1880, %v1888
      %1897 = vrot.lane.b32.xlu0 %v1889, 17
      %v1898 = vpop.permute.xlu0 %1897
      %1899 = vrot.lane.b32.xlu0 %v1890, 17
      %v1900 = vpop.permute.xlu0 %1899
      %1901 = vrot.lane.b32.xlu0 %v1891, 17
      %v1902 = vpop.permute.xlu0 %1901
      %1903 = vrot.lane.b32.xlu0 %v1892, 17
      %v1904 = vpop.permute.xlu0 %1903
      %v1905 = vsel %vm909, %v1898, %v1900
      %v1906 = vsel %vm909, %v1902, %v1904
      %v1913 = vsel %vm909, 0.0, %v1898
      %v1914 = vsel %vm909, 0.0, %v1902
      %v1915 = vsel %vm909, %v1900, 0.0
      %v1916 = vsel %vm909, %v1904, 0.0
      %v1917 = vmul.f32 %v1913, %v1198
      %v1918 = vmul.f32 %v1905, %v1199
      %v1919 = vmul.f32 %v1914, %v1198
      %v1920 = vmul.f32 %v1906, %v1199
      %v1921 = vmul.f32 %v1913, %v1209
      %v1922 = vmul.f32 %v1905, %v1212
      %v1923 = vmul.f32 %v1915, %v1211
      %v1924 = vmul.f32 %v1914, %v1209
      %v1925 = vmul.f32 %v1906, %v1212
      %v1926 = vmul.f32 %v1916, %v1211
      %v1927 = vmul.f32 %v1913, %v1222
      %v1928 = vmul.f32 %v1905, %v1225
      %v1929 = vmul.f32 %v1915, %v1224
      %v1930 = vmul.f32 %v1914, %v1222
      %v1931 = vmul.f32 %v1906, %v1225
      %v1932 = vmul.f32 %v1916, %v1224
      %v1933 = vmul.f32 %v1913, %v1233
      %v1934 = vmul.f32 %v1905, %v1236
      %v1935 = vmul.f32 %v1915, %v1235
      %v1936 = vmul.f32 %v1914, %v1233
      %v1937 = vmul.f32 %v1906, %v1236
      %v1938 = vmul.f32 %v1916, %v1235
      %v1939 = vmul.f32 %v1913, %v1244
      %v1940 = vmul.f32 %v1905, %v1247
      %v1941 = vmul.f32 %v1915, %v1246
      %v1942 = vmul.f32 %v1914, %v1244
      %v1943 = vmul.f32 %v1906, %v1247
      %v1944 = vmul.f32 %v1916, %v1246
      %v1945 = vmul.f32 %v1913, %v1255
      %v1946 = vmul.f32 %v1905, %v1258
      %v1947 = vmul.f32 %v1915, %v1257
      %v1948 = vmul.f32 %v1914, %v1255
      %v1949 = vmul.f32 %v1906, %v1258
      %v1950 = vmul.f32 %v1916, %v1257
      %1955 = vrot.lane.b32.xlu0 %v1913, 127
      %v1956 = vpop.permute.xlu0 %1955
      %1957 = vrot.lane.b32.xlu0 %v1905, 127
      %v1958 = vpop.permute.xlu0 %1957
      %1959 = vrot.lane.b32.xlu0 %v1915, 127
      %v1960 = vpop.permute.xlu0 %1959
      %1961 = vrot.lane.b32.xlu0 %v1914, 127
      %v1962 = vpop.permute.xlu0 %1961
      %1963 = vrot.lane.b32.xlu0 %v1906, 127
      %v1964 = vpop.permute.xlu0 %1963
      %1965 = vrot.lane.b32.xlu0 %v1916, 127
      %v1966 = vpop.permute.xlu0 %1965
      %v1967 = vsel %vm997, %v1956, %v1958
      %v1968 = vsel %vm997, %v1958, %v1960
      %v1969 = vsel %vm997, %v1962, %v1964
      %v1970 = vsel %vm997, %v1964, %v1966
      %1981 = vrot.lane.b32.xlu0 %v1921, 126
      %v1982 = vpop.permute.xlu0 %1981
      %1983 = vrot.lane.b32.xlu0 %v1922, 126
      %v1984 = vpop.permute.xlu0 %1983
      %1985 = vrot.lane.b32.xlu0 %v1923, 126
      %v1986 = vpop.permute.xlu0 %1985
      %1987 = vrot.lane.b32.xlu0 %v1924, 126
      %v1988 = vpop.permute.xlu0 %1987
      %1989 = vrot.lane.b32.xlu0 %v1925, 126
      %v1990 = vpop.permute.xlu0 %1989
      %1991 = vrot.lane.b32.xlu0 %v1926, 126
      %v1992 = vpop.permute.xlu0 %1991
      %v1993 = vsel %vm1014, %v1982, %v1984
      %v1994 = vsel %vm1014, %v1984, %v1986
      %v1995 = vsel %vm1014, %v1988, %v1990
      %v1996 = vsel %vm1014, %v1990, %v1992
      %2007 = vrot.lane.b32.xlu0 %v1927, 112
      %v2008 = vpop.permute.xlu0 %2007
      %2009 = vrot.lane.b32.xlu0 %v1928, 112
      %v2010 = vpop.permute.xlu0 %2009
      %2011 = vrot.lane.b32.xlu0 %v1929, 112
      %v2012 = vpop.permute.xlu0 %2011
      %2013 = vrot.lane.b32.xlu0 %v1930, 112
      %v2014 = vpop.permute.xlu0 %2013
      %2015 = vrot.lane.b32.xlu0 %v1931, 112
      %v2016 = vpop.permute.xlu0 %2015
      %2017 = vrot.lane.b32.xlu0 %v1932, 112
      %v2018 = vpop.permute.xlu0 %2017
      %v2019 = vsel %vm1031, %v2008, %v2010
      %v2020 = vsel %vm1031, %v2010, %v2012
      %v2021 = vsel %vm1031, %v2014, %v2016
      %v2022 = vsel %vm1031, %v2016, %v2018
      %2027 = vrot.lane.b32.xlu0 %v1913, 111
      %v2028 = vpop.permute.xlu0 %2027
      %2029 = vrot.lane.b32.xlu0 %v1905, 111
      %v2030 = vpop.permute.xlu0 %2029
      %2031 = vrot.lane.b32.xlu0 %v1915, 111
      %v2032 = vpop.permute.xlu0 %2031
      %2033 = vrot.lane.b32.xlu0 %v1914, 111
      %v2034 = vpop.permute.xlu0 %2033
      %2035 = vrot.lane.b32.xlu0 %v1906, 111
      %v2036 = vpop.permute.xlu0 %2035
      %2037 = vrot.lane.b32.xlu0 %v1916, 111
      %v2038 = vpop.permute.xlu0 %2037
      %v2039 = vsel %vm1045, %v2028, %v2030
      %v2040 = vsel %vm1045, %v2030, %v2032
      %v2041 = vsel %vm1045, %v2034, %v2036
      %v2042 = vsel %vm1045, %v2036, %v2038
      %2053 = vrot.lane.b32.xlu0 %v1933, 110
      %v2054 = vpop.permute.xlu0 %2053
      %2055 = vrot.lane.b32.xlu0 %v1934, 110
      %v2056 = vpop.permute.xlu0 %2055
      %2057 = vrot.lane.b32.xlu0 %v1935, 110
      %v2058 = vpop.permute.xlu0 %2057
      %2059 = vrot.lane.b32.xlu0 %v1936, 110
      %v2060 = vpop.permute.xlu0 %2059
      %2061 = vrot.lane.b32.xlu0 %v1937, 110
      %v2062 = vpop.permute.xlu0 %2061
      %2063 = vrot.lane.b32.xlu0 %v1938, 110
      %v2064 = vpop.permute.xlu0 %2063
      %v2065 = vsel %vm1062, %v2054, %v2056
      %v2066 = vsel %vm1062, %v2056, %v2058
      %v2067 = vsel %vm1062, %v2060, %v2062
      %v2068 = vsel %vm1062, %v2062, %v2064
      %2079 = vrot.lane.b32.xlu0 %v1939, 96
      %v2080 = vpop.permute.xlu0 %2079
      %2081 = vrot.lane.b32.xlu0 %v1940, 96
      %v2082 = vpop.permute.xlu0 %2081
      %2083 = vrot.lane.b32.xlu0 %v1941, 96
      %v2084 = vpop.permute.xlu0 %2083
      %2085 = vrot.lane.b32.xlu0 %v1942, 96
      %v2086 = vpop.permute.xlu0 %2085
      %2087 = vrot.lane.b32.xlu0 %v1943, 96
      %v2088 = vpop.permute.xlu0 %2087
      %2089 = vrot.lane.b32.xlu0 %v1944, 96
      %v2090 = vpop.permute.xlu0 %2089
      %v2091 = vsel %vm1079, %v2080, %v2082
      %v2092 = vsel %vm1079, %v2082, %v2084
      %v2093 = vsel %vm1079, %v2086, %v2088
      %v2094 = vsel %vm1079, %v2088, %v2090
      %2099 = vrot.lane.b32.xlu0 %v1913, 95
      %v2100 = vpop.permute.xlu0 %2099
      %2101 = vrot.lane.b32.xlu0 %v1905, 95
      %v2102 = vpop.permute.xlu0 %2101
      %2103 = vrot.lane.b32.xlu0 %v1915, 95
      %v2104 = vpop.permute.xlu0 %2103
      %2105 = vrot.lane.b32.xlu0 %v1914, 95
      %v2106 = vpop.permute.xlu0 %2105
      %2107 = vrot.lane.b32.xlu0 %v1906, 95
      %v2108 = vpop.permute.xlu0 %2107
      %2109 = vrot.lane.b32.xlu0 %v1916, 95
      %v2110 = vpop.permute.xlu0 %2109
      %v2111 = vsel %vm1093, %v2100, %v2102
      %v2112 = vsel %vm1093, %v2102, %v2104
      %v2113 = vsel %vm1093, %v2106, %v2108
      %v2114 = vsel %vm1093, %v2108, %v2110
      %2125 = vrot.lane.b32.xlu0 %v1945, 94
      %v2126 = vpop.permute.xlu0 %2125
      %2127 = vrot.lane.b32.xlu0 %v1946, 94
      %v2128 = vpop.permute.xlu0 %2127
      %2129 = vrot.lane.b32.xlu0 %v1947, 94
      %v2130 = vpop.permute.xlu0 %2129
      %2131 = vrot.lane.b32.xlu0 %v1948, 94
      %v2132 = vpop.permute.xlu0 %2131
      %2133 = vrot.lane.b32.xlu0 %v1949, 94
      %v2134 = vpop.permute.xlu0 %2133
      %2135 = vrot.lane.b32.xlu0 %v1950, 94
      %v2136 = vpop.permute.xlu0 %2135
      %v2137 = vsel %vm1107, %v2126, %v2128
      %v2138 = vsel %vm1107, %v2128, %v2130
      %v2139 = vsel %vm1107, %v2132, %v2134
      %v2140 = vsel %vm1107, %v2134, %v2136
      %v2145 = vpack.c.bf16 %v1919, %v1917
      %v2146 = vpack.c.bf16 %v1920, %v1918
      %v2147 = vpack.c.bf16 %v1969, %v1967
      %v2148 = vpack.c.bf16 %v1970, %v1968
      %v2149 = vpack.c.bf16 %v1995, %v1993
      %v2150 = vpack.c.bf16 %v1996, %v1994
      %v2151 = vpack.c.bf16 %v2021, %v2019
      %v2152 = vpack.c.bf16 %v2022, %v2020
      %v2153 = vpack.c.bf16 %v2041, %v2039
      %v2154 = vpack.c.bf16 %v2042, %v2040
      %v2155 = vpack.c.bf16 %v2067, %v2065
      %v2156 = vpack.c.bf16 %v2068, %v2066
      %v2157 = vpack.c.bf16 %v2093, %v2091
      %v2158 = vpack.c.bf16 %v2094, %v2092
      %v2159 = vpack.c.bf16 %v2113, %v2111
      %v2160 = vpack.c.bf16 %v2114, %v2112
      %v2161 = vpack.c.bf16 %v2139, %v2137
      %v2162 = vpack.c.bf16 %v2140, %v2138
      %v2163 = vld [vmem:[%s23] sm:$0xff]
      %v2164 = vld [vmem:[%s23 + $0x8] sm:$0xff]
      %v2167 = vunpack.c.l.b16 %v2163
      %v2168 = vunpack.c.h.b16 %v2163
      %v2169 = vunpack.c.l.b16 %v2164
      %v2170 = vunpack.c.h.b16 %v2164
      %v2171 = vpack.c.b16 %v2169, %v2167
      %v2172 = vpack.c.b16 %v2170, %v2168
      %v2175 = vsel %vm942, %v2172, 0
      %2177 = vmatpush.bf16.msra.mxu0 %v2159
      %2178 = vmatpush.bf16.msra.mxu0 %v2157
      %2179 = vmatpush.bf16.msra.mxu0 %v2155
      %2180 = vmatpush.bf16.msra.mxu0 %v2153
      %2181 = vmatpush.bf16.msra.mxu0 %v2151
      %2182 = vmatpush.bf16.msra.mxu0 %v2149
      %2183 = vmatpush.bf16.msra.mxu0 %v2147
      %2184 = vmatpush.bf16.msra.mxu0 %v2145
      %2185 = vmatmul.bf16.gmra.mxu0 %v2171
      %v2186 = vpop.f32.mrf.mxu0
      %v2187 = vadd.f32 0.0, %v2186
      %v2188 = vpop.f32.mrf.mxu0
      %v2189 = vadd.f32 0.0, %v2188
      %2190 = vdwg.mxu0
      %2191 = vmatpush.bf16.msra.mxu0 0
      %2192 = vmatpush.bf16.msra.mxu0 0
      %2193 = vmatpush.bf16.msra.mxu0 0
      %2194 = vmatpush.bf16.msra.mxu0 0
      %2195 = vmatpush.bf16.msra.mxu0 0
      %2196 = vmatpush.bf16.msra.mxu0 0
      %2197 = vmatpush.bf16.msra.mxu0 0
      %2198 = vmatpush.bf16.msra.mxu0 %v2161
      %2199 = vmatmul.bf16.gmra.mxu0 %v2175
      %v2200 = vpop.f32.mrf.mxu0
      %v2201 = vadd.f32 %v2187, %v2200
      %v2202 = vpop.f32.mrf.mxu0
      %v2203 = vadd.f32 %v2189, %v2202
      %2204 = vdwg.mxu0
      %2205 = vmatpush.bf16.msra.mxu0 %v2160
      %2206 = vmatpush.bf16.msra.mxu0 %v2158
      %2207 = vmatpush.bf16.msra.mxu0 %v2156
      %2208 = vmatpush.bf16.msra.mxu0 %v2154
      %2209 = vmatpush.bf16.msra.mxu0 %v2152
      %2210 = vmatpush.bf16.msra.mxu0 %v2150
      %2211 = vmatpush.bf16.msra.mxu0 %v2148
      %2212 = vmatpush.bf16.msra.mxu0 %v2146
      %2213 = vmatmul.bf16.gmra.mxu0 %v2171
      %v2214 = vpop.f32.mrf.mxu0
      %v2215 = vadd.f32 0.0, %v2214
      %v2216 = vpop.f32.mrf.mxu0
      %v2217 = vadd.f32 0.0, %v2216
      %2218 = vdwg.mxu0
      %2219 = vmatpush.bf16.msra.mxu0 0
      %2220 = vmatpush.bf16.msra.mxu0 0
      %2221 = vmatpush.bf16.msra.mxu0 0
      %2222 = vmatpush.bf16.msra.mxu0 0
      %2223 = vmatpush.bf16.msra.mxu0 0
      %2224 = vmatpush.bf16.msra.mxu0 0
      %2225 = vmatpush.bf16.msra.mxu0 0
      %2226 = vmatpush.bf16.msra.mxu0 %v2162
      %2227 = vmatmul.bf16.gmra.mxu0 %v2175
      %v2228 = vpop.f32.mrf.mxu0
      %v2229 = vadd.f32 %v2215, %v2228
      %v2230 = vpop.f32.mrf.mxu0
      %v2231 = vadd.f32 %v2217, %v2230
      %2232 = vdwg.mxu0
      %v2233 = vadd.f32 %v2201, %v2229
      %2234 = vadd.xlane.f32.xlu0 %v2233
      %v2235 = vpop.xlane.xlu0 %2234
      %v2236 = vadd.f32 %v2203, %v2231
      %2237 = vadd.xlane.f32.xlu0 %v2236
      %v2238 = vpop.xlane.xlu0 %2237
      %v2239 = vmul.f32 %v2235, 0.00390625
      %v2240 = vmul.f32 %v2238, 0.00390625
      %v2241 = vmul.f32 %v2201, %v2201
      %v2242 = vmul.f32 %v2229, %v2229
      %v2243 = vmul.f32 %v2203, %v2203
      %v2244 = vmul.f32 %v2231, %v2231
      %v2245 = vadd.f32 %v2241, %v2242
      %2246 = vadd.xlane.f32.xlu0 %v2245
      %v2247 = vpop.xlane.xlu0 %2246
      %v2248 = vadd.f32 %v2243, %v2244
      %2249 = vadd.xlane.f32.xlu0 %v2248
      %v2250 = vpop.xlane.xlu0 %2249
      %v2251 = vmul.f32 %v2247, 0.00390625
      %v2252 = vmul.f32 %v2250, 0.00390625
      %v2253 = vmul.f32 %v2239, %v2239
      %v2254 = vmul.f32 %v2240, %v2240
      %v2255 = vsub.f32 %v2251, %v2253
      %v2256 = vsub.f32 %v2252, %v2254
      %v2257 = vsub.f32 %v2201, %v2239
      %v2258 = vsub.f32 %v2229, %v2239
      %v2259 = vsub.f32 %v2203, %v2240
      %v2260 = vsub.f32 %v2231, %v2240
      %v2261 = vmax.f32 %v2255, 0.0
      %v2262 = vmax.f32 %v2256, 0.0
      %v2263 = vadd.f32 %v2261, 1e-05
      %v2264 = vadd.f32 %v2262, 1e-05
      %v2265 = vrsqrt.pop %v2263
      %v2266 = vmul.f32 %v2265, %v2263
      %v2267 = vmul.f32 %v2266, %v2265
      %v2268 = vmul.f32 0.5, %v2267
      %v2269 = vsub.f32 1.5, %v2268
      %v2270 = vmul.f32 %v2265, %v2269
      %vm2271 = vweird.f32 %v2263
      %vm2272 = vweird.f32 %v2265
      %vm2273 = vmor %vm2271, %vm2272
      %v2274 = vsel %vm2273, %v2265, %v2270
      %v2275 = vrsqrt.pop %v2264
      %v2276 = vmul.f32 %v2275, %v2264
      %v2277 = vmul.f32 %v2276, %v2275
      %v2278 = vmul.f32 0.5, %v2277
      %v2279 = vsub.f32 1.5, %v2278
      %v2280 = vmul.f32 %v2275, %v2279
      %vm2281 = vweird.f32 %v2264
      %vm2282 = vweird.f32 %v2275
      %vm2283 = vmor %vm2281, %vm2282
      %v2284 = vsel %vm2283, %v2275, %v2280
      %v2285 = vmul.f32 %v2257, %v2274
      %v2286 = vmul.f32 %v2258, %v2274
      %v2287 = vmul.f32 %v2259, %v2284
      %v2288 = vmul.f32 %v2260, %v2284
      %vm2289 = vcmp.ge.f32.partialorder %v2285, 0.0
      %vm2290 = vcmp.ge.f32.partialorder %v2286, 0.0
      %vm2291 = vcmp.ge.f32.partialorder %v2287, 0.0
      %vm2292 = vcmp.ge.f32.partialorder %v2288, 0.0
      %v2293 = vmul.f32 %v2285, 0.2
      %v2294 = vmul.f32 %v2286, 0.2
      %v2295 = vmul.f32 %v2287, 0.2
      %v2296 = vmul.f32 %v2288, 0.2
      %v2297 = vsel %vm2289, %v2285, %v2293
      %v2298 = vsel %vm2290, %v2286, %v2294
      %v2299 = vsel %vm2291, %v2287, %v2295
      %v2300 = vsel %vm2292, %v2288, %v2296
      %2305 = vrot.lane.b32.xlu0 %v2297, 17
      %v2306 = vpop.permute.xlu0 %2305
      %2307 = vrot.lane.b32.xlu0 %v2298, 17
      %v2308 = vpop.permute.xlu0 %2307
      %2309 = vrot.lane.b32.xlu0 %v2299, 17
      %v2310 = vpop.permute.xlu0 %2309
      %2311 = vrot.lane.b32.xlu0 %v2300, 17
      %v2312 = vpop.permute.xlu0 %2311
      %v2313 = vsel %vm909, %v2306, %v2308
      %v2314 = vsel %vm909, %v2310, %v2312
      %v2321 = vsel %vm909, 0.0, %v2306
      %v2322 = vsel %vm909, 0.0, %v2310
      %v2323 = vsel %vm909, %v2308, 0.0
      %v2324 = vsel %vm909, %v2312, 0.0
      %v2325 = vmul.f32 %v2321, %v1198
      %v2326 = vmul.f32 %v2313, %v1199
      %v2327 = vmul.f32 %v2322, %v1198
      %v2328 = vmul.f32 %v2314, %v1199
      %v2329 = vmul.f32 %v2321, %v1209
      %v2330 = vmul.f32 %v2313, %v1212
      %v2331 = vmul.f32 %v2323, %v1211
      %v2332 = vmul.f32 %v2322, %v1209
      %v2333 = vmul.f32 %v2314, %v1212
      %v2334 = vmul.f32 %v2324, %v1211
      %v2335 = vmul.f32 %v2321, %v1222
      %v2336 = vmul.f32 %v2313, %v1225
      %v2337 = vmul.f32 %v2323, %v1224
      %v2338 = vmul.f32 %v2322, %v1222
      %v2339 = vmul.f32 %v2314, %v1225
      %v2340 = vmul.f32 %v2324, %v1224
      %v2341 = vmul.f32 %v2321, %v1233
      %v2342 = vmul.f32 %v2313, %v1236
      %v2343 = vmul.f32 %v2323, %v1235
      %v2344 = vmul.f32 %v2322, %v1233
      %v2345 = vmul.f32 %v2314, %v1236
      %v2346 = vmul.f32 %v2324, %v1235
      %v2347 = vmul.f32 %v2321, %v1244
      %v2348 = vmul.f32 %v2313, %v1247
      %v2349 = vmul.f32 %v2323, %v1246
      %v2350 = vmul.f32 %v2322, %v1244
      %v2351 = vmul.f32 %v2314, %v1247
      %v2352 = vmul.f32 %v2324, %v1246
      %v2353 = vmul.f32 %v2321, %v1255
      %v2354 = vmul.f32 %v2313, %v1258
      %v2355 = vmul.f32 %v2323, %v1257
      %v2356 = vmul.f32 %v2322, %v1255
      %v2357 = vmul.f32 %v2314, %v1258
      %v2358 = vmul.f32 %v2324, %v1257
      %2363 = vrot.lane.b32.xlu0 %v2321, 127
      %v2364 = vpop.permute.xlu0 %2363
      %2365 = vrot.lane.b32.xlu0 %v2313, 127
      %v2366 = vpop.permute.xlu0 %2365
      %2367 = vrot.lane.b32.xlu0 %v2323, 127
      %v2368 = vpop.permute.xlu0 %2367
      %2369 = vrot.lane.b32.xlu0 %v2322, 127
      %v2370 = vpop.permute.xlu0 %2369
      %2371 = vrot.lane.b32.xlu0 %v2314, 127
      %v2372 = vpop.permute.xlu0 %2371
      %2373 = vrot.lane.b32.xlu0 %v2324, 127
      %v2374 = vpop.permute.xlu0 %2373
      %v2375 = vsel %vm997, %v2364, %v2366
      %v2376 = vsel %vm997, %v2366, %v2368
      %v2377 = vsel %vm997, %v2370, %v2372
      %v2378 = vsel %vm997, %v2372, %v2374
      %2389 = vrot.lane.b32.xlu0 %v2329, 126
      %v2390 = vpop.permute.xlu0 %2389
      %2391 = vrot.lane.b32.xlu0 %v2330, 126
      %v2392 = vpop.permute.xlu0 %2391
      %2393 = vrot.lane.b32.xlu0 %v2331, 126
      %v2394 = vpop.permute.xlu0 %2393
      %2395 = vrot.lane.b32.xlu0 %v2332, 126
      %v2396 = vpop.permute.xlu0 %2395
      %2397 = vrot.lane.b32.xlu0 %v2333, 126
      %v2398 = vpop.permute.xlu0 %2397
      %2399 = vrot.lane.b32.xlu0 %v2334, 126
      %v2400 = vpop.permute.xlu0 %2399
      %v2401 = vsel %vm1014, %v2390, %v2392
      %v2402 = vsel %vm1014, %v2392, %v2394
      %v2403 = vsel %vm1014, %v2396, %v2398
      %v2404 = vsel %vm1014, %v2398, %v2400
      %2415 = vrot.lane.b32.xlu0 %v2335, 112
      %v2416 = vpop.permute.xlu0 %2415
      %2417 = vrot.lane.b32.xlu0 %v2336, 112
      %v2418 = vpop.permute.xlu0 %2417
      %2419 = vrot.lane.b32.xlu0 %v2337, 112
      %v2420 = vpop.permute.xlu0 %2419
      %2421 = vrot.lane.b32.xlu0 %v2338, 112
      %v2422 = vpop.permute.xlu0 %2421
      %2423 = vrot.lane.b32.xlu0 %v2339, 112
      %v2424 = vpop.permute.xlu0 %2423
      %2425 = vrot.lane.b32.xlu0 %v2340, 112
      %v2426 = vpop.permute.xlu0 %2425
      %v2427 = vsel %vm1031, %v2416, %v2418
      %v2428 = vsel %vm1031, %v2418, %v2420
      %v2429 = vsel %vm1031, %v2422, %v2424
      %v2430 = vsel %vm1031, %v2424, %v2426
      %2435 = vrot.lane.b32.xlu0 %v2321, 111
      %v2436 = vpop.permute.xlu0 %2435
      %2437 = vrot.lane.b32.xlu0 %v2313, 111
      %v2438 = vpop.permute.xlu0 %2437
      %2439 = vrot.lane.b32.xlu0 %v2323, 111
      %v2440 = vpop.permute.xlu0 %2439
      %2441 = vrot.lane.b32.xlu0 %v2322, 111
      %v2442 = vpop.permute.xlu0 %2441
      %2443 = vrot.lane.b32.xlu0 %v2314, 111
      %v2444 = vpop.permute.xlu0 %2443
      %2445 = vrot.lane.b32.xlu0 %v2324, 111
      %v2446 = vpop.permute.xlu0 %2445
      %v2447 = vsel %vm1045, %v2436, %v2438
      %v2448 = vsel %vm1045, %v2438, %v2440
      %v2449 = vsel %vm1045, %v2442, %v2444
      %v2450 = vsel %vm1045, %v2444, %v2446
      %2461 = vrot.lane.b32.xlu0 %v2341, 110
      %v2462 = vpop.permute.xlu0 %2461
      %2463 = vrot.lane.b32.xlu0 %v2342, 110
      %v2464 = vpop.permute.xlu0 %2463
      %2465 = vrot.lane.b32.xlu0 %v2343, 110
      %v2466 = vpop.permute.xlu0 %2465
      %2467 = vrot.lane.b32.xlu0 %v2344, 110
      %v2468 = vpop.permute.xlu0 %2467
      %2469 = vrot.lane.b32.xlu0 %v2345, 110
      %v2470 = vpop.permute.xlu0 %2469
      %2471 = vrot.lane.b32.xlu0 %v2346, 110
      %v2472 = vpop.permute.xlu0 %2471
      %v2473 = vsel %vm1062, %v2462, %v2464
      %v2474 = vsel %vm1062, %v2464, %v2466
      %v2475 = vsel %vm1062, %v2468, %v2470
      %v2476 = vsel %vm1062, %v2470, %v2472
      %2487 = vrot.lane.b32.xlu0 %v2347, 96
      %v2488 = vpop.permute.xlu0 %2487
      %2489 = vrot.lane.b32.xlu0 %v2348, 96
      %v2490 = vpop.permute.xlu0 %2489
      %2491 = vrot.lane.b32.xlu0 %v2349, 96
      %v2492 = vpop.permute.xlu0 %2491
      %2493 = vrot.lane.b32.xlu0 %v2350, 96
      %v2494 = vpop.permute.xlu0 %2493
      %2495 = vrot.lane.b32.xlu0 %v2351, 96
      %v2496 = vpop.permute.xlu0 %2495
      %2497 = vrot.lane.b32.xlu0 %v2352, 96
      %v2498 = vpop.permute.xlu0 %2497
      %v2499 = vsel %vm1079, %v2488, %v2490
      %v2500 = vsel %vm1079, %v2490, %v2492
      %v2501 = vsel %vm1079, %v2494, %v2496
      %v2502 = vsel %vm1079, %v2496, %v2498
      %2507 = vrot.lane.b32.xlu0 %v2321, 95
      %v2508 = vpop.permute.xlu0 %2507
      %2509 = vrot.lane.b32.xlu0 %v2313, 95
      %v2510 = vpop.permute.xlu0 %2509
      %2511 = vrot.lane.b32.xlu0 %v2323, 95
      %v2512 = vpop.permute.xlu0 %2511
      %2513 = vrot.lane.b32.xlu0 %v2322, 95
      %v2514 = vpop.permute.xlu0 %2513
      %2515 = vrot.lane.b32.xlu0 %v2314, 95
      %v2516 = vpop.permute.xlu0 %2515
      %2517 = vrot.lane.b32.xlu0 %v2324, 95
      %v2518 = vpop.permute.xlu0 %2517
      %v2519 = vsel %vm1093, %v2508, %v2510
      %v2520 = vsel %vm1093, %v2510, %v2512
      %v2521 = vsel %vm1093, %v2514, %v2516
      %v2522 = vsel %vm1093, %v2516, %v2518
      %2533 = vrot.lane.b32.xlu0 %v2353, 94
      %v2534 = vpop.permute.xlu0 %2533
      %2535 = vrot.lane.b32.xlu0 %v2354, 94
      %v2536 = vpop.permute.xlu0 %2535
      %2537 = vrot.lane.b32.xlu0 %v2355, 94
      %v2538 = vpop.permute.xlu0 %2537
      %2539 = vrot.lane.b32.xlu0 %v2356, 94
      %v2540 = vpop.permute.xlu0 %2539
      %2541 = vrot.lane.b32.xlu0 %v2357, 94
      %v2542 = vpop.permute.xlu0 %2541
      %2543 = vrot.lane.b32.xlu0 %v2358, 94
      %v2544 = vpop.permute.xlu0 %2543
      %v2545 = vsel %vm1107, %v2534, %v2536
      %v2546 = vsel %vm1107, %v2536, %v2538
      %v2547 = vsel %vm1107, %v2540, %v2542
      %v2548 = vsel %vm1107, %v2542, %v2544
      %v2553 = vpack.c.bf16 %v2327, %v2325
      %v2554 = vpack.c.bf16 %v2328, %v2326
      %v2555 = vpack.c.bf16 %v2377, %v2375
      %v2556 = vpack.c.bf16 %v2378, %v2376
      %v2557 = vpack.c.bf16 %v2403, %v2401
      %v2558 = vpack.c.bf16 %v2404, %v2402
      %v2559 = vpack.c.bf16 %v2429, %v2427
      %v2560 = vpack.c.bf16 %v2430, %v2428
      %v2561 = vpack.c.bf16 %v2449, %v2447
      %v2562 = vpack.c.bf16 %v2450, %v2448
      %v2563 = vpack.c.bf16 %v2475, %v2473
      %v2564 = vpack.c.bf16 %v2476, %v2474
      %v2565 = vpack.c.bf16 %v2501, %v2499
      %v2566 = vpack.c.bf16 %v2502, %v2500
      %v2567 = vpack.c.bf16 %v2521, %v2519
      %v2568 = vpack.c.bf16 %v2522, %v2520
      %v2569 = vpack.c.bf16 %v2547, %v2545
      %v2570 = vpack.c.bf16 %v2548, %v2546
      %v2571 = vld [vmem:[%s25] sm:$0xff]
      %v2572 = vld [vmem:[%s25 + $0x8] sm:$0xff]
      %v2575 = vunpack.c.l.b16 %v2571
      %v2576 = vunpack.c.h.b16 %v2571
      %v2577 = vunpack.c.l.b16 %v2572
      %v2578 = vunpack.c.h.b16 %v2572
      %v2579 = vpack.c.b16 %v2577, %v2575
      %v2580 = vpack.c.b16 %v2578, %v2576
      %v2583 = vsel %vm942, %v2580, 0
      %2585 = vmatpush.bf16.msra.mxu0 %v2567
      %2586 = vmatpush.bf16.msra.mxu0 %v2565
      %2587 = vmatpush.bf16.msra.mxu0 %v2563
      %2588 = vmatpush.bf16.msra.mxu0 %v2561
      %2589 = vmatpush.bf16.msra.mxu0 %v2559
      %2590 = vmatpush.bf16.msra.mxu0 %v2557
      %2591 = vmatpush.bf16.msra.mxu0 %v2555
      %2592 = vmatpush.bf16.msra.mxu0 %v2553
      %2593 = vmatmul.bf16.gmra.mxu0 %v2579
      %v2594 = vpop.f32.mrf.mxu0
      %v2595 = vadd.f32 0.0, %v2594
      %v2596 = vpop.f32.mrf.mxu0
      %v2597 = vadd.f32 0.0, %v2596
      %2598 = vdwg.mxu0
      %2599 = vmatpush.bf16.msra.mxu0 0
      %2600 = vmatpush.bf16.msra.mxu0 0
      %2601 = vmatpush.bf16.msra.mxu0 0
      %2602 = vmatpush.bf16.msra.mxu0 0
      %2603 = vmatpush.bf16.msra.mxu0 0
      %2604 = vmatpush.bf16.msra.mxu0 0
      %2605 = vmatpush.bf16.msra.mxu0 0
      %2606 = vmatpush.bf16.msra.mxu0 %v2569
      %2607 = vmatmul.bf16.gmra.mxu0 %v2583
      %v2608 = vpop.f32.mrf.mxu0
      %v2609 = vadd.f32 %v2595, %v2608
      %v2610 = vpop.f32.mrf.mxu0
      %v2611 = vadd.f32 %v2597, %v2610
      %2612 = vdwg.mxu0
      %2613 = vmatpush.bf16.msra.mxu0 %v2568
      %2614 = vmatpush.bf16.msra.mxu0 %v2566
      %2615 = vmatpush.bf16.msra.mxu0 %v2564
      %2616 = vmatpush.bf16.msra.mxu0 %v2562
      %2617 = vmatpush.bf16.msra.mxu0 %v2560
      %2618 = vmatpush.bf16.msra.mxu0 %v2558
      %2619 = vmatpush.bf16.msra.mxu0 %v2556
      %2620 = vmatpush.bf16.msra.mxu0 %v2554
      %2621 = vmatmul.bf16.gmra.mxu0 %v2579
      %v2622 = vpop.f32.mrf.mxu0
      %v2623 = vadd.f32 0.0, %v2622
      %v2624 = vpop.f32.mrf.mxu0
      %v2625 = vadd.f32 0.0, %v2624
      %2626 = vdwg.mxu0
      %2627 = vmatpush.bf16.msra.mxu0 0
      %2628 = vmatpush.bf16.msra.mxu0 0
      %2629 = vmatpush.bf16.msra.mxu0 0
      %2630 = vmatpush.bf16.msra.mxu0 0
      %2631 = vmatpush.bf16.msra.mxu0 0
      %2632 = vmatpush.bf16.msra.mxu0 0
      %2633 = vmatpush.bf16.msra.mxu0 0
      %2634 = vmatpush.bf16.msra.mxu0 %v2570
      %2635 = vmatmul.bf16.gmra.mxu0 %v2583
      %v2636 = vpop.f32.mrf.mxu0
      %v2637 = vadd.f32 %v2623, %v2636
      %v2638 = vpop.f32.mrf.mxu0
      %v2639 = vadd.f32 %v2625, %v2638
      %2640 = vdwg.mxu0
      %v2641 = vadd.f32 %v2609, %v2637
      %2642 = vadd.xlane.f32.xlu0 %v2641
      %v2643 = vpop.xlane.xlu0 %2642
      %v2644 = vadd.f32 %v2611, %v2639
      %2645 = vadd.xlane.f32.xlu0 %v2644
      %v2646 = vpop.xlane.xlu0 %2645
      %v2647 = vmul.f32 %v2643, 0.00390625
      %v2648 = vmul.f32 %v2646, 0.00390625
      %v2649 = vmul.f32 %v2609, %v2609
      %v2650 = vmul.f32 %v2637, %v2637
      %v2651 = vmul.f32 %v2611, %v2611
      %v2652 = vmul.f32 %v2639, %v2639
      %v2653 = vadd.f32 %v2649, %v2650
      %2654 = vadd.xlane.f32.xlu0 %v2653
      %v2655 = vpop.xlane.xlu0 %2654
      %v2656 = vadd.f32 %v2651, %v2652
      %2657 = vadd.xlane.f32.xlu0 %v2656
      %v2658 = vpop.xlane.xlu0 %2657
      %v2659 = vmul.f32 %v2655, 0.00390625
      %v2660 = vmul.f32 %v2658, 0.00390625
      %v2661 = vmul.f32 %v2647, %v2647
      %v2662 = vmul.f32 %v2648, %v2648
      %v2663 = vsub.f32 %v2659, %v2661
      %v2664 = vsub.f32 %v2660, %v2662
      %v2665 = vsub.f32 %v2609, %v2647
      %v2666 = vsub.f32 %v2637, %v2647
      %v2667 = vsub.f32 %v2611, %v2648
      %v2668 = vsub.f32 %v2639, %v2648
      %v2669 = vmax.f32 %v2663, 0.0
      %v2670 = vmax.f32 %v2664, 0.0
      %v2671 = vadd.f32 %v2669, 1e-05
      %v2672 = vadd.f32 %v2670, 1e-05
      %v2673 = vrsqrt.pop %v2671
      %v2674 = vmul.f32 %v2673, %v2671
      %v2675 = vmul.f32 %v2674, %v2673
      %v2676 = vmul.f32 0.5, %v2675
      %v2677 = vsub.f32 1.5, %v2676
      %v2678 = vmul.f32 %v2673, %v2677
      %vm2679 = vweird.f32 %v2671
      %vm2680 = vweird.f32 %v2673
      %vm2681 = vmor %vm2679, %vm2680
      %v2682 = vsel %vm2681, %v2673, %v2678
      %v2683 = vrsqrt.pop %v2672
      %v2684 = vmul.f32 %v2683, %v2672
      %v2685 = vmul.f32 %v2684, %v2683
      %v2686 = vmul.f32 0.5, %v2685
      %v2687 = vsub.f32 1.5, %v2686
      %v2688 = vmul.f32 %v2683, %v2687
      %vm2689 = vweird.f32 %v2672
      %vm2690 = vweird.f32 %v2683
      %vm2691 = vmor %vm2689, %vm2690
      %v2692 = vsel %vm2691, %v2683, %v2688
      %v2693 = vmul.f32 %v2665, %v2682
      %v2694 = vmul.f32 %v2666, %v2682
      %v2695 = vmul.f32 %v2667, %v2692
      %v2696 = vmul.f32 %v2668, %v2692
      %vm2697 = vcmp.ge.f32.partialorder %v2693, 0.0
      %vm2698 = vcmp.ge.f32.partialorder %v2694, 0.0
      %vm2699 = vcmp.ge.f32.partialorder %v2695, 0.0
      %vm2700 = vcmp.ge.f32.partialorder %v2696, 0.0
      %v2701 = vmul.f32 %v2693, 0.2
      %v2702 = vmul.f32 %v2694, 0.2
      %v2703 = vmul.f32 %v2695, 0.2
      %v2704 = vmul.f32 %v2696, 0.2
      %v2705 = vsel %vm2697, %v2693, %v2701
      %v2706 = vsel %vm2698, %v2694, %v2702
      %v2707 = vsel %vm2699, %v2695, %v2703
      %v2708 = vsel %vm2700, %v2696, %v2704
      %2713 = vrot.lane.b32.xlu0 %v2705, 17
      %v2714 = vpop.permute.xlu0 %2713
      %2715 = vrot.lane.b32.xlu0 %v2706, 17
      %v2716 = vpop.permute.xlu0 %2715
      %2717 = vrot.lane.b32.xlu0 %v2707, 17
      %v2718 = vpop.permute.xlu0 %2717
      %2719 = vrot.lane.b32.xlu0 %v2708, 17
      %v2720 = vpop.permute.xlu0 %2719
      %v2721 = vsel %vm909, %v2714, %v2716
      %v2722 = vsel %vm909, %v2718, %v2720
      %v2729 = vsel %vm909, 0.0, %v2714
      %v2730 = vsel %vm909, 0.0, %v2718
      %v2731 = vsel %vm909, %v2716, 0.0
      %v2732 = vsel %vm909, %v2720, 0.0
      %v2733 = vmul.f32 %v2729, %v1198
      %v2734 = vmul.f32 %v2721, %v1199
      %v2735 = vmul.f32 %v2730, %v1198
      %v2736 = vmul.f32 %v2722, %v1199
      %v2737 = vmul.f32 %v2729, %v1209
      %v2738 = vmul.f32 %v2721, %v1212
      %v2739 = vmul.f32 %v2731, %v1211
      %v2740 = vmul.f32 %v2730, %v1209
      %v2741 = vmul.f32 %v2722, %v1212
      %v2742 = vmul.f32 %v2732, %v1211
      %v2743 = vmul.f32 %v2729, %v1222
      %v2744 = vmul.f32 %v2721, %v1225
      %v2745 = vmul.f32 %v2731, %v1224
      %v2746 = vmul.f32 %v2730, %v1222
      %v2747 = vmul.f32 %v2722, %v1225
      %v2748 = vmul.f32 %v2732, %v1224
      %v2749 = vmul.f32 %v2729, %v1233
      %v2750 = vmul.f32 %v2721, %v1236
      %v2751 = vmul.f32 %v2731, %v1235
      %v2752 = vmul.f32 %v2730, %v1233
      %v2753 = vmul.f32 %v2722, %v1236
      %v2754 = vmul.f32 %v2732, %v1235
      %v2755 = vmul.f32 %v2729, %v1244
      %v2756 = vmul.f32 %v2721, %v1247
      %v2757 = vmul.f32 %v2731, %v1246
      %v2758 = vmul.f32 %v2730, %v1244
      %v2759 = vmul.f32 %v2722, %v1247
      %v2760 = vmul.f32 %v2732, %v1246
      %v2761 = vmul.f32 %v2729, %v1255
      %v2762 = vmul.f32 %v2721, %v1258
      %v2763 = vmul.f32 %v2731, %v1257
      %v2764 = vmul.f32 %v2730, %v1255
      %v2765 = vmul.f32 %v2722, %v1258
      %v2766 = vmul.f32 %v2732, %v1257
      %2771 = vrot.lane.b32.xlu0 %v2729, 127
      %v2772 = vpop.permute.xlu0 %2771
      %2773 = vrot.lane.b32.xlu0 %v2721, 127
      %v2774 = vpop.permute.xlu0 %2773
      %2775 = vrot.lane.b32.xlu0 %v2731, 127
      %v2776 = vpop.permute.xlu0 %2775
      %2777 = vrot.lane.b32.xlu0 %v2730, 127
      %v2778 = vpop.permute.xlu0 %2777
      %2779 = vrot.lane.b32.xlu0 %v2722, 127
      %v2780 = vpop.permute.xlu0 %2779
      %2781 = vrot.lane.b32.xlu0 %v2732, 127
      %v2782 = vpop.permute.xlu0 %2781
      %v2783 = vsel %vm997, %v2772, %v2774
      %v2784 = vsel %vm997, %v2774, %v2776
      %v2785 = vsel %vm997, %v2778, %v2780
      %v2786 = vsel %vm997, %v2780, %v2782
      %2797 = vrot.lane.b32.xlu0 %v2737, 126
      %v2798 = vpop.permute.xlu0 %2797
      %2799 = vrot.lane.b32.xlu0 %v2738, 126
      %v2800 = vpop.permute.xlu0 %2799
      %2801 = vrot.lane.b32.xlu0 %v2739, 126
      %v2802 = vpop.permute.xlu0 %2801
      %2803 = vrot.lane.b32.xlu0 %v2740, 126
      %v2804 = vpop.permute.xlu0 %2803
      %2805 = vrot.lane.b32.xlu0 %v2741, 126
      %v2806 = vpop.permute.xlu0 %2805
      %2807 = vrot.lane.b32.xlu0 %v2742, 126
      %v2808 = vpop.permute.xlu0 %2807
      %v2809 = vsel %vm1014, %v2798, %v2800
      %v2810 = vsel %vm1014, %v2800, %v2802
      %v2811 = vsel %vm1014, %v2804, %v2806
      %v2812 = vsel %vm1014, %v2806, %v2808
      %2823 = vrot.lane.b32.xlu0 %v2743, 112
      %v2824 = vpop.permute.xlu0 %2823
      %2825 = vrot.lane.b32.xlu0 %v2744, 112
      %v2826 = vpop.permute.xlu0 %2825
      %2827 = vrot.lane.b32.xlu0 %v2745, 112
      %v2828 = vpop.permute.xlu0 %2827
      %2829 = vrot.lane.b32.xlu0 %v2746, 112
      %v2830 = vpop.permute.xlu0 %2829
      %2831 = vrot.lane.b32.xlu0 %v2747, 112
      %v2832 = vpop.permute.xlu0 %2831
      %2833 = vrot.lane.b32.xlu0 %v2748, 112
      %v2834 = vpop.permute.xlu0 %2833
      %v2835 = vsel %vm1031, %v2824, %v2826
      %v2836 = vsel %vm1031, %v2826, %v2828
      %v2837 = vsel %vm1031, %v2830, %v2832
      %v2838 = vsel %vm1031, %v2832, %v2834
      %2843 = vrot.lane.b32.xlu0 %v2729, 111
      %v2844 = vpop.permute.xlu0 %2843
      %2845 = vrot.lane.b32.xlu0 %v2721, 111
      %v2846 = vpop.permute.xlu0 %2845
      %2847 = vrot.lane.b32.xlu0 %v2731, 111
      %v2848 = vpop.permute.xlu0 %2847
      %2849 = vrot.lane.b32.xlu0 %v2730, 111
      %v2850 = vpop.permute.xlu0 %2849
      %2851 = vrot.lane.b32.xlu0 %v2722, 111
      %v2852 = vpop.permute.xlu0 %2851
      %2853 = vrot.lane.b32.xlu0 %v2732, 111
      %v2854 = vpop.permute.xlu0 %2853
      %v2855 = vsel %vm1045, %v2844, %v2846
      %v2856 = vsel %vm1045, %v2846, %v2848
      %v2857 = vsel %vm1045, %v2850, %v2852
      %v2858 = vsel %vm1045, %v2852, %v2854
      %2869 = vrot.lane.b32.xlu0 %v2749, 110
      %v2870 = vpop.permute.xlu0 %2869
      %2871 = vrot.lane.b32.xlu0 %v2750, 110
      %v2872 = vpop.permute.xlu0 %2871
      %2873 = vrot.lane.b32.xlu0 %v2751, 110
      %v2874 = vpop.permute.xlu0 %2873
      %2875 = vrot.lane.b32.xlu0 %v2752, 110
      %v2876 = vpop.permute.xlu0 %2875
      %2877 = vrot.lane.b32.xlu0 %v2753, 110
      %v2878 = vpop.permute.xlu0 %2877
      %2879 = vrot.lane.b32.xlu0 %v2754, 110
      %v2880 = vpop.permute.xlu0 %2879
      %v2881 = vsel %vm1062, %v2870, %v2872
      %v2882 = vsel %vm1062, %v2872, %v2874
      %v2883 = vsel %vm1062, %v2876, %v2878
      %v2884 = vsel %vm1062, %v2878, %v2880
      %2895 = vrot.lane.b32.xlu0 %v2755, 96
      %v2896 = vpop.permute.xlu0 %2895
      %2897 = vrot.lane.b32.xlu0 %v2756, 96
      %v2898 = vpop.permute.xlu0 %2897
      %2899 = vrot.lane.b32.xlu0 %v2757, 96
      %v2900 = vpop.permute.xlu0 %2899
      %2901 = vrot.lane.b32.xlu0 %v2758, 96
      %v2902 = vpop.permute.xlu0 %2901
      %2903 = vrot.lane.b32.xlu0 %v2759, 96
      %v2904 = vpop.permute.xlu0 %2903
      %2905 = vrot.lane.b32.xlu0 %v2760, 96
      %v2906 = vpop.permute.xlu0 %2905
      %v2907 = vsel %vm1079, %v2896, %v2898
      %v2908 = vsel %vm1079, %v2898, %v2900
      %v2909 = vsel %vm1079, %v2902, %v2904
      %v2910 = vsel %vm1079, %v2904, %v2906
      %2915 = vrot.lane.b32.xlu0 %v2729, 95
      %v2916 = vpop.permute.xlu0 %2915
      %2917 = vrot.lane.b32.xlu0 %v2721, 95
      %v2918 = vpop.permute.xlu0 %2917
      %2919 = vrot.lane.b32.xlu0 %v2731, 95
      %v2920 = vpop.permute.xlu0 %2919
      %2921 = vrot.lane.b32.xlu0 %v2730, 95
      %v2922 = vpop.permute.xlu0 %2921
      %2923 = vrot.lane.b32.xlu0 %v2722, 95
      %v2924 = vpop.permute.xlu0 %2923
      %2925 = vrot.lane.b32.xlu0 %v2732, 95
      %v2926 = vpop.permute.xlu0 %2925
      %v2927 = vsel %vm1093, %v2916, %v2918
      %v2928 = vsel %vm1093, %v2918, %v2920
      %v2929 = vsel %vm1093, %v2922, %v2924
      %v2930 = vsel %vm1093, %v2924, %v2926
      %2941 = vrot.lane.b32.xlu0 %v2761, 94
      %v2942 = vpop.permute.xlu0 %2941
      %2943 = vrot.lane.b32.xlu0 %v2762, 94
      %v2944 = vpop.permute.xlu0 %2943
      %2945 = vrot.lane.b32.xlu0 %v2763, 94
      %v2946 = vpop.permute.xlu0 %2945
      %2947 = vrot.lane.b32.xlu0 %v2764, 94
      %v2948 = vpop.permute.xlu0 %2947
      %2949 = vrot.lane.b32.xlu0 %v2765, 94
      %v2950 = vpop.permute.xlu0 %2949
      %2951 = vrot.lane.b32.xlu0 %v2766, 94
      %v2952 = vpop.permute.xlu0 %2951
      %v2953 = vsel %vm1107, %v2942, %v2944
      %v2954 = vsel %vm1107, %v2944, %v2946
      %v2955 = vsel %vm1107, %v2948, %v2950
      %v2956 = vsel %vm1107, %v2950, %v2952
      %v2961 = vpack.c.bf16 %v2735, %v2733
      %v2962 = vpack.c.bf16 %v2736, %v2734
      %v2963 = vpack.c.bf16 %v2785, %v2783
      %v2964 = vpack.c.bf16 %v2786, %v2784
      %v2965 = vpack.c.bf16 %v2811, %v2809
      %v2966 = vpack.c.bf16 %v2812, %v2810
      %v2967 = vpack.c.bf16 %v2837, %v2835
      %v2968 = vpack.c.bf16 %v2838, %v2836
      %v2969 = vpack.c.bf16 %v2857, %v2855
      %v2970 = vpack.c.bf16 %v2858, %v2856
      %v2971 = vpack.c.bf16 %v2883, %v2881
      %v2972 = vpack.c.bf16 %v2884, %v2882
      %v2973 = vpack.c.bf16 %v2909, %v2907
      %v2974 = vpack.c.bf16 %v2910, %v2908
      %v2975 = vpack.c.bf16 %v2929, %v2927
      %v2976 = vpack.c.bf16 %v2930, %v2928
      %v2977 = vpack.c.bf16 %v2955, %v2953
      %v2978 = vpack.c.bf16 %v2956, %v2954
      %v2979 = vld [vmem:[%s27] sm:$0xff]
      %v2980 = vld [vmem:[%s27 + $0x8] sm:$0xff]
      %v2983 = vunpack.c.l.b16 %v2979
      %v2984 = vunpack.c.h.b16 %v2979
      %v2985 = vunpack.c.l.b16 %v2980
      %v2986 = vunpack.c.h.b16 %v2980
      %v2987 = vpack.c.b16 %v2985, %v2983
      %v2988 = vpack.c.b16 %v2986, %v2984
      %v2991 = vsel %vm942, %v2988, 0
      %2993 = vmatpush.bf16.msra.mxu0 %v2975
      %2994 = vmatpush.bf16.msra.mxu0 %v2973
      %2995 = vmatpush.bf16.msra.mxu0 %v2971
      %2996 = vmatpush.bf16.msra.mxu0 %v2969
      %2997 = vmatpush.bf16.msra.mxu0 %v2967
      %2998 = vmatpush.bf16.msra.mxu0 %v2965
      %2999 = vmatpush.bf16.msra.mxu0 %v2963
      %3000 = vmatpush.bf16.msra.mxu0 %v2961
      %3001 = vmatmul.bf16.gmra.mxu0 %v2987
      %v3002 = vpop.f32.mrf.mxu0
      %v3003 = vadd.f32 0.0, %v3002
      %v3004 = vpop.f32.mrf.mxu0
      %v3005 = vadd.f32 0.0, %v3004
      %3006 = vdwg.mxu0
      %3007 = vmatpush.bf16.msra.mxu0 0
      %3008 = vmatpush.bf16.msra.mxu0 0
      %3009 = vmatpush.bf16.msra.mxu0 0
      %3010 = vmatpush.bf16.msra.mxu0 0
      %3011 = vmatpush.bf16.msra.mxu0 0
      %3012 = vmatpush.bf16.msra.mxu0 0
      %3013 = vmatpush.bf16.msra.mxu0 0
      %3014 = vmatpush.bf16.msra.mxu0 %v2977
      %3015 = vmatmul.bf16.gmra.mxu0 %v2991
      %v3016 = vpop.f32.mrf.mxu0
      %v3017 = vadd.f32 %v3003, %v3016
      %v3018 = vpop.f32.mrf.mxu0
      %v3019 = vadd.f32 %v3005, %v3018
      %3020 = vdwg.mxu0
      %3021 = vmatpush.bf16.msra.mxu0 %v2976
      %3022 = vmatpush.bf16.msra.mxu0 %v2974
      %3023 = vmatpush.bf16.msra.mxu0 %v2972
      %3024 = vmatpush.bf16.msra.mxu0 %v2970
      %3025 = vmatpush.bf16.msra.mxu0 %v2968
      %3026 = vmatpush.bf16.msra.mxu0 %v2966
      %3027 = vmatpush.bf16.msra.mxu0 %v2964
      %3028 = vmatpush.bf16.msra.mxu0 %v2962
      %3029 = vmatmul.bf16.gmra.mxu0 %v2987
      %v3030 = vpop.f32.mrf.mxu0
      %v3031 = vadd.f32 0.0, %v3030
      %v3032 = vpop.f32.mrf.mxu0
      %v3033 = vadd.f32 0.0, %v3032
      %3034 = vdwg.mxu0
      %3035 = vmatpush.bf16.msra.mxu0 0
      %3036 = vmatpush.bf16.msra.mxu0 0
      %3037 = vmatpush.bf16.msra.mxu0 0
      %3038 = vmatpush.bf16.msra.mxu0 0
      %3039 = vmatpush.bf16.msra.mxu0 0
      %3040 = vmatpush.bf16.msra.mxu0 0
      %3041 = vmatpush.bf16.msra.mxu0 0
      %3042 = vmatpush.bf16.msra.mxu0 %v2978
      %3043 = vmatmul.bf16.gmra.mxu0 %v2991
      %v3044 = vpop.f32.mrf.mxu0
      %v3045 = vadd.f32 %v3031, %v3044
      %v3046 = vpop.f32.mrf.mxu0
      %v3047 = vadd.f32 %v3033, %v3046
      %3048 = vdwg.mxu0
      %v3049 = vadd.f32 %v3017, %v3045
      %3050 = vadd.xlane.f32.xlu0 %v3049
      %v3051 = vpop.xlane.xlu0 %3050
      %v3052 = vadd.f32 %v3019, %v3047
      %3053 = vadd.xlane.f32.xlu0 %v3052
      %v3054 = vpop.xlane.xlu0 %3053
      %v3055 = vmul.f32 %v3051, 0.00390625
      %v3056 = vmul.f32 %v3054, 0.00390625
      %v3057 = vmul.f32 %v3017, %v3017
      %v3058 = vmul.f32 %v3045, %v3045
      %v3059 = vmul.f32 %v3019, %v3019
      %v3060 = vmul.f32 %v3047, %v3047
      %v3061 = vadd.f32 %v3057, %v3058
      %3062 = vadd.xlane.f32.xlu0 %v3061
      %v3063 = vpop.xlane.xlu0 %3062
      %v3064 = vadd.f32 %v3059, %v3060
      %3065 = vadd.xlane.f32.xlu0 %v3064
      %v3066 = vpop.xlane.xlu0 %3065
      %v3067 = vmul.f32 %v3063, 0.00390625
      %v3068 = vmul.f32 %v3066, 0.00390625
      %v3069 = vmul.f32 %v3055, %v3055
      %v3070 = vmul.f32 %v3056, %v3056
      %v3071 = vsub.f32 %v3067, %v3069
      %v3072 = vsub.f32 %v3068, %v3070
      %v3073 = vsub.f32 %v3017, %v3055
      %v3074 = vsub.f32 %v3045, %v3055
      %v3075 = vsub.f32 %v3019, %v3056
      %v3076 = vsub.f32 %v3047, %v3056
      %v3077 = vmax.f32 %v3071, 0.0
      %v3078 = vmax.f32 %v3072, 0.0
      %v3079 = vadd.f32 %v3077, 1e-05
      %v3080 = vadd.f32 %v3078, 1e-05
      %v3081 = vrsqrt.pop %v3079
      %v3082 = vmul.f32 %v3081, %v3079
      %v3083 = vmul.f32 %v3082, %v3081
      %v3084 = vmul.f32 0.5, %v3083
      %v3085 = vsub.f32 1.5, %v3084
      %v3086 = vmul.f32 %v3081, %v3085
      %vm3087 = vweird.f32 %v3079
      %vm3088 = vweird.f32 %v3081
      %vm3089 = vmor %vm3087, %vm3088
      %v3090 = vsel %vm3089, %v3081, %v3086
      %v3091 = vrsqrt.pop %v3080
      %v3092 = vmul.f32 %v3091, %v3080
      %v3093 = vmul.f32 %v3092, %v3091
      %v3094 = vmul.f32 0.5, %v3093
      %v3095 = vsub.f32 1.5, %v3094
      %v3096 = vmul.f32 %v3091, %v3095
      %vm3097 = vweird.f32 %v3080
      %vm3098 = vweird.f32 %v3091
      %vm3099 = vmor %vm3097, %vm3098
      %v3100 = vsel %vm3099, %v3091, %v3096
      %v3101 = vmul.f32 %v3073, %v3090
      %v3102 = vmul.f32 %v3074, %v3090
      %v3103 = vmul.f32 %v3075, %v3100
      %v3104 = vmul.f32 %v3076, %v3100
      %vm3105 = vcmp.ge.f32.partialorder %v3101, 0.0
      %vm3106 = vcmp.ge.f32.partialorder %v3102, 0.0
      %vm3107 = vcmp.ge.f32.partialorder %v3103, 0.0
      %vm3108 = vcmp.ge.f32.partialorder %v3104, 0.0
      %v3109 = vmul.f32 %v3101, 0.2
      %v3110 = vmul.f32 %v3102, 0.2
      %v3111 = vmul.f32 %v3103, 0.2
      %v3112 = vmul.f32 %v3104, 0.2
      %v3113 = vsel %vm3105, %v3101, %v3109
      %v3114 = vsel %vm3106, %v3102, %v3110
      %v3115 = vsel %vm3107, %v3103, %v3111
      %v3116 = vsel %vm3108, %v3104, %v3112
      %3121 = vrot.lane.b32.xlu0 %v3113, 17
      %v3122 = vpop.permute.xlu0 %3121
      %3123 = vrot.lane.b32.xlu0 %v3114, 17
      %v3124 = vpop.permute.xlu0 %3123
      %3125 = vrot.lane.b32.xlu0 %v3115, 17
      %v3126 = vpop.permute.xlu0 %3125
      %3127 = vrot.lane.b32.xlu0 %v3116, 17
      %v3128 = vpop.permute.xlu0 %3127
      %v3129 = vsel %vm909, %v3122, %v3124
      %v3130 = vsel %vm909, %v3126, %v3128
      %v3137 = vsel %vm909, 0.0, %v3122
      %v3138 = vsel %vm909, 0.0, %v3126
      %v3139 = vsel %vm909, %v3124, 0.0
      %v3140 = vsel %vm909, %v3128, 0.0
      %v3141 = vmul.f32 %v3137, %v1198
      %v3142 = vmul.f32 %v3129, %v1199
      %v3143 = vmul.f32 %v3138, %v1198
      %v3144 = vmul.f32 %v3130, %v1199
      %v3145 = vmul.f32 %v3137, %v1209
      %v3146 = vmul.f32 %v3129, %v1212
      %v3147 = vmul.f32 %v3139, %v1211
      %v3148 = vmul.f32 %v3138, %v1209
      %v3149 = vmul.f32 %v3130, %v1212
      %v3150 = vmul.f32 %v3140, %v1211
      %v3151 = vmul.f32 %v3137, %v1222
      %v3152 = vmul.f32 %v3129, %v1225
      %v3153 = vmul.f32 %v3139, %v1224
      %v3154 = vmul.f32 %v3138, %v1222
      %v3155 = vmul.f32 %v3130, %v1225
      %v3156 = vmul.f32 %v3140, %v1224
      %v3157 = vmul.f32 %v3137, %v1233
      %v3158 = vmul.f32 %v3129, %v1236
      %v3159 = vmul.f32 %v3139, %v1235
      %v3160 = vmul.f32 %v3138, %v1233
      %v3161 = vmul.f32 %v3130, %v1236
      %v3162 = vmul.f32 %v3140, %v1235
      %v3163 = vmul.f32 %v3137, %v1244
      %v3164 = vmul.f32 %v3129, %v1247
      %v3165 = vmul.f32 %v3139, %v1246
      %v3166 = vmul.f32 %v3138, %v1244
      %v3167 = vmul.f32 %v3130, %v1247
      %v3168 = vmul.f32 %v3140, %v1246
      %v3169 = vmul.f32 %v3137, %v1255
      %v3170 = vmul.f32 %v3129, %v1258
      %v3171 = vmul.f32 %v3139, %v1257
      %v3172 = vmul.f32 %v3138, %v1255
      %v3173 = vmul.f32 %v3130, %v1258
      %v3174 = vmul.f32 %v3140, %v1257
      %3179 = vrot.lane.b32.xlu0 %v3137, 127
      %v3180 = vpop.permute.xlu0 %3179
      %3181 = vrot.lane.b32.xlu0 %v3129, 127
      %v3182 = vpop.permute.xlu0 %3181
      %3183 = vrot.lane.b32.xlu0 %v3139, 127
      %v3184 = vpop.permute.xlu0 %3183
      %3185 = vrot.lane.b32.xlu0 %v3138, 127
      %v3186 = vpop.permute.xlu0 %3185
      %3187 = vrot.lane.b32.xlu0 %v3130, 127
      %v3188 = vpop.permute.xlu0 %3187
      %3189 = vrot.lane.b32.xlu0 %v3140, 127
      %v3190 = vpop.permute.xlu0 %3189
      %v3191 = vsel %vm997, %v3180, %v3182
      %v3192 = vsel %vm997, %v3182, %v3184
      %v3193 = vsel %vm997, %v3186, %v3188
      %v3194 = vsel %vm997, %v3188, %v3190
      %3205 = vrot.lane.b32.xlu0 %v3145, 126
      %v3206 = vpop.permute.xlu0 %3205
      %3207 = vrot.lane.b32.xlu0 %v3146, 126
      %v3208 = vpop.permute.xlu0 %3207
      %3209 = vrot.lane.b32.xlu0 %v3147, 126
      %v3210 = vpop.permute.xlu0 %3209
      %3211 = vrot.lane.b32.xlu0 %v3148, 126
      %v3212 = vpop.permute.xlu0 %3211
      %3213 = vrot.lane.b32.xlu0 %v3149, 126
      %v3214 = vpop.permute.xlu0 %3213
      %3215 = vrot.lane.b32.xlu0 %v3150, 126
      %v3216 = vpop.permute.xlu0 %3215
      %v3217 = vsel %vm1014, %v3206, %v3208
      %v3218 = vsel %vm1014, %v3208, %v3210
      %v3219 = vsel %vm1014, %v3212, %v3214
      %v3220 = vsel %vm1014, %v3214, %v3216
      %3231 = vrot.lane.b32.xlu0 %v3151, 112
      %v3232 = vpop.permute.xlu0 %3231
      %3233 = vrot.lane.b32.xlu0 %v3152, 112
      %v3234 = vpop.permute.xlu0 %3233
      %3235 = vrot.lane.b32.xlu0 %v3153, 112
      %v3236 = vpop.permute.xlu0 %3235
      %3237 = vrot.lane.b32.xlu0 %v3154, 112
      %v3238 = vpop.permute.xlu0 %3237
      %3239 = vrot.lane.b32.xlu0 %v3155, 112
      %v3240 = vpop.permute.xlu0 %3239
      %3241 = vrot.lane.b32.xlu0 %v3156, 112
      %v3242 = vpop.permute.xlu0 %3241
      %v3243 = vsel %vm1031, %v3232, %v3234
      %v3244 = vsel %vm1031, %v3234, %v3236
      %v3245 = vsel %vm1031, %v3238, %v3240
      %v3246 = vsel %vm1031, %v3240, %v3242
      %3251 = vrot.lane.b32.xlu0 %v3137, 111
      %v3252 = vpop.permute.xlu0 %3251
      %3253 = vrot.lane.b32.xlu0 %v3129, 111
      %v3254 = vpop.permute.xlu0 %3253
      %3255 = vrot.lane.b32.xlu0 %v3139, 111
      %v3256 = vpop.permute.xlu0 %3255
      %3257 = vrot.lane.b32.xlu0 %v3138, 111
      %v3258 = vpop.permute.xlu0 %3257
      %3259 = vrot.lane.b32.xlu0 %v3130, 111
      %v3260 = vpop.permute.xlu0 %3259
      %3261 = vrot.lane.b32.xlu0 %v3140, 111
      %v3262 = vpop.permute.xlu0 %3261
      %v3263 = vsel %vm1045, %v3252, %v3254
      %v3264 = vsel %vm1045, %v3254, %v3256
      %v3265 = vsel %vm1045, %v3258, %v3260
      %v3266 = vsel %vm1045, %v3260, %v3262
      %3277 = vrot.lane.b32.xlu0 %v3157, 110
      %v3278 = vpop.permute.xlu0 %3277
      %3279 = vrot.lane.b32.xlu0 %v3158, 110
      %v3280 = vpop.permute.xlu0 %3279
      %3281 = vrot.lane.b32.xlu0 %v3159, 110
      %v3282 = vpop.permute.xlu0 %3281
      %3283 = vrot.lane.b32.xlu0 %v3160, 110
      %v3284 = vpop.permute.xlu0 %3283
      %3285 = vrot.lane.b32.xlu0 %v3161, 110
      %v3286 = vpop.permute.xlu0 %3285
      %3287 = vrot.lane.b32.xlu0 %v3162, 110
      %v3288 = vpop.permute.xlu0 %3287
      %v3289 = vsel %vm1062, %v3278, %v3280
      %v3290 = vsel %vm1062, %v3280, %v3282
      %v3291 = vsel %vm1062, %v3284, %v3286
      %v3292 = vsel %vm1062, %v3286, %v3288
      %3303 = vrot.lane.b32.xlu0 %v3163, 96
      %v3304 = vpop.permute.xlu0 %3303
      %3305 = vrot.lane.b32.xlu0 %v3164, 96
      %v3306 = vpop.permute.xlu0 %3305
      %3307 = vrot.lane.b32.xlu0 %v3165, 96
      %v3308 = vpop.permute.xlu0 %3307
      %3309 = vrot.lane.b32.xlu0 %v3166, 96
      %v3310 = vpop.permute.xlu0 %3309
      %3311 = vrot.lane.b32.xlu0 %v3167, 96
      %v3312 = vpop.permute.xlu0 %3311
      %3313 = vrot.lane.b32.xlu0 %v3168, 96
      %v3314 = vpop.permute.xlu0 %3313
      %v3315 = vsel %vm1079, %v3304, %v3306
      %v3316 = vsel %vm1079, %v3306, %v3308
      %v3317 = vsel %vm1079, %v3310, %v3312
      %v3318 = vsel %vm1079, %v3312, %v3314
      %3323 = vrot.lane.b32.xlu0 %v3137, 95
      %v3324 = vpop.permute.xlu0 %3323
      %3325 = vrot.lane.b32.xlu0 %v3129, 95
      %v3326 = vpop.permute.xlu0 %3325
      %3327 = vrot.lane.b32.xlu0 %v3139, 95
      %v3328 = vpop.permute.xlu0 %3327
      %3329 = vrot.lane.b32.xlu0 %v3138, 95
      %v3330 = vpop.permute.xlu0 %3329
      %3331 = vrot.lane.b32.xlu0 %v3130, 95
      %v3332 = vpop.permute.xlu0 %3331
      %3333 = vrot.lane.b32.xlu0 %v3140, 95
      %v3334 = vpop.permute.xlu0 %3333
      %v3335 = vsel %vm1093, %v3324, %v3326
      %v3336 = vsel %vm1093, %v3326, %v3328
      %v3337 = vsel %vm1093, %v3330, %v3332
      %v3338 = vsel %vm1093, %v3332, %v3334
      %3349 = vrot.lane.b32.xlu0 %v3169, 94
      %v3350 = vpop.permute.xlu0 %3349
      %3351 = vrot.lane.b32.xlu0 %v3170, 94
      %v3352 = vpop.permute.xlu0 %3351
      %3353 = vrot.lane.b32.xlu0 %v3171, 94
      %v3354 = vpop.permute.xlu0 %3353
      %3355 = vrot.lane.b32.xlu0 %v3172, 94
      %v3356 = vpop.permute.xlu0 %3355
      %3357 = vrot.lane.b32.xlu0 %v3173, 94
      %v3358 = vpop.permute.xlu0 %3357
      %3359 = vrot.lane.b32.xlu0 %v3174, 94
      %v3360 = vpop.permute.xlu0 %3359
      %v3361 = vsel %vm1107, %v3350, %v3352
      %v3362 = vsel %vm1107, %v3352, %v3354
      %v3363 = vsel %vm1107, %v3356, %v3358
      %v3364 = vsel %vm1107, %v3358, %v3360
      %v3369 = vpack.c.bf16 %v3143, %v3141
      %v3370 = vpack.c.bf16 %v3144, %v3142
      %v3371 = vpack.c.bf16 %v3193, %v3191
      %v3372 = vpack.c.bf16 %v3194, %v3192
      %v3373 = vpack.c.bf16 %v3219, %v3217
      %v3374 = vpack.c.bf16 %v3220, %v3218
      %v3375 = vpack.c.bf16 %v3245, %v3243
      %v3376 = vpack.c.bf16 %v3246, %v3244
      %v3377 = vpack.c.bf16 %v3265, %v3263
      %v3378 = vpack.c.bf16 %v3266, %v3264
      %v3379 = vpack.c.bf16 %v3291, %v3289
      %v3380 = vpack.c.bf16 %v3292, %v3290
      %v3381 = vpack.c.bf16 %v3317, %v3315
      %v3382 = vpack.c.bf16 %v3318, %v3316
      %v3383 = vpack.c.bf16 %v3337, %v3335
      %v3384 = vpack.c.bf16 %v3338, %v3336
      %v3385 = vpack.c.bf16 %v3363, %v3361
      %v3386 = vpack.c.bf16 %v3364, %v3362
      %v3387 = vld [vmem:[%s29] sm:$0xff]
      %v3388 = vld [vmem:[%s29 + $0x8] sm:$0xff]
      %v3391 = vunpack.c.l.b16 %v3387
      %v3392 = vunpack.c.h.b16 %v3387
      %v3393 = vunpack.c.l.b16 %v3388
      %v3394 = vunpack.c.h.b16 %v3388
      %v3395 = vpack.c.b16 %v3393, %v3391
      %v3396 = vpack.c.b16 %v3394, %v3392
      %v3399 = vsel %vm942, %v3396, 0
      %3401 = vmatpush.bf16.msra.mxu0 %v3383
      %3402 = vmatpush.bf16.msra.mxu0 %v3381
      %3403 = vmatpush.bf16.msra.mxu0 %v3379
      %3404 = vmatpush.bf16.msra.mxu0 %v3377
      %3405 = vmatpush.bf16.msra.mxu0 %v3375
      %3406 = vmatpush.bf16.msra.mxu0 %v3373
      %3407 = vmatpush.bf16.msra.mxu0 %v3371
      %3408 = vmatpush.bf16.msra.mxu0 %v3369
      %3409 = vmatmul.bf16.gmra.mxu0 %v3395
      %v3410 = vpop.f32.mrf.mxu0
      %v3411 = vadd.f32 0.0, %v3410
      %v3412 = vpop.f32.mrf.mxu0
      %v3413 = vadd.f32 0.0, %v3412
      %3414 = vdwg.mxu0
      %3415 = vmatpush.bf16.msra.mxu0 0
      %3416 = vmatpush.bf16.msra.mxu0 0
      %3417 = vmatpush.bf16.msra.mxu0 0
      %3418 = vmatpush.bf16.msra.mxu0 0
      %3419 = vmatpush.bf16.msra.mxu0 0
      %3420 = vmatpush.bf16.msra.mxu0 0
      %3421 = vmatpush.bf16.msra.mxu0 0
      %3422 = vmatpush.bf16.msra.mxu0 %v3385
      %3423 = vmatmul.bf16.gmra.mxu0 %v3399
      %v3424 = vpop.f32.mrf.mxu0
      %v3425 = vadd.f32 %v3411, %v3424
      %v3426 = vpop.f32.mrf.mxu0
      %v3427 = vadd.f32 %v3413, %v3426
      %3428 = vdwg.mxu0
      %3429 = vmatpush.bf16.msra.mxu0 %v3384
      %3430 = vmatpush.bf16.msra.mxu0 %v3382
      %3431 = vmatpush.bf16.msra.mxu0 %v3380
      %3432 = vmatpush.bf16.msra.mxu0 %v3378
      %3433 = vmatpush.bf16.msra.mxu0 %v3376
      %3434 = vmatpush.bf16.msra.mxu0 %v3374
      %3435 = vmatpush.bf16.msra.mxu0 %v3372
      %3436 = vmatpush.bf16.msra.mxu0 %v3370
      %3437 = vmatmul.bf16.gmra.mxu0 %v3395
      %v3438 = vpop.f32.mrf.mxu0
      %v3439 = vadd.f32 0.0, %v3438
      %v3440 = vpop.f32.mrf.mxu0
      %v3441 = vadd.f32 0.0, %v3440
      %3442 = vdwg.mxu0
      %3443 = vmatpush.bf16.msra.mxu0 0
      %3444 = vmatpush.bf16.msra.mxu0 0
      %3445 = vmatpush.bf16.msra.mxu0 0
      %3446 = vmatpush.bf16.msra.mxu0 0
      %3447 = vmatpush.bf16.msra.mxu0 0
      %3448 = vmatpush.bf16.msra.mxu0 0
      %3449 = vmatpush.bf16.msra.mxu0 0
      %3450 = vmatpush.bf16.msra.mxu0 %v3386
      %3451 = vmatmul.bf16.gmra.mxu0 %v3399
      %v3452 = vpop.f32.mrf.mxu0
      %v3453 = vadd.f32 %v3439, %v3452
      %v3454 = vpop.f32.mrf.mxu0
      %v3455 = vadd.f32 %v3441, %v3454
      %3456 = vdwg.mxu0
      %v3457 = vadd.f32 %v3425, %v3453
      %3458 = vadd.xlane.f32.xlu0 %v3457
      %v3459 = vpop.xlane.xlu0 %3458
      %v3460 = vadd.f32 %v3427, %v3455
      %3461 = vadd.xlane.f32.xlu0 %v3460
      %v3462 = vpop.xlane.xlu0 %3461
      %v3463 = vmul.f32 %v3459, 0.00390625
      %v3464 = vmul.f32 %v3462, 0.00390625
      %v3465 = vmul.f32 %v3425, %v3425
      %v3466 = vmul.f32 %v3453, %v3453
      %v3467 = vmul.f32 %v3427, %v3427
      %v3468 = vmul.f32 %v3455, %v3455
      %v3469 = vadd.f32 %v3465, %v3466
      %3470 = vadd.xlane.f32.xlu0 %v3469
      %v3471 = vpop.xlane.xlu0 %3470
      %v3472 = vadd.f32 %v3467, %v3468
      %3473 = vadd.xlane.f32.xlu0 %v3472
      %v3474 = vpop.xlane.xlu0 %3473
      %v3475 = vmul.f32 %v3471, 0.00390625
      %v3476 = vmul.f32 %v3474, 0.00390625
      %v3477 = vmul.f32 %v3463, %v3463
      %v3478 = vmul.f32 %v3464, %v3464
      %v3479 = vsub.f32 %v3475, %v3477
      %v3480 = vsub.f32 %v3476, %v3478
      %v3481 = vsub.f32 %v3425, %v3463
      %v3482 = vsub.f32 %v3453, %v3463
      %v3483 = vsub.f32 %v3427, %v3464
      %v3484 = vsub.f32 %v3455, %v3464
      %v3485 = vmax.f32 %v3479, 0.0
      %v3486 = vmax.f32 %v3480, 0.0
      %v3487 = vadd.f32 %v3485, 1e-05
      %v3488 = vadd.f32 %v3486, 1e-05
      %v3489 = vrsqrt.pop %v3487
      %v3490 = vmul.f32 %v3489, %v3487
      %v3491 = vmul.f32 %v3490, %v3489
      %v3492 = vmul.f32 0.5, %v3491
      %v3493 = vsub.f32 1.5, %v3492
      %v3494 = vmul.f32 %v3489, %v3493
      %vm3495 = vweird.f32 %v3487
      %vm3496 = vweird.f32 %v3489
      %vm3497 = vmor %vm3495, %vm3496
      %v3498 = vsel %vm3497, %v3489, %v3494
      %v3499 = vrsqrt.pop %v3488
      %v3500 = vmul.f32 %v3499, %v3488
      %v3501 = vmul.f32 %v3500, %v3499
      %v3502 = vmul.f32 0.5, %v3501
      %v3503 = vsub.f32 1.5, %v3502
      %v3504 = vmul.f32 %v3499, %v3503
      %vm3505 = vweird.f32 %v3488
      %vm3506 = vweird.f32 %v3499
      %vm3507 = vmor %vm3505, %vm3506
      %v3508 = vsel %vm3507, %v3499, %v3504
      %v3509 = vmul.f32 %v3481, %v3498
      %v3510 = vmul.f32 %v3482, %v3498
      %v3511 = vmul.f32 %v3483, %v3508
      %v3512 = vmul.f32 %v3484, %v3508
      %vm3513 = vcmp.ge.f32.partialorder %v3509, 0.0
      %vm3514 = vcmp.ge.f32.partialorder %v3510, 0.0
      %vm3515 = vcmp.ge.f32.partialorder %v3511, 0.0
      %vm3516 = vcmp.ge.f32.partialorder %v3512, 0.0
      %v3517 = vmul.f32 %v3509, 0.2
      %v3518 = vmul.f32 %v3510, 0.2
      %v3519 = vmul.f32 %v3511, 0.2
      %v3520 = vmul.f32 %v3512, 0.2
      %v3521 = vsel %vm3513, %v3509, %v3517
      %v3522 = vsel %vm3514, %v3510, %v3518
      %v3523 = vsel %vm3515, %v3511, %v3519
      %v3524 = vsel %vm3516, %v3512, %v3520
      %3529 = vrot.lane.b32.xlu0 %v3521, 17
      %v3530 = vpop.permute.xlu0 %3529
      %3531 = vrot.lane.b32.xlu0 %v3522, 17
      %v3532 = vpop.permute.xlu0 %3531
      %3533 = vrot.lane.b32.xlu0 %v3523, 17
      %v3534 = vpop.permute.xlu0 %3533
      %3535 = vrot.lane.b32.xlu0 %v3524, 17
      %v3536 = vpop.permute.xlu0 %3535
      %v3537 = vsel %vm909, %v3530, %v3532
      %v3538 = vsel %vm909, %v3534, %v3536
      %v3545 = vsel %vm909, 0.0, %v3530
      %v3546 = vsel %vm909, 0.0, %v3534
      %v3547 = vsel %vm909, %v3532, 0.0
      %v3548 = vsel %vm909, %v3536, 0.0
      %v3549 = vmul.f32 %v3545, %v1198
      %v3550 = vmul.f32 %v3537, %v1199
      %v3551 = vmul.f32 %v3546, %v1198
      %v3552 = vmul.f32 %v3538, %v1199
      %v3553 = vmul.f32 %v3545, %v1209
      %v3554 = vmul.f32 %v3537, %v1212
      %v3555 = vmul.f32 %v3547, %v1211
      %v3556 = vmul.f32 %v3546, %v1209
      %v3557 = vmul.f32 %v3538, %v1212
      %v3558 = vmul.f32 %v3548, %v1211
      %v3559 = vmul.f32 %v3545, %v1222
      %v3560 = vmul.f32 %v3537, %v1225
      %v3561 = vmul.f32 %v3547, %v1224
      %v3562 = vmul.f32 %v3546, %v1222
      %v3563 = vmul.f32 %v3538, %v1225
      %v3564 = vmul.f32 %v3548, %v1224
      %v3565 = vmul.f32 %v3545, %v1233
      %v3566 = vmul.f32 %v3537, %v1236
      %v3567 = vmul.f32 %v3547, %v1235
      %v3568 = vmul.f32 %v3546, %v1233
      %v3569 = vmul.f32 %v3538, %v1236
      %v3570 = vmul.f32 %v3548, %v1235
      %v3571 = vmul.f32 %v3545, %v1244
      %v3572 = vmul.f32 %v3537, %v1247
      %v3573 = vmul.f32 %v3547, %v1246
      %v3574 = vmul.f32 %v3546, %v1244
      %v3575 = vmul.f32 %v3538, %v1247
      %v3576 = vmul.f32 %v3548, %v1246
      %v3577 = vmul.f32 %v3545, %v1255
      %v3578 = vmul.f32 %v3537, %v1258
      %v3579 = vmul.f32 %v3547, %v1257
      %v3580 = vmul.f32 %v3546, %v1255
      %v3581 = vmul.f32 %v3538, %v1258
      %v3582 = vmul.f32 %v3548, %v1257
      %3587 = vrot.lane.b32.xlu0 %v3545, 127
      %v3588 = vpop.permute.xlu0 %3587
      %3589 = vrot.lane.b32.xlu0 %v3537, 127
      %v3590 = vpop.permute.xlu0 %3589
      %3591 = vrot.lane.b32.xlu0 %v3547, 127
      %v3592 = vpop.permute.xlu0 %3591
      %3593 = vrot.lane.b32.xlu0 %v3546, 127
      %v3594 = vpop.permute.xlu0 %3593
      %3595 = vrot.lane.b32.xlu0 %v3538, 127
      %v3596 = vpop.permute.xlu0 %3595
      %3597 = vrot.lane.b32.xlu0 %v3548, 127
      %v3598 = vpop.permute.xlu0 %3597
      %v3599 = vsel %vm997, %v3588, %v3590
      %v3600 = vsel %vm997, %v3590, %v3592
      %v3601 = vsel %vm997, %v3594, %v3596
      %v3602 = vsel %vm997, %v3596, %v3598
      %3613 = vrot.lane.b32.xlu0 %v3553, 126
      %v3614 = vpop.permute.xlu0 %3613
      %3615 = vrot.lane.b32.xlu0 %v3554, 126
      %v3616 = vpop.permute.xlu0 %3615
      %3617 = vrot.lane.b32.xlu0 %v3555, 126
      %v3618 = vpop.permute.xlu0 %3617
      %3619 = vrot.lane.b32.xlu0 %v3556, 126
      %v3620 = vpop.permute.xlu0 %3619
      %3621 = vrot.lane.b32.xlu0 %v3557, 126
      %v3622 = vpop.permute.xlu0 %3621
      %3623 = vrot.lane.b32.xlu0 %v3558, 126
      %v3624 = vpop.permute.xlu0 %3623
      %v3625 = vsel %vm1014, %v3614, %v3616
      %v3626 = vsel %vm1014, %v3616, %v3618
      %v3627 = vsel %vm1014, %v3620, %v3622
      %v3628 = vsel %vm1014, %v3622, %v3624
      %3639 = vrot.lane.b32.xlu0 %v3559, 112
      %v3640 = vpop.permute.xlu0 %3639
      %3641 = vrot.lane.b32.xlu0 %v3560, 112
      %v3642 = vpop.permute.xlu0 %3641
      %3643 = vrot.lane.b32.xlu0 %v3561, 112
      %v3644 = vpop.permute.xlu0 %3643
      %3645 = vrot.lane.b32.xlu0 %v3562, 112
      %v3646 = vpop.permute.xlu0 %3645
      %3647 = vrot.lane.b32.xlu0 %v3563, 112
      %v3648 = vpop.permute.xlu0 %3647
      %3649 = vrot.lane.b32.xlu0 %v3564, 112
      %v3650 = vpop.permute.xlu0 %3649
      %v3651 = vsel %vm1031, %v3640, %v3642
      %v3652 = vsel %vm1031, %v3642, %v3644
      %v3653 = vsel %vm1031, %v3646, %v3648
      %v3654 = vsel %vm1031, %v3648, %v3650
      %3659 = vrot.lane.b32.xlu0 %v3545, 111
      %v3660 = vpop.permute.xlu0 %3659
      %3661 = vrot.lane.b32.xlu0 %v3537, 111
      %v3662 = vpop.permute.xlu0 %3661
      %3663 = vrot.lane.b32.xlu0 %v3547, 111
      %v3664 = vpop.permute.xlu0 %3663
      %3665 = vrot.lane.b32.xlu0 %v3546, 111
      %v3666 = vpop.permute.xlu0 %3665
      %3667 = vrot.lane.b32.xlu0 %v3538, 111
      %v3668 = vpop.permute.xlu0 %3667
      %3669 = vrot.lane.b32.xlu0 %v3548, 111
      %v3670 = vpop.permute.xlu0 %3669
      %v3671 = vsel %vm1045, %v3660, %v3662
      %v3672 = vsel %vm1045, %v3662, %v3664
      %v3673 = vsel %vm1045, %v3666, %v3668
      %v3674 = vsel %vm1045, %v3668, %v3670
      %3685 = vrot.lane.b32.xlu0 %v3565, 110
      %v3686 = vpop.permute.xlu0 %3685
      %3687 = vrot.lane.b32.xlu0 %v3566, 110
      %v3688 = vpop.permute.xlu0 %3687
      %3689 = vrot.lane.b32.xlu0 %v3567, 110
      %v3690 = vpop.permute.xlu0 %3689
      %3691 = vrot.lane.b32.xlu0 %v3568, 110
      %v3692 = vpop.permute.xlu0 %3691
      %3693 = vrot.lane.b32.xlu0 %v3569, 110
      %v3694 = vpop.permute.xlu0 %3693
      %3695 = vrot.lane.b32.xlu0 %v3570, 110
      %v3696 = vpop.permute.xlu0 %3695
      %v3697 = vsel %vm1062, %v3686, %v3688
      %v3698 = vsel %vm1062, %v3688, %v3690
      %v3699 = vsel %vm1062, %v3692, %v3694
      %v3700 = vsel %vm1062, %v3694, %v3696
      %3711 = vrot.lane.b32.xlu0 %v3571, 96
      %v3712 = vpop.permute.xlu0 %3711
      %3713 = vrot.lane.b32.xlu0 %v3572, 96
      %v3714 = vpop.permute.xlu0 %3713
      %3715 = vrot.lane.b32.xlu0 %v3573, 96
      %v3716 = vpop.permute.xlu0 %3715
      %3717 = vrot.lane.b32.xlu0 %v3574, 96
      %v3718 = vpop.permute.xlu0 %3717
      %3719 = vrot.lane.b32.xlu0 %v3575, 96
      %v3720 = vpop.permute.xlu0 %3719
      %3721 = vrot.lane.b32.xlu0 %v3576, 96
      %v3722 = vpop.permute.xlu0 %3721
      %v3723 = vsel %vm1079, %v3712, %v3714
      %v3724 = vsel %vm1079, %v3714, %v3716
      %v3725 = vsel %vm1079, %v3718, %v3720
      %v3726 = vsel %vm1079, %v3720, %v3722
      %3731 = vrot.lane.b32.xlu0 %v3545, 95
      %v3732 = vpop.permute.xlu0 %3731
      %3733 = vrot.lane.b32.xlu0 %v3537, 95
      %v3734 = vpop.permute.xlu0 %3733
      %3735 = vrot.lane.b32.xlu0 %v3547, 95
      %v3736 = vpop.permute.xlu0 %3735
      %3737 = vrot.lane.b32.xlu0 %v3546, 95
      %v3738 = vpop.permute.xlu0 %3737
      %3739 = vrot.lane.b32.xlu0 %v3538, 95
      %v3740 = vpop.permute.xlu0 %3739
      %3741 = vrot.lane.b32.xlu0 %v3548, 95
      %v3742 = vpop.permute.xlu0 %3741
      %v3743 = vsel %vm1093, %v3732, %v3734
      %v3744 = vsel %vm1093, %v3734, %v3736
      %v3745 = vsel %vm1093, %v3738, %v3740
      %v3746 = vsel %vm1093, %v3740, %v3742
      %3757 = vrot.lane.b32.xlu0 %v3577, 94
      %v3758 = vpop.permute.xlu0 %3757
      %3759 = vrot.lane.b32.xlu0 %v3578, 94
      %v3760 = vpop.permute.xlu0 %3759
      %3761 = vrot.lane.b32.xlu0 %v3579, 94
      %v3762 = vpop.permute.xlu0 %3761
      %3763 = vrot.lane.b32.xlu0 %v3580, 94
      %v3764 = vpop.permute.xlu0 %3763
      %3765 = vrot.lane.b32.xlu0 %v3581, 94
      %v3766 = vpop.permute.xlu0 %3765
      %3767 = vrot.lane.b32.xlu0 %v3582, 94
      %v3768 = vpop.permute.xlu0 %3767
      %v3769 = vsel %vm1107, %v3758, %v3760
      %v3770 = vsel %vm1107, %v3760, %v3762
      %v3771 = vsel %vm1107, %v3764, %v3766
      %v3772 = vsel %vm1107, %v3766, %v3768
      %v3777 = vpack.c.bf16 %v3551, %v3549
      %v3778 = vpack.c.bf16 %v3552, %v3550
      %v3779 = vpack.c.bf16 %v3601, %v3599
      %v3780 = vpack.c.bf16 %v3602, %v3600
      %v3781 = vpack.c.bf16 %v3627, %v3625
      %v3782 = vpack.c.bf16 %v3628, %v3626
      %v3783 = vpack.c.bf16 %v3653, %v3651
      %v3784 = vpack.c.bf16 %v3654, %v3652
      %v3785 = vpack.c.bf16 %v3673, %v3671
      %v3786 = vpack.c.bf16 %v3674, %v3672
      %v3787 = vpack.c.bf16 %v3699, %v3697
      %v3788 = vpack.c.bf16 %v3700, %v3698
      %v3789 = vpack.c.bf16 %v3725, %v3723
      %v3790 = vpack.c.bf16 %v3726, %v3724
      %v3791 = vpack.c.bf16 %v3745, %v3743
      %v3792 = vpack.c.bf16 %v3746, %v3744
      %v3793 = vpack.c.bf16 %v3771, %v3769
      %v3794 = vpack.c.bf16 %v3772, %v3770
      %v3795 = vld [vmem:[%s31] sm:$0xff]
      %v3796 = vld [vmem:[%s31 + $0x8] sm:$0xff]
      %v3799 = vunpack.c.l.b16 %v3795
      %v3800 = vunpack.c.h.b16 %v3795
      %v3801 = vunpack.c.l.b16 %v3796
      %v3802 = vunpack.c.h.b16 %v3796
      %v3803 = vpack.c.b16 %v3801, %v3799
      %v3804 = vpack.c.b16 %v3802, %v3800
      %v3807 = vsel %vm942, %v3804, 0
      %3809 = vmatpush.bf16.msra.mxu0 %v3791
      %3810 = vmatpush.bf16.msra.mxu0 %v3789
      %3811 = vmatpush.bf16.msra.mxu0 %v3787
      %3812 = vmatpush.bf16.msra.mxu0 %v3785
      %3813 = vmatpush.bf16.msra.mxu0 %v3783
      %3814 = vmatpush.bf16.msra.mxu0 %v3781
      %3815 = vmatpush.bf16.msra.mxu0 %v3779
      %3816 = vmatpush.bf16.msra.mxu0 %v3777
      %3817 = vmatmul.bf16.gmra.mxu0 %v3803
      %v3818 = vpop.f32.mrf.mxu0
      %v3819 = vadd.f32 0.0, %v3818
      %v3820 = vpop.f32.mrf.mxu0
      %v3821 = vadd.f32 0.0, %v3820
      %3822 = vdwg.mxu0
      %3823 = vmatpush.bf16.msra.mxu0 0
      %3824 = vmatpush.bf16.msra.mxu0 0
      %3825 = vmatpush.bf16.msra.mxu0 0
      %3826 = vmatpush.bf16.msra.mxu0 0
      %3827 = vmatpush.bf16.msra.mxu0 0
      %3828 = vmatpush.bf16.msra.mxu0 0
      %3829 = vmatpush.bf16.msra.mxu0 0
      %3830 = vmatpush.bf16.msra.mxu0 %v3793
      %3831 = vmatmul.bf16.gmra.mxu0 %v3807
      %v3832 = vpop.f32.mrf.mxu0
      %v3833 = vadd.f32 %v3819, %v3832
      %v3834 = vpop.f32.mrf.mxu0
      %v3835 = vadd.f32 %v3821, %v3834
      %3836 = vdwg.mxu0
      %3837 = vmatpush.bf16.msra.mxu0 %v3792
      %3838 = vmatpush.bf16.msra.mxu0 %v3790
      %3839 = vmatpush.bf16.msra.mxu0 %v3788
      %3840 = vmatpush.bf16.msra.mxu0 %v3786
      %3841 = vmatpush.bf16.msra.mxu0 %v3784
      %3842 = vmatpush.bf16.msra.mxu0 %v3782
      %3843 = vmatpush.bf16.msra.mxu0 %v3780
      %3844 = vmatpush.bf16.msra.mxu0 %v3778
      %3845 = vmatmul.bf16.gmra.mxu0 %v3803
      %v3846 = vpop.f32.mrf.mxu0
      %v3847 = vadd.f32 0.0, %v3846
      %v3848 = vpop.f32.mrf.mxu0
      %v3849 = vadd.f32 0.0, %v3848
      %3850 = vdwg.mxu0
      %3851 = vmatpush.bf16.msra.mxu0 0
      %3852 = vmatpush.bf16.msra.mxu0 0
      %3853 = vmatpush.bf16.msra.mxu0 0
      %3854 = vmatpush.bf16.msra.mxu0 0
      %3855 = vmatpush.bf16.msra.mxu0 0
      %3856 = vmatpush.bf16.msra.mxu0 0
      %3857 = vmatpush.bf16.msra.mxu0 0
      %3858 = vmatpush.bf16.msra.mxu0 %v3794
      %3859 = vmatmul.bf16.gmra.mxu0 %v3807
      %v3860 = vpop.f32.mrf.mxu0
      %v3861 = vadd.f32 %v3847, %v3860
      %v3862 = vpop.f32.mrf.mxu0
      %v3863 = vadd.f32 %v3849, %v3862
      %3864 = vdwg.mxu0
      %v3865 = vadd.f32 %v3833, %v3861
      %3866 = vadd.xlane.f32.xlu0 %v3865
      %v3867 = vpop.xlane.xlu0 %3866
      %v3868 = vadd.f32 %v3835, %v3863
      %3869 = vadd.xlane.f32.xlu0 %v3868
      %v3870 = vpop.xlane.xlu0 %3869
      %v3871 = vmul.f32 %v3867, 0.00390625
      %v3872 = vmul.f32 %v3870, 0.00390625
      %v3873 = vmul.f32 %v3833, %v3833
      %v3874 = vmul.f32 %v3861, %v3861
      %v3875 = vmul.f32 %v3835, %v3835
      %v3876 = vmul.f32 %v3863, %v3863
      %v3877 = vadd.f32 %v3873, %v3874
      %3878 = vadd.xlane.f32.xlu0 %v3877
      %v3879 = vpop.xlane.xlu0 %3878
      %v3880 = vadd.f32 %v3875, %v3876
      %3881 = vadd.xlane.f32.xlu0 %v3880
      %v3882 = vpop.xlane.xlu0 %3881
      %v3883 = vmul.f32 %v3879, 0.00390625
      %v3884 = vmul.f32 %v3882, 0.00390625
      %v3885 = vmul.f32 %v3871, %v3871
      %v3886 = vmul.f32 %v3872, %v3872
      %v3887 = vsub.f32 %v3883, %v3885
      %v3888 = vsub.f32 %v3884, %v3886
      %v3889 = vsub.f32 %v3833, %v3871
      %v3890 = vsub.f32 %v3861, %v3871
      %v3891 = vsub.f32 %v3835, %v3872
      %v3892 = vsub.f32 %v3863, %v3872
      %v3893 = vmax.f32 %v3887, 0.0
      %v3894 = vmax.f32 %v3888, 0.0
      %v3895 = vadd.f32 %v3893, 1e-05
      %v3896 = vadd.f32 %v3894, 1e-05
      %v3897 = vrsqrt.pop %v3895
      %v3898 = vmul.f32 %v3897, %v3895
      %v3899 = vmul.f32 %v3898, %v3897
      %v3900 = vmul.f32 0.5, %v3899
      %v3901 = vsub.f32 1.5, %v3900
      %v3902 = vmul.f32 %v3897, %v3901
      %vm3903 = vweird.f32 %v3895
      %vm3904 = vweird.f32 %v3897
      %vm3905 = vmor %vm3903, %vm3904
      %v3906 = vsel %vm3905, %v3897, %v3902
      %v3907 = vrsqrt.pop %v3896
      %v3908 = vmul.f32 %v3907, %v3896
      %v3909 = vmul.f32 %v3908, %v3907
      %v3910 = vmul.f32 0.5, %v3909
      %v3911 = vsub.f32 1.5, %v3910
      %v3912 = vmul.f32 %v3907, %v3911
      %vm3913 = vweird.f32 %v3896
      %vm3914 = vweird.f32 %v3907
      %vm3915 = vmor %vm3913, %vm3914
      %v3916 = vsel %vm3915, %v3907, %v3912
      %v3917 = vmul.f32 %v3889, %v3906
      %v3918 = vmul.f32 %v3890, %v3906
      %v3919 = vmul.f32 %v3891, %v3916
      %v3920 = vmul.f32 %v3892, %v3916
      %vm3921 = vcmp.ge.f32.partialorder %v3917, 0.0
      %vm3922 = vcmp.ge.f32.partialorder %v3918, 0.0
      %vm3923 = vcmp.ge.f32.partialorder %v3919, 0.0
      %vm3924 = vcmp.ge.f32.partialorder %v3920, 0.0
      %v3925 = vmul.f32 %v3917, 0.2
      %v3926 = vmul.f32 %v3918, 0.2
      %v3927 = vmul.f32 %v3919, 0.2
      %v3928 = vmul.f32 %v3920, 0.2
      %v3929 = vsel %vm3921, %v3917, %v3925
      %v3930 = vsel %vm3922, %v3918, %v3926
      %v3931 = vsel %vm3923, %v3919, %v3927
      %v3932 = vsel %vm3924, %v3920, %v3928
      %3937 = vrot.lane.b32.xlu0 %v3929, 17
      %v3938 = vpop.permute.xlu0 %3937
      %3939 = vrot.lane.b32.xlu0 %v3930, 17
      %v3940 = vpop.permute.xlu0 %3939
      %3941 = vrot.lane.b32.xlu0 %v3931, 17
      %v3942 = vpop.permute.xlu0 %3941
      %3943 = vrot.lane.b32.xlu0 %v3932, 17
      %v3944 = vpop.permute.xlu0 %3943
      %v3945 = vsel %vm909, %v3938, %v3940
      %v3946 = vsel %vm909, %v3942, %v3944
      %v3953 = vsel %vm909, 0.0, %v3938
      %v3954 = vsel %vm909, 0.0, %v3942
      %v3955 = vsel %vm909, %v3940, 0.0
      %v3956 = vsel %vm909, %v3944, 0.0
      %v3957 = vmul.f32 %v3953, %v1198
      %v3958 = vmul.f32 %v3945, %v1199
      %v3959 = vmul.f32 %v3954, %v1198
      %v3960 = vmul.f32 %v3946, %v1199
      %v3961 = vmul.f32 %v3953, %v1209
      %v3962 = vmul.f32 %v3945, %v1212
      %v3963 = vmul.f32 %v3955, %v1211
      %v3964 = vmul.f32 %v3954, %v1209
      %v3965 = vmul.f32 %v3946, %v1212
      %v3966 = vmul.f32 %v3956, %v1211
      %v3967 = vmul.f32 %v3953, %v1222
      %v3968 = vmul.f32 %v3945, %v1225
      %v3969 = vmul.f32 %v3955, %v1224
      %v3970 = vmul.f32 %v3954, %v1222
      %v3971 = vmul.f32 %v3946, %v1225
      %v3972 = vmul.f32 %v3956, %v1224
      %v3973 = vmul.f32 %v3953, %v1233
      %v3974 = vmul.f32 %v3945, %v1236
      %v3975 = vmul.f32 %v3955, %v1235
      %v3976 = vmul.f32 %v3954, %v1233
      %v3977 = vmul.f32 %v3946, %v1236
      %v3978 = vmul.f32 %v3956, %v1235
      %v3979 = vmul.f32 %v3953, %v1244
      %v3980 = vmul.f32 %v3945, %v1247
      %v3981 = vmul.f32 %v3955, %v1246
      %v3982 = vmul.f32 %v3954, %v1244
      %v3983 = vmul.f32 %v3946, %v1247
      %v3984 = vmul.f32 %v3956, %v1246
      %v3985 = vmul.f32 %v3953, %v1255
      %v3986 = vmul.f32 %v3945, %v1258
      %v3987 = vmul.f32 %v3955, %v1257
      %v3988 = vmul.f32 %v3954, %v1255
      %v3989 = vmul.f32 %v3946, %v1258
      %v3990 = vmul.f32 %v3956, %v1257
      %3995 = vrot.lane.b32.xlu0 %v3953, 127
      %v3996 = vpop.permute.xlu0 %3995
      %3997 = vrot.lane.b32.xlu0 %v3945, 127
      %v3998 = vpop.permute.xlu0 %3997
      %3999 = vrot.lane.b32.xlu0 %v3955, 127
      %v4000 = vpop.permute.xlu0 %3999
      %4001 = vrot.lane.b32.xlu0 %v3954, 127
      %v4002 = vpop.permute.xlu0 %4001
      %4003 = vrot.lane.b32.xlu0 %v3946, 127
      %v4004 = vpop.permute.xlu0 %4003
      %4005 = vrot.lane.b32.xlu0 %v3956, 127
      %v4006 = vpop.permute.xlu0 %4005
      %v4007 = vsel %vm997, %v3996, %v3998
      %v4008 = vsel %vm997, %v3998, %v4000
      %v4009 = vsel %vm997, %v4002, %v4004
      %v4010 = vsel %vm997, %v4004, %v4006
      %4021 = vrot.lane.b32.xlu0 %v3961, 126
      %v4022 = vpop.permute.xlu0 %4021
      %4023 = vrot.lane.b32.xlu0 %v3962, 126
      %v4024 = vpop.permute.xlu0 %4023
      %4025 = vrot.lane.b32.xlu0 %v3963, 126
      %v4026 = vpop.permute.xlu0 %4025
      %4027 = vrot.lane.b32.xlu0 %v3964, 126
      %v4028 = vpop.permute.xlu0 %4027
      %4029 = vrot.lane.b32.xlu0 %v3965, 126
      %v4030 = vpop.permute.xlu0 %4029
      %4031 = vrot.lane.b32.xlu0 %v3966, 126
      %v4032 = vpop.permute.xlu0 %4031
      %v4033 = vsel %vm1014, %v4022, %v4024
      %v4034 = vsel %vm1014, %v4024, %v4026
      %v4035 = vsel %vm1014, %v4028, %v4030
      %v4036 = vsel %vm1014, %v4030, %v4032
      %4047 = vrot.lane.b32.xlu0 %v3967, 112
      %v4048 = vpop.permute.xlu0 %4047
      %4049 = vrot.lane.b32.xlu0 %v3968, 112
      %v4050 = vpop.permute.xlu0 %4049
      %4051 = vrot.lane.b32.xlu0 %v3969, 112
      %v4052 = vpop.permute.xlu0 %4051
      %4053 = vrot.lane.b32.xlu0 %v3970, 112
      %v4054 = vpop.permute.xlu0 %4053
      %4055 = vrot.lane.b32.xlu0 %v3971, 112
      %v4056 = vpop.permute.xlu0 %4055
      %4057 = vrot.lane.b32.xlu0 %v3972, 112
      %v4058 = vpop.permute.xlu0 %4057
      %v4059 = vsel %vm1031, %v4048, %v4050
      %v4060 = vsel %vm1031, %v4050, %v4052
      %v4061 = vsel %vm1031, %v4054, %v4056
      %v4062 = vsel %vm1031, %v4056, %v4058
      %4067 = vrot.lane.b32.xlu0 %v3953, 111
      %v4068 = vpop.permute.xlu0 %4067
      %4069 = vrot.lane.b32.xlu0 %v3945, 111
      %v4070 = vpop.permute.xlu0 %4069
      %4071 = vrot.lane.b32.xlu0 %v3955, 111
      %v4072 = vpop.permute.xlu0 %4071
      %4073 = vrot.lane.b32.xlu0 %v3954, 111
      %v4074 = vpop.permute.xlu0 %4073
      %4075 = vrot.lane.b32.xlu0 %v3946, 111
      %v4076 = vpop.permute.xlu0 %4075
      %4077 = vrot.lane.b32.xlu0 %v3956, 111
      %v4078 = vpop.permute.xlu0 %4077
      %v4079 = vsel %vm1045, %v4068, %v4070
      %v4080 = vsel %vm1045, %v4070, %v4072
      %v4081 = vsel %vm1045, %v4074, %v4076
      %v4082 = vsel %vm1045, %v4076, %v4078
      %4093 = vrot.lane.b32.xlu0 %v3973, 110
      %v4094 = vpop.permute.xlu0 %4093
      %4095 = vrot.lane.b32.xlu0 %v3974, 110
      %v4096 = vpop.permute.xlu0 %4095
      %4097 = vrot.lane.b32.xlu0 %v3975, 110
      %v4098 = vpop.permute.xlu0 %4097
      %4099 = vrot.lane.b32.xlu0 %v3976, 110
      %v4100 = vpop.permute.xlu0 %4099
      %4101 = vrot.lane.b32.xlu0 %v3977, 110
      %v4102 = vpop.permute.xlu0 %4101
      %4103 = vrot.lane.b32.xlu0 %v3978, 110
      %v4104 = vpop.permute.xlu0 %4103
      %v4105 = vsel %vm1062, %v4094, %v4096
      %v4106 = vsel %vm1062, %v4096, %v4098
      %v4107 = vsel %vm1062, %v4100, %v4102
      %v4108 = vsel %vm1062, %v4102, %v4104
      %4119 = vrot.lane.b32.xlu0 %v3979, 96
      %v4120 = vpop.permute.xlu0 %4119
      %4121 = vrot.lane.b32.xlu0 %v3980, 96
      %v4122 = vpop.permute.xlu0 %4121
      %4123 = vrot.lane.b32.xlu0 %v3981, 96
      %v4124 = vpop.permute.xlu0 %4123
      %4125 = vrot.lane.b32.xlu0 %v3982, 96
      %v4126 = vpop.permute.xlu0 %4125
      %4127 = vrot.lane.b32.xlu0 %v3983, 96
      %v4128 = vpop.permute.xlu0 %4127
      %4129 = vrot.lane.b32.xlu0 %v3984, 96
      %v4130 = vpop.permute.xlu0 %4129
      %v4131 = vsel %vm1079, %v4120, %v4122
      %v4132 = vsel %vm1079, %v4122, %v4124
      %v4133 = vsel %vm1079, %v4126, %v4128
      %v4134 = vsel %vm1079, %v4128, %v4130
      %4139 = vrot.lane.b32.xlu0 %v3953, 95
      %v4140 = vpop.permute.xlu0 %4139
      %4141 = vrot.lane.b32.xlu0 %v3945, 95
      %v4142 = vpop.permute.xlu0 %4141
      %4143 = vrot.lane.b32.xlu0 %v3955, 95
      %v4144 = vpop.permute.xlu0 %4143
      %4145 = vrot.lane.b32.xlu0 %v3954, 95
      %v4146 = vpop.permute.xlu0 %4145
      %4147 = vrot.lane.b32.xlu0 %v3946, 95
      %v4148 = vpop.permute.xlu0 %4147
      %4149 = vrot.lane.b32.xlu0 %v3956, 95
      %v4150 = vpop.permute.xlu0 %4149
      %v4151 = vsel %vm1093, %v4140, %v4142
      %v4152 = vsel %vm1093, %v4142, %v4144
      %v4153 = vsel %vm1093, %v4146, %v4148
      %v4154 = vsel %vm1093, %v4148, %v4150
      %4165 = vrot.lane.b32.xlu0 %v3985, 94
      %v4166 = vpop.permute.xlu0 %4165
      %4167 = vrot.lane.b32.xlu0 %v3986, 94
      %v4168 = vpop.permute.xlu0 %4167
      %4169 = vrot.lane.b32.xlu0 %v3987, 94
      %v4170 = vpop.permute.xlu0 %4169
      %4171 = vrot.lane.b32.xlu0 %v3988, 94
      %v4172 = vpop.permute.xlu0 %4171
      %4173 = vrot.lane.b32.xlu0 %v3989, 94
      %v4174 = vpop.permute.xlu0 %4173
      %4175 = vrot.lane.b32.xlu0 %v3990, 94
      %v4176 = vpop.permute.xlu0 %4175
      %v4177 = vsel %vm1107, %v4166, %v4168
      %v4178 = vsel %vm1107, %v4168, %v4170
      %v4179 = vsel %vm1107, %v4172, %v4174
      %v4180 = vsel %vm1107, %v4174, %v4176
      %v4185 = vpack.c.bf16 %v3959, %v3957
      %v4186 = vpack.c.bf16 %v3960, %v3958
      %v4187 = vpack.c.bf16 %v4009, %v4007
      %v4188 = vpack.c.bf16 %v4010, %v4008
      %v4189 = vpack.c.bf16 %v4035, %v4033
      %v4190 = vpack.c.bf16 %v4036, %v4034
      %v4191 = vpack.c.bf16 %v4061, %v4059
      %v4192 = vpack.c.bf16 %v4062, %v4060
      %v4193 = vpack.c.bf16 %v4081, %v4079
      %v4194 = vpack.c.bf16 %v4082, %v4080
      %v4195 = vpack.c.bf16 %v4107, %v4105
      %v4196 = vpack.c.bf16 %v4108, %v4106
      %v4197 = vpack.c.bf16 %v4133, %v4131
      %v4198 = vpack.c.bf16 %v4134, %v4132
      %v4199 = vpack.c.bf16 %v4153, %v4151
      %v4200 = vpack.c.bf16 %v4154, %v4152
      %v4201 = vpack.c.bf16 %v4179, %v4177
      %v4202 = vpack.c.bf16 %v4180, %v4178
      %v4203 = vld [vmem:[%s33] sm:$0xff]
      %v4204 = vld [vmem:[%s33 + $0x8] sm:$0xff]
      %v4207 = vunpack.c.l.b16 %v4203
      %v4208 = vunpack.c.h.b16 %v4203
      %v4209 = vunpack.c.l.b16 %v4204
      %v4210 = vunpack.c.h.b16 %v4204
      %v4211 = vpack.c.b16 %v4209, %v4207
      %v4212 = vpack.c.b16 %v4210, %v4208
      %v4215 = vsel %vm942, %v4212, 0
      %4217 = vmatpush.bf16.msra.mxu0 %v4199
      %4218 = vmatpush.bf16.msra.mxu0 %v4197
      %4219 = vmatpush.bf16.msra.mxu0 %v4195
      %4220 = vmatpush.bf16.msra.mxu0 %v4193
      %4221 = vmatpush.bf16.msra.mxu0 %v4191
      %4222 = vmatpush.bf16.msra.mxu0 %v4189
      %4223 = vmatpush.bf16.msra.mxu0 %v4187
      %4224 = vmatpush.bf16.msra.mxu0 %v4185
      %4225 = vmatmul.bf16.gmra.mxu0 %v4211
      %v4226 = vpop.f32.mrf.mxu0
      %v4227 = vadd.f32 0.0, %v4226
      %v4228 = vpop.f32.mrf.mxu0
      %v4229 = vadd.f32 0.0, %v4228
      %4230 = vdwg.mxu0
      %4231 = vmatpush.bf16.msra.mxu0 0
      %4232 = vmatpush.bf16.msra.mxu0 0
      %4233 = vmatpush.bf16.msra.mxu0 0
      %4234 = vmatpush.bf16.msra.mxu0 0
      %4235 = vmatpush.bf16.msra.mxu0 0
      %4236 = vmatpush.bf16.msra.mxu0 0
      %4237 = vmatpush.bf16.msra.mxu0 0
      %4238 = vmatpush.bf16.msra.mxu0 %v4201
      %4239 = vmatmul.bf16.gmra.mxu0 %v4215
      %v4240 = vpop.f32.mrf.mxu0
      %v4241 = vadd.f32 %v4227, %v4240
      %v4242 = vpop.f32.mrf.mxu0
      %v4243 = vadd.f32 %v4229, %v4242
      %4244 = vdwg.mxu0
      %4245 = vmatpush.bf16.msra.mxu0 %v4200
      %4246 = vmatpush.bf16.msra.mxu0 %v4198
      %4247 = vmatpush.bf16.msra.mxu0 %v4196
      %4248 = vmatpush.bf16.msra.mxu0 %v4194
      %4249 = vmatpush.bf16.msra.mxu0 %v4192
      %4250 = vmatpush.bf16.msra.mxu0 %v4190
      %4251 = vmatpush.bf16.msra.mxu0 %v4188
      %4252 = vmatpush.bf16.msra.mxu0 %v4186
      %4253 = vmatmul.bf16.gmra.mxu0 %v4211
      %v4254 = vpop.f32.mrf.mxu0
      %v4255 = vadd.f32 0.0, %v4254
      %v4256 = vpop.f32.mrf.mxu0
      %v4257 = vadd.f32 0.0, %v4256
      %4258 = vdwg.mxu0
      %4259 = vmatpush.bf16.msra.mxu0 0
      %4260 = vmatpush.bf16.msra.mxu0 0
      %4261 = vmatpush.bf16.msra.mxu0 0
      %4262 = vmatpush.bf16.msra.mxu0 0
      %4263 = vmatpush.bf16.msra.mxu0 0
      %4264 = vmatpush.bf16.msra.mxu0 0
      %4265 = vmatpush.bf16.msra.mxu0 0
      %4266 = vmatpush.bf16.msra.mxu0 %v4202
      %4267 = vmatmul.bf16.gmra.mxu0 %v4215
      %v4268 = vpop.f32.mrf.mxu0
      %v4269 = vadd.f32 %v4255, %v4268
      %v4270 = vpop.f32.mrf.mxu0
      %v4271 = vadd.f32 %v4257, %v4270
      %4272 = vdwg.mxu0
      %v4273 = vadd.f32 %v4241, %v4269
      %4274 = vadd.xlane.f32.xlu0 %v4273
      %v4275 = vpop.xlane.xlu0 %4274
      %v4276 = vadd.f32 %v4243, %v4271
      %4277 = vadd.xlane.f32.xlu0 %v4276
      %v4278 = vpop.xlane.xlu0 %4277
      %v4279 = vmul.f32 %v4275, 0.00390625
      %v4280 = vmul.f32 %v4278, 0.00390625
      %v4281 = vmul.f32 %v4241, %v4241
      %v4282 = vmul.f32 %v4269, %v4269
      %v4283 = vmul.f32 %v4243, %v4243
      %v4284 = vmul.f32 %v4271, %v4271
      %v4285 = vadd.f32 %v4281, %v4282
      %4286 = vadd.xlane.f32.xlu0 %v4285
      %v4287 = vpop.xlane.xlu0 %4286
      %v4288 = vadd.f32 %v4283, %v4284
      %4289 = vadd.xlane.f32.xlu0 %v4288
      %v4290 = vpop.xlane.xlu0 %4289
      %v4291 = vmul.f32 %v4287, 0.00390625
      %v4292 = vmul.f32 %v4290, 0.00390625
      %v4293 = vmul.f32 %v4279, %v4279
      %v4294 = vmul.f32 %v4280, %v4280
      %v4295 = vsub.f32 %v4291, %v4293
      %v4296 = vsub.f32 %v4292, %v4294
      %v4297 = vsub.f32 %v4241, %v4279
      %v4298 = vsub.f32 %v4269, %v4279
      %v4299 = vsub.f32 %v4243, %v4280
      %v4300 = vsub.f32 %v4271, %v4280
      %v4301 = vmax.f32 %v4295, 0.0
      %v4302 = vmax.f32 %v4296, 0.0
      %v4303 = vadd.f32 %v4301, 1e-05
      %v4304 = vadd.f32 %v4302, 1e-05
      %v4305 = vrsqrt.pop %v4303
      %v4306 = vmul.f32 %v4305, %v4303
      %v4307 = vmul.f32 %v4306, %v4305
      %v4308 = vmul.f32 0.5, %v4307
      %v4309 = vsub.f32 1.5, %v4308
      %v4310 = vmul.f32 %v4305, %v4309
      %vm4311 = vweird.f32 %v4303
      %vm4312 = vweird.f32 %v4305
      %vm4313 = vmor %vm4311, %vm4312
      %v4314 = vsel %vm4313, %v4305, %v4310
      %v4315 = vrsqrt.pop %v4304
      %v4316 = vmul.f32 %v4315, %v4304
      %v4317 = vmul.f32 %v4316, %v4315
      %v4318 = vmul.f32 0.5, %v4317
      %v4319 = vsub.f32 1.5, %v4318
      %v4320 = vmul.f32 %v4315, %v4319
      %vm4321 = vweird.f32 %v4304
      %vm4322 = vweird.f32 %v4315
      %vm4323 = vmor %vm4321, %vm4322
      %v4324 = vsel %vm4323, %v4315, %v4320
      %v4325 = vmul.f32 %v4297, %v4314
      %v4326 = vmul.f32 %v4298, %v4314
      %v4327 = vmul.f32 %v4299, %v4324
      %v4328 = vmul.f32 %v4300, %v4324
      %vm4329 = vcmp.ge.f32.partialorder %v4325, 0.0
      %vm4330 = vcmp.ge.f32.partialorder %v4326, 0.0
      %vm4331 = vcmp.ge.f32.partialorder %v4327, 0.0
      %vm4332 = vcmp.ge.f32.partialorder %v4328, 0.0
      %v4333 = vmul.f32 %v4325, 0.2
      %v4334 = vmul.f32 %v4326, 0.2
      %v4335 = vmul.f32 %v4327, 0.2
      %v4336 = vmul.f32 %v4328, 0.2
      %v4337 = vsel %vm4329, %v4325, %v4333
      %v4338 = vsel %vm4330, %v4326, %v4334
      %v4339 = vsel %vm4331, %v4327, %v4335
      %v4340 = vsel %vm4332, %v4328, %v4336
      %v4341 = vld [vmem:[%s35] sm:$0x1]
      %v4342 = vpack.c.bf16 %v4339, %v4337
      %v4343 = vpack.c.bf16 %v4340, %v4338
      %v4344 = vld [vmem:[#allocation2] sm:$0x1]
      %4346 = vset.pattern.permute.xlu0 0
      %4347 = vperm.xlu0 %4346, %v4344
      %v4348 = vpop.permute.xlu0 %4347
      %v4350 = vperm.slane %v4348, 0
      %v4352 = vsel %vm942, %v4341, 0
      %4354 = vmatpush.bf16.msra.mxu0 0
      %4355 = vmatpush.bf16.msra.mxu0 0
      %4356 = vmatpush.bf16.msra.mxu0 0
      %4357 = vmatpush.bf16.msra.mxu0 0
      %4358 = vmatpush.bf16.msra.mxu0 0
      %4359 = vmatpush.bf16.msra.mxu0 0
      %4360 = vmatpush.bf16.msra.mxu0 0
      %4361 = vmatpush.bf16.msra.mxu0 %v4342
      %4362 = vmatmul.bf16.gmra.mxu0 %v4352
      %v4363 = vpop.f32.mrf.mxu0
      %v4364 = vadd.f32 %v4350, %v4363
      %v4365 = vpop.f32.mrf.mxu0
      %4366 = vdwg.mxu0
      %4367 = vmatpush.bf16.msra.mxu0 0
      %4368 = vmatpush.bf16.msra.mxu0 0
      %4369 = vmatpush.bf16.msra.mxu0 0
      %4370 = vmatpush.bf16.msra.mxu0 0
      %4371 = vmatpush.bf16.msra.mxu0 0
      %4372 = vmatpush.bf16.msra.mxu0 0
      %4373 = vmatpush.bf16.msra.mxu0 0
      %4374 = vmatpush.bf16.msra.mxu0 %v4343
      %4375 = vmatmul.bf16.gmra.mxu0 %v4352
      %v4376 = vpop.f32.mrf.mxu0
      %v4377 = vadd.f32 %v4350, %v4376
      %v4378 = vpop.f32.mrf.mxu0
      %4379 = vdwg.mxu0
      %v4380 = vld [vmem:[%s39] sm:$0xf]
      %v4381 = vld [vmem:[%s41] sm:$0xff]
      %4383 = vset.pattern.permute.xlu0 0
      %4384 = vperm.xlu0 %4383, %v4381
      %v4385 = vpop.permute.xlu0 %4384
      %v4388 = vsel %vm1142, %v4380, 0
      %4390 = vmatpush.bf16.msra.mxu0 0
      %4391 = vmatpush.bf16.msra.mxu0 0
      %4392 = vmatpush.bf16.msra.mxu0 0
      %4393 = vmatpush.bf16.msra.mxu0 0
      %4394 = vmatpush.bf16.msra.mxu0 0
      %4395 = vmatpush.bf16.msra.mxu0 0
      %4396 = vmatpush.bf16.msra.mxu0 0
      %4397 = vmatpush.bf16.msra.mxu0 %v1149
      %4398 = vmatmul.bf16.gmra.mxu0 %v4388
      %v4399 = vpop.f32.mrf.mxu0
      %v4400 = vadd.f32 %v4385, %v4399
      %v4401 = vpop.f32.mrf.mxu0
      %4402 = vdwg.mxu0
      %4403 = vmatpush.bf16.msra.mxu0 0
      %4404 = vmatpush.bf16.msra.mxu0 0
      %4405 = vmatpush.bf16.msra.mxu0 0
      %4406 = vmatpush.bf16.msra.mxu0 0
      %4407 = vmatpush.bf16.msra.mxu0 0
      %4408 = vmatpush.bf16.msra.mxu0 0
      %4409 = vmatpush.bf16.msra.mxu0 0
      %4410 = vmatpush.bf16.msra.mxu0 %v1152
      %4411 = vmatmul.bf16.gmra.mxu0 %v4388
      %v4412 = vpop.f32.mrf.mxu0
      %v4413 = vadd.f32 %v4385, %v4412
      %v4414 = vpop.f32.mrf.mxu0
      %4415 = vdwg.mxu0
      %v4416 = vmax.f32 %v4400, 0.0
      %v4417 = vmax.f32 %v4413, 0.0
      %4420 = vrot.lane.b32.xlu0 %v4416, 17
      %v4421 = vpop.permute.xlu0 %4420
      %4422 = vrot.lane.b32.xlu0 %v4417, 17
      %v4423 = vpop.permute.xlu0 %4422
      %v4424 = vsel %vm909, %v4421, %v4423
      %v4428 = vsel %vm909, 0.0, %v4421
      %v4429 = vsel %vm909, %v4423, 0.0
      %v4430 = vmul.f32 %v4428, %v1198
      %v4431 = vmul.f32 %v4424, %v1199
      %v4432 = vmul.f32 %v4428, %v1209
      %v4433 = vmul.f32 %v4424, %v1212
      %v4434 = vmul.f32 %v4429, %v1211
      %v4435 = vmul.f32 %v4428, %v1222
      %v4436 = vmul.f32 %v4424, %v1225
      %v4437 = vmul.f32 %v4429, %v1224
      %v4438 = vmul.f32 %v4428, %v1233
      %v4439 = vmul.f32 %v4424, %v1236
      %v4440 = vmul.f32 %v4429, %v1235
      %v4441 = vmul.f32 %v4428, %v1244
      %v4442 = vmul.f32 %v4424, %v1247
      %v4443 = vmul.f32 %v4429, %v1246
      %v4444 = vmul.f32 %v4428, %v1255
      %v4445 = vmul.f32 %v4424, %v1258
      %v4446 = vmul.f32 %v4429, %v1257
      %4449 = vrot.lane.b32.xlu0 %v4428, 127
      %v4450 = vpop.permute.xlu0 %4449
      %4451 = vrot.lane.b32.xlu0 %v4424, 127
      %v4452 = vpop.permute.xlu0 %4451
      %4453 = vrot.lane.b32.xlu0 %v4429, 127
      %v4454 = vpop.permute.xlu0 %4453
      %v4455 = vsel %vm997, %v4450, %v4452
      %v4456 = vsel %vm997, %v4452, %v4454
      %4462 = vrot.lane.b32.xlu0 %v4432, 126
      %v4463 = vpop.permute.xlu0 %4462
      %4464 = vrot.lane.b32.xlu0 %v4433, 126
      %v4465 = vpop.permute.xlu0 %4464
      %4466 = vrot.lane.b32.xlu0 %v4434, 126
      %v4467 = vpop.permute.xlu0 %4466
      %v4468 = vsel %vm1014, %v4463, %v4465
      %v4469 = vsel %vm1014, %v4465, %v4467
      %4475 = vrot.lane.b32.xlu0 %v4435, 112
      %v4476 = vpop.permute.xlu0 %4475
      %4477 = vrot.lane.b32.xlu0 %v4436, 112
      %v4478 = vpop.permute.xlu0 %4477
      %4479 = vrot.lane.b32.xlu0 %v4437, 112
      %v4480 = vpop.permute.xlu0 %4479
      %v4481 = vsel %vm1031, %v4476, %v4478
      %v4482 = vsel %vm1031, %v4478, %v4480
      %4485 = vrot.lane.b32.xlu0 %v4428, 111
      %v4486 = vpop.permute.xlu0 %4485
      %4487 = vrot.lane.b32.xlu0 %v4424, 111
      %v4488 = vpop.permute.xlu0 %4487
      %4489 = vrot.lane.b32.xlu0 %v4429, 111
      %v4490 = vpop.permute.xlu0 %4489
      %v4491 = vsel %vm1045, %v4486, %v4488
      %v4492 = vsel %vm1045, %v4488, %v4490
      %4498 = vrot.lane.b32.xlu0 %v4438, 110
      %v4499 = vpop.permute.xlu0 %4498
      %4500 = vrot.lane.b32.xlu0 %v4439, 110
      %v4501 = vpop.permute.xlu0 %4500
      %4502 = vrot.lane.b32.xlu0 %v4440, 110
      %v4503 = vpop.permute.xlu0 %4502
      %v4504 = vsel %vm1062, %v4499, %v4501
      %v4505 = vsel %vm1062, %v4501, %v4503
      %4511 = vrot.lane.b32.xlu0 %v4441, 96
      %v4512 = vpop.permute.xlu0 %4511
      %4513 = vrot.lane.b32.xlu0 %v4442, 96
      %v4514 = vpop.permute.xlu0 %4513
      %4515 = vrot.lane.b32.xlu0 %v4443, 96
      %v4516 = vpop.permute.xlu0 %4515
      %v4517 = vsel %vm1079, %v4512, %v4514
      %v4518 = vsel %vm1079, %v4514, %v4516
      %4521 = vrot.lane.b32.xlu0 %v4428, 95
      %v4522 = vpop.permute.xlu0 %4521
      %4523 = vrot.lane.b32.xlu0 %v4424, 95
      %v4524 = vpop.permute.xlu0 %4523
      %4525 = vrot.lane.b32.xlu0 %v4429, 95
      %v4526 = vpop.permute.xlu0 %4525
      %v4527 = vsel %vm1093, %v4522, %v4524
      %v4528 = vsel %vm1093, %v4524, %v4526
      %4534 = vrot.lane.b32.xlu0 %v4444, 94
      %v4535 = vpop.permute.xlu0 %4534
      %4536 = vrot.lane.b32.xlu0 %v4445, 94
      %v4537 = vpop.permute.xlu0 %4536
      %4538 = vrot.lane.b32.xlu0 %v4446, 94
      %v4539 = vpop.permute.xlu0 %4538
      %v4540 = vsel %vm1107, %v4535, %v4537
      %v4541 = vsel %vm1107, %v4537, %v4539
      %v4544 = vpack.c.bf16 %v4455, %v4430
      %v4545 = vpack.c.bf16 %v4456, %v4431
      %v4546 = vpack.c.bf16 %v4481, %v4468
      %v4547 = vpack.c.bf16 %v4482, %v4469
      %v4548 = vpack.c.bf16 %v4504, %v4491
      %v4549 = vpack.c.bf16 %v4505, %v4492
      %v4550 = vpack.c.bf16 %v4527, %v4517
      %v4551 = vpack.c.bf16 %v4528, %v4518
      %v4552 = vpack.c.bf16 %v4540, %v4540
      %v4553 = vpack.c.bf16 %v4541, %v4541
      %v4554 = vld [vmem:[%s43] sm:$0xf]
      %v4555 = vld [vmem:[%s45] sm:$0xff]
      %4557 = vset.pattern.permute.xlu0 0
      %4558 = vperm.xlu0 %4557, %v4555
      %v4559 = vpop.permute.xlu0 %4558
      %v4562 = vsel %vm1379, %v4554, 0
      %v4565 = vsel %vm1121, %v4552, 0
      %v4568 = vsel %vm1121, %v4553, 0
      %4570 = vmatpush.bf16.msra.mxu0 0
      %4571 = vmatpush.bf16.msra.mxu0 0
      %4572 = vmatpush.bf16.msra.mxu0 0
      %4573 = vmatpush.bf16.msra.mxu0 %v4565
      %4574 = vmatpush.bf16.msra.mxu0 %v4550
      %4575 = vmatpush.bf16.msra.mxu0 %v4548
      %4576 = vmatpush.bf16.msra.mxu0 %v4546
      %4577 = vmatpush.bf16.msra.mxu0 %v4544
      %4578 = vmatmul.bf16.gmra.mxu0 %v4562
      %v4579 = vpop.f32.mrf.mxu0
      %v4580 = vadd.f32 %v4559, %v4579
      %v4581 = vpop.f32.mrf.mxu0
      %4582 = vdwg.mxu0
      %4583 = vmatpush.bf16.msra.mxu0 0
      %4584 = vmatpush.bf16.msra.mxu0 0
      %4585 = vmatpush.bf16.msra.mxu0 0
      %4586 = vmatpush.bf16.msra.mxu0 %v4568
      %4587 = vmatpush.bf16.msra.mxu0 %v4551
      %4588 = vmatpush.bf16.msra.mxu0 %v4549
      %4589 = vmatpush.bf16.msra.mxu0 %v4547
      %4590 = vmatpush.bf16.msra.mxu0 %v4545
      %4591 = vmatmul.bf16.gmra.mxu0 %v4562
      %v4592 = vpop.f32.mrf.mxu0
      %v4593 = vadd.f32 %v4559, %v4592
      %v4594 = vpop.f32.mrf.mxu0
      %4595 = vdwg.mxu0
      %v4596 = vmax.f32 %v4580, 0.0
      %v4597 = vmax.f32 %v4593, 0.0
      %v4598 = vpack.c.bf16 %v4596, %v4596
      %v4599 = vpack.c.bf16 %v4597, %v4597
      %v4600 = vld [vmem:[%s9] sm:$0xf]
      %v4601 = vld [vmem:[%s9 + $0x4] sm:$0xf]
      %v4602 = vld [vmem:[%s9 + $0x8] sm:$0xf]
      %v4603 = vld [vmem:[%s9 + $0xc] sm:$0xf]
      %v4604 = vld [vmem:[%s9 + $0x10] sm:$0xf]
      %v4605 = vld [vmem:[%s9 + $0x14] sm:$0xf]
      %v4606 = vld [vmem:[%s9 + $0x18] sm:$0xf]
      %v4607 = vld [vmem:[%s9 + $0x1c] sm:$0xf]
      %v4608 = vld [vmem:[%s9 + $0x20] sm:$0xf]
      %v4609 = vld [vmem:[%s9 + $0x24] sm:$0xf]
      %v4610 = vld [vmem:[%s9 + $0x28] sm:$0xf]
      %v4611 = vld [vmem:[%s9 + $0x2c] sm:$0xf]
      %v4612 = vld [vmem:[%s9 + $0x30] sm:$0xf]
      %v4613 = vld [vmem:[%s9 + $0x34] sm:$0xf]
      %v4614 = vld [vmem:[%s9 + $0x38] sm:$0xf]
      %v4615 = vld [vmem:[%s9 + $0x3c] sm:$0xf]
      %v4616 = vld [vmem:[%s9 + $0x40] sm:$0xf]
      %v4617 = vld [vmem:[%s9 + $0x44] sm:$0xf]
      %v4618 = vld [vmem:[%s9 + $0x48] sm:$0xf]
      %v4619 = vld [vmem:[%s9 + $0x4c] sm:$0xf]
      %v4620 = vld [vmem:[%s9 + $0x50] sm:$0xf]
      %v4621 = vld [vmem:[%s9 + $0x54] sm:$0xf]
      %v4622 = vld [vmem:[%s9 + $0x58] sm:$0xf]
      %v4623 = vld [vmem:[%s9 + $0x5c] sm:$0xf]
      %v4624 = vld [vmem:[%s9 + $0x60] sm:$0xf]
      %v4625 = vld [vmem:[%s9 + $0x64] sm:$0xf]
      %v4626 = vld [vmem:[%s9 + $0x68] sm:$0xf]
      %v4627 = vld [vmem:[%s9 + $0x6c] sm:$0xf]
      %v4628 = vld [vmem:[%s9 + $0x70] sm:$0xf]
      %v4629 = vld [vmem:[%s9 + $0x74] sm:$0xf]
      %v4630 = vld [vmem:[%s9 + $0x78] sm:$0xf]
      %v4631 = vld [vmem:[%s9 + $0x7c] sm:$0xf]
      %v4664 = vunpack.c.l.b16 %v4600
      %v4665 = vunpack.c.l.b16 %v4601
      %v4666 = vunpack.c.l.b16 %v4602
      %v4667 = vunpack.c.l.b16 %v4603
      %v4668 = vunpack.c.l.b16 %v4604
      %v4669 = vunpack.c.l.b16 %v4605
      %v4670 = vunpack.c.l.b16 %v4606
      %v4671 = vunpack.c.l.b16 %v4607
      %v4672 = vunpack.c.l.b16 %v4608
      %v4673 = vunpack.c.l.b16 %v4609
      %v4674 = vunpack.c.l.b16 %v4610
      %v4675 = vunpack.c.l.b16 %v4611
      %v4676 = vunpack.c.l.b16 %v4612
      %v4677 = vunpack.c.l.b16 %v4613
      %v4678 = vunpack.c.l.b16 %v4614
      %v4679 = vunpack.c.l.b16 %v4615
      %v4680 = vunpack.c.l.b16 %v4616
      %v4681 = vunpack.c.l.b16 %v4617
      %v4682 = vunpack.c.l.b16 %v4618
      %v4683 = vunpack.c.l.b16 %v4619
      %v4684 = vunpack.c.l.b16 %v4620
      %v4685 = vunpack.c.l.b16 %v4621
      %v4686 = vunpack.c.l.b16 %v4622
      %v4687 = vunpack.c.l.b16 %v4623
      %v4688 = vunpack.c.l.b16 %v4624
      %v4689 = vunpack.c.l.b16 %v4625
      %v4690 = vunpack.c.l.b16 %v4626
      %v4691 = vunpack.c.l.b16 %v4627
      %v4692 = vunpack.c.l.b16 %v4628
      %v4693 = vunpack.c.l.b16 %v4629
      %v4694 = vunpack.c.l.b16 %v4630
      %v4695 = vunpack.c.l.b16 %v4631
      %v4696 = vpack.c.b16 %v4665, %v4664
      %v4697 = vpack.c.b16 %v4667, %v4666
      %v4698 = vpack.c.b16 %v4669, %v4668
      %v4699 = vpack.c.b16 %v4671, %v4670
      %v4700 = vpack.c.b16 %v4673, %v4672
      %v4701 = vpack.c.b16 %v4675, %v4674
      %v4702 = vpack.c.b16 %v4677, %v4676
      %v4703 = vpack.c.b16 %v4679, %v4678
      %v4704 = vpack.c.b16 %v4681, %v4680
      %v4705 = vpack.c.b16 %v4683, %v4682
      %v4706 = vpack.c.b16 %v4685, %v4684
      %v4707 = vpack.c.b16 %v4687, %v4686
      %v4708 = vpack.c.b16 %v4689, %v4688
      %v4709 = vpack.c.b16 %v4691, %v4690
      %v4710 = vpack.c.b16 %v4693, %v4692
      %v4711 = vpack.c.b16 %v4695, %v4694
      %4728 = vmatpush.bf16.msra.mxu0 %v4703
      %4729 = vmatpush.bf16.msra.mxu0 %v4702
      %4730 = vmatpush.bf16.msra.mxu0 %v4701
      %4731 = vmatpush.bf16.msra.mxu0 %v4700
      %4732 = vmatpush.bf16.msra.mxu0 %v4699
      %4733 = vmatpush.bf16.msra.mxu0 %v4698
      %4734 = vmatpush.bf16.msra.mxu0 %v4697
      %4735 = vmatpush.bf16.msra.mxu0 %v4696
      %4736 = vmatmul.bf16.gmra.mxu0 %v4598
      %v4737 = vpop.f32.mrf.mxu0
      %v4738 = vadd.f32 0.0, %v4737
      %v4739 = vpop.f32.mrf.mxu0
      %4740 = vdwg.mxu0
      %4741 = vmatpush.bf16.msra.mxu0 %v4711
      %4742 = vmatpush.bf16.msra.mxu0 %v4710
      %4743 = vmatpush.bf16.msra.mxu0 %v4709
      %4744 = vmatpush.bf16.msra.mxu0 %v4708
      %4745 = vmatpush.bf16.msra.mxu0 %v4707
      %4746 = vmatpush.bf16.msra.mxu0 %v4706
      %4747 = vmatpush.bf16.msra.mxu0 %v4705
      %4748 = vmatpush.bf16.msra.mxu0 %v4704
      %4749 = vmatmul.bf16.gmra.mxu0 %v4599
      %v4750 = vpop.f32.mrf.mxu0
      %v4751 = vadd.f32 %v4738, %v4750
      %v4752 = vpop.f32.mrf.mxu0
      %4753 = vdwg.mxu0
      %4755 = vrot.lane.b32.xlu0 %v4751, 9
      %v4756 = vpop.permute.xlu0 %4755
      %v4758 = vsel %vm1142, 0.0, %v4756
      %vm4759 = vcmask 596992
      %v4760 = vsel %vm4759, %v4758, 0.0
      %v4761 = vld [vmem:[%s5] sm:$0x3]
      %v4762 = vperm.slane %v4761, 0
      %v4763 = vmul.f32 %v4760, %v4762
      %v4764 = vperm.slane %v4761, 1
      %4766 = vrot.lane.b32.xlu0 %v4764, 2
      %v4767 = vpop.permute.xlu0 %4766
      %v4769 = vmul.f32 %v4760, %v4767
      %4771 = vrot.lane.b32.xlu0 %v4762, 8
      %v4772 = vpop.permute.xlu0 %4771
      %v4774 = vmul.f32 %v4760, %v4772
      %4775 = vrot.lane.b32.xlu0 %v4764, 10
      %v4776 = vpop.permute.xlu0 %4775
      %v4778 = vmul.f32 %v4760, %v4776
      %4779 = vrot.lane.b32.xlu0 %v4762, 16
      %v4780 = vpop.permute.xlu0 %4779
      %v4782 = vmul.f32 %v4760, %v4780
      %4783 = vrot.lane.b32.xlu0 %v4764, 18
      %v4784 = vpop.permute.xlu0 %4783
      %v4786 = vmul.f32 %v4760, %v4784
      %4788 = vrot.lane.b32.xlu0 %v4760, 127
      %v4789 = vpop.permute.xlu0 %4788
      %4792 = vrot.lane.b32.xlu0 %v4769, 126
      %v4793 = vpop.permute.xlu0 %4792
      %4796 = vrot.lane.b32.xlu0 %v4774, 120
      %v4797 = vpop.permute.xlu0 %4796
      %4799 = vrot.lane.b32.xlu0 %v4760, 119
      %v4800 = vpop.permute.xlu0 %4799
      %4803 = vrot.lane.b32.xlu0 %v4778, 118
      %v4804 = vpop.permute.xlu0 %4803
      %4807 = vrot.lane.b32.xlu0 %v4782, 112
      %v4808 = vpop.permute.xlu0 %4807
      %4810 = vrot.lane.b32.xlu0 %v4760, 111
      %v4811 = vpop.permute.xlu0 %4810
      %4814 = vrot.lane.b32.xlu0 %v4786, 110
      %v4815 = vpop.permute.xlu0 %4814
      %v4817 = vpack.c.bf16 %v4789, %v4763
      %v4818 = vpack.c.bf16 %v4797, %v4793
      %v4819 = vpack.c.bf16 %v4804, %v4800
      %v4820 = vpack.c.bf16 %v4811, %v4808
      %v4821 = vpack.c.bf16 %v4815, %v4815
      %v4822 = vld [vmem:[%s47] sm:$0xf]
      %v4823 = vld [vmem:[%s49] sm:$0xff]
      %4825 = vset.pattern.permute.xlu0 0
      %4826 = vperm.xlu0 %4825, %v4823
      %v4827 = vpop.permute.xlu0 %4826
      %v4830 = vsel %vm1379, %v4822, 0
      %v4833 = vsel %vm1121, %v4821, 0
      %4835 = vmatpush.bf16.msra.mxu0 0
      %4836 = vmatpush.bf16.msra.mxu0 0
      %4837 = vmatpush.bf16.msra.mxu0 0
      %4838 = vmatpush.bf16.msra.mxu0 %v4833
      %4839 = vmatpush.bf16.msra.mxu0 %v4820
      %4840 = vmatpush.bf16.msra.mxu0 %v4819
      %4841 = vmatpush.bf16.msra.mxu0 %v4818
      %4842 = vmatpush.bf16.msra.mxu0 %v4817
      %4843 = vmatmul.bf16.gmra.mxu0 %v4830
      %v4844 = vpop.f32.mrf.mxu0
      %v4845 = vadd.f32 %v4827, %v4844
      %v4846 = vpop.f32.mrf.mxu0
      %4847 = vdwg.mxu0
      %v4848 = vmax.f32 %v4845, 0.0
      %v4849 = vpack.c.bf16 %v4848, %v4848
      %v4850 = vld [vmem:[%s11] sm:$0xf]
      %v4851 = vld [vmem:[%s11 + $0x4] sm:$0xf]
      %v4852 = vld [vmem:[%s11 + $0x8] sm:$0xf]
      %v4853 = vld [vmem:[%s11 + $0xc] sm:$0xf]
      %v4854 = vld [vmem:[%s11 + $0x10] sm:$0xf]
      %v4855 = vld [vmem:[%s11 + $0x14] sm:$0xf]
      %v4856 = vld [vmem:[%s11 + $0x18] sm:$0xf]
      %v4857 = vld [vmem:[%s11 + $0x1c] sm:$0xf]
      %v4866 = vunpack.c.l.b16 %v4850
      %v4867 = vunpack.c.l.b16 %v4851
      %v4868 = vunpack.c.l.b16 %v4852
      %v4869 = vunpack.c.l.b16 %v4853
      %v4870 = vunpack.c.l.b16 %v4854
      %v4871 = vunpack.c.l.b16 %v4855
      %v4872 = vunpack.c.l.b16 %v4856
      %v4873 = vunpack.c.l.b16 %v4857
      %v4874 = vpack.c.b16 %v4867, %v4866
      %v4875 = vpack.c.b16 %v4869, %v4868
      %v4876 = vpack.c.b16 %v4871, %v4870
      %v4877 = vpack.c.b16 %v4873, %v4872
      %vm4882 = vcmask 523264
      %v4884 = vsel %vm4882, %v4849, 0
      %4886 = vmatpush.bf16.msra.mxu0 0
      %4887 = vmatpush.bf16.msra.mxu0 0
      %4888 = vmatpush.bf16.msra.mxu0 0
      %4889 = vmatpush.bf16.msra.mxu0 0
      %4890 = vmatpush.bf16.msra.mxu0 %v4877
      %4891 = vmatpush.bf16.msra.mxu0 %v4876
      %4892 = vmatpush.bf16.msra.mxu0 %v4875
      %4893 = vmatpush.bf16.msra.mxu0 %v4874
      %4894 = vmatmul.bf16.gmra.mxu0 %v4884
      %v4895 = vpop.f32.mrf.mxu0
      %v4896 = vadd.f32 0.0, %v4895
      %v4897 = vpop.f32.mrf.mxu0
      %4898 = vdwg.mxu0
      %4900 = vrot.lane.b32.xlu0 %v4896, 5
      %v4901 = vpop.permute.xlu0 %4900
      %vm4903 = vcmask 39936
      %v4904 = vsel %vm4903, 0.0, %v4901
      %vm4905 = vcmask 171008
      %v4906 = vsel %vm4905, %v4904, 0.0
      %v4907 = vld [vmem:[%s7] sm:$0x3]
      %v4908 = vperm.slane %v4907, 0
      %v4909 = vmul.f32 %v4906, %v4908
      %v4910 = vperm.slane %v4907, 1
      %4912 = vrot.lane.b32.xlu0 %v4910, 2
      %v4913 = vpop.permute.xlu0 %4912
      %v4915 = vmul.f32 %v4906, %v4913
      %4917 = vrot.lane.b32.xlu0 %v4908, 4
      %v4918 = vpop.permute.xlu0 %4917
      %v4920 = vmul.f32 %v4906, %v4918
      %4921 = vrot.lane.b32.xlu0 %v4910, 6
      %v4922 = vpop.permute.xlu0 %4921
      %v4924 = vmul.f32 %v4906, %v4922
      %4925 = vrot.lane.b32.xlu0 %v4908, 8
      %v4926 = vpop.permute.xlu0 %4925
      %v4928 = vmul.f32 %v4906, %v4926
      %4929 = vrot.lane.b32.xlu0 %v4910, 10
      %v4930 = vpop.permute.xlu0 %4929
      %v4932 = vmul.f32 %v4906, %v4930
      %4934 = vrot.lane.b32.xlu0 %v4906, 127
      %v4935 = vpop.permute.xlu0 %4934
      %4938 = vrot.lane.b32.xlu0 %v4915, 126
      %v4939 = vpop.permute.xlu0 %4938
      %4942 = vrot.lane.b32.xlu0 %v4920, 124
      %v4943 = vpop.permute.xlu0 %4942
      %4945 = vrot.lane.b32.xlu0 %v4906, 123
      %v4946 = vpop.permute.xlu0 %4945
      %4949 = vrot.lane.b32.xlu0 %v4924, 122
      %v4950 = vpop.permute.xlu0 %4949
      %4953 = vrot.lane.b32.xlu0 %v4928, 120
      %v4954 = vpop.permute.xlu0 %4953
      %4956 = vrot.lane.b32.xlu0 %v4906, 119
      %v4957 = vpop.permute.xlu0 %4956
      %4960 = vrot.lane.b32.xlu0 %v4932, 118
      %v4961 = vpop.permute.xlu0 %4960
      %v4963 = vpack.c.bf16 %v4935, %v4909
      %v4964 = vpack.c.bf16 %v4943, %v4939
      %v4965 = vpack.c.bf16 %v4950, %v4946
      %v4966 = vpack.c.bf16 %v4957, %v4954
      %v4967 = vpack.c.bf16 %v4961, %v4961
      %v4968 = vld [vmem:[%s51] sm:$0xf]
      %v4969 = vld [vmem:[%s53] sm:$0xff]
      %4971 = vset.pattern.permute.xlu0 0
      %4972 = vperm.xlu0 %4971, %v4969
      %v4973 = vpop.permute.xlu0 %4972
      %v4976 = vsel %vm1379, %v4968, 0
      %v4979 = vsel %vm1121, %v4967, 0
      %4981 = vmatpush.bf16.msra.mxu0 0
      %4982 = vmatpush.bf16.msra.mxu0 0
      %4983 = vmatpush.bf16.msra.mxu0 0
      %4984 = vmatpush.bf16.msra.mxu0 %v4979
      %4985 = vmatpush.bf16.msra.mxu0 %v4966
      %4986 = vmatpush.bf16.msra.mxu0 %v4965
      %4987 = vmatpush.bf16.msra.mxu0 %v4964
      %4988 = vmatpush.bf16.msra.mxu0 %v4963
      %4989 = vmatmul.bf16.gmra.mxu0 %v4976
      %v4990 = vpop.f32.mrf.mxu0
      %v4991 = vadd.f32 %v4973, %v4990
      %v4992 = vpop.f32.mrf.mxu0
      %4993 = vdwg.mxu0
      %v4994 = vmax.f32 %v4991, 0.0
      %v4995 = vpack.c.bf16 %v4994, %v4994
      %v4996 = vld [vmem:[%s13] sm:$0xff]
      %v4997 = vld [vmem:[%s13 + $0x8] sm:$0xff]
      %v5000 = vunpack.c.l.b16 %v4996
      %v5001 = vunpack.c.h.b16 %v4996
      %v5002 = vunpack.c.l.b16 %v4997
      %v5003 = vunpack.c.h.b16 %v4997
      %v5004 = vpack.c.b16 %v5002, %v5000
      %v5005 = vpack.c.b16 %v5003, %v5001
      %v5009 = vsel %vm942, %v4995, 0
      %5011 = vmatpush.bf16.msra.mxu0 0
      %5012 = vmatpush.bf16.msra.mxu0 0
      %5013 = vmatpush.bf16.msra.mxu0 0
      %5014 = vmatpush.bf16.msra.mxu0 0
      %5015 = vmatpush.bf16.msra.mxu0 0
      %5016 = vmatpush.bf16.msra.mxu0 0
      %5017 = vmatpush.bf16.msra.mxu0 0
      %5018 = vmatpush.bf16.msra.mxu0 %v5004
      %5019 = vmatmul.bf16.gmra.mxu0 %v5009
      %v5020 = vpop.f32.mrf.mxu0
      %v5021 = vadd.f32 0.0, %v5020
      %v5022 = vpop.f32.mrf.mxu0
      %5023 = vdwg.mxu0
      %5024 = vmatpush.bf16.msra.mxu0 0
      %5025 = vmatpush.bf16.msra.mxu0 0
      %5026 = vmatpush.bf16.msra.mxu0 0
      %5027 = vmatpush.bf16.msra.mxu0 0
      %5028 = vmatpush.bf16.msra.mxu0 0
      %5029 = vmatpush.bf16.msra.mxu0 0
      %5030 = vmatpush.bf16.msra.mxu0 0
      %5031 = vmatpush.bf16.msra.mxu0 %v5005
      %5032 = vmatmul.bf16.gmra.mxu0 %v5009
      %v5033 = vpop.f32.mrf.mxu0
      %v5034 = vadd.f32 0.0, %v5033
      %v5035 = vpop.f32.mrf.mxu0
      %5036 = vdwg.mxu0
      %5039 = vrot.lane.b32.xlu0 %v5021, 17
      %v5040 = vpop.permute.xlu0 %5039
      %5041 = vrot.lane.b32.xlu0 %v5034, 17
      %v5042 = vpop.permute.xlu0 %5041
      %v5043 = vsel %vm909, %v5040, %v5042
      %v5047 = vsel %vm909, 0.0, %v5040
      %v5048 = vsel %vm909, %v5042, 0.0
      %v5049 = vmul.f32 %v5047, %v1198
      %v5050 = vmul.f32 %v5043, %v1199
      %v5051 = vmul.f32 %v5047, %v1209
      %v5052 = vmul.f32 %v5043, %v1212
      %v5053 = vmul.f32 %v5048, %v1211
      %v5054 = vmul.f32 %v5047, %v1222
      %v5055 = vmul.f32 %v5043, %v1225
      %v5056 = vmul.f32 %v5048, %v1224
      %v5057 = vmul.f32 %v5047, %v1233
      %v5058 = vmul.f32 %v5043, %v1236
      %v5059 = vmul.f32 %v5048, %v1235
      %v5060 = vmul.f32 %v5047, %v1244
      %v5061 = vmul.f32 %v5043, %v1247
      %v5062 = vmul.f32 %v5048, %v1246
      %v5063 = vmul.f32 %v5047, %v1255
      %v5064 = vmul.f32 %v5043, %v1258
      %v5065 = vmul.f32 %v5048, %v1257
      %5068 = vrot.lane.b32.xlu0 %v5047, 127
      %v5069 = vpop.permute.xlu0 %5068
      %5070 = vrot.lane.b32.xlu0 %v5043, 127
      %v5071 = vpop.permute.xlu0 %5070
      %5072 = vrot.lane.b32.xlu0 %v5048, 127
      %v5073 = vpop.permute.xlu0 %5072
      %v5074 = vsel %vm997, %v5069, %v5071
      %v5075 = vsel %vm997, %v5071, %v5073
      %5081 = vrot.lane.b32.xlu0 %v5051, 126
      %v5082 = vpop.permute.xlu0 %5081
      %5083 = vrot.lane.b32.xlu0 %v5052, 126
      %v5084 = vpop.permute.xlu0 %5083
      %5085 = vrot.lane.b32.xlu0 %v5053, 126
      %v5086 = vpop.permute.xlu0 %5085
      %v5087 = vsel %vm1014, %v5082, %v5084
      %v5088 = vsel %vm1014, %v5084, %v5086
      %5094 = vrot.lane.b32.xlu0 %v5054, 112
      %v5095 = vpop.permute.xlu0 %5094
      %5096 = vrot.lane.b32.xlu0 %v5055, 112
      %v5097 = vpop.permute.xlu0 %5096
      %5098 = vrot.lane.b32.xlu0 %v5056, 112
      %v5099 = vpop.permute.xlu0 %5098
      %v5100 = vsel %vm1031, %v5095, %v5097
      %v5101 = vsel %vm1031, %v5097, %v5099
      %5104 = vrot.lane.b32.xlu0 %v5047, 111
      %v5105 = vpop.permute.xlu0 %5104
      %5106 = vrot.lane.b32.xlu0 %v5043, 111
      %v5107 = vpop.permute.xlu0 %5106
      %5108 = vrot.lane.b32.xlu0 %v5048, 111
      %v5109 = vpop.permute.xlu0 %5108
      %v5110 = vsel %vm1045, %v5105, %v5107
      %v5111 = vsel %vm1045, %v5107, %v5109
      %5117 = vrot.lane.b32.xlu0 %v5057, 110
      %v5118 = vpop.permute.xlu0 %5117
      %5119 = vrot.lane.b32.xlu0 %v5058, 110
      %v5120 = vpop.permute.xlu0 %5119
      %5121 = vrot.lane.b32.xlu0 %v5059, 110
      %v5122 = vpop.permute.xlu0 %5121
      %v5123 = vsel %vm1062, %v5118, %v5120
      %v5124 = vsel %vm1062, %v5120, %v5122
      %5130 = vrot.lane.b32.xlu0 %v5060, 96
      %v5131 = vpop.permute.xlu0 %5130
      %5132 = vrot.lane.b32.xlu0 %v5061, 96
      %v5133 = vpop.permute.xlu0 %5132
      %5134 = vrot.lane.b32.xlu0 %v5062, 96
      %v5135 = vpop.permute.xlu0 %5134
      %v5136 = vsel %vm1079, %v5131, %v5133
      %v5137 = vsel %vm1079, %v5133, %v5135
      %5140 = vrot.lane.b32.xlu0 %v5047, 95
      %v5141 = vpop.permute.xlu0 %5140
      %5142 = vrot.lane.b32.xlu0 %v5043, 95
      %v5143 = vpop.permute.xlu0 %5142
      %5144 = vrot.lane.b32.xlu0 %v5048, 95
      %v5145 = vpop.permute.xlu0 %5144
      %v5146 = vsel %vm1093, %v5141, %v5143
      %v5147 = vsel %vm1093, %v5143, %v5145
      %5153 = vrot.lane.b32.xlu0 %v5063, 94
      %v5154 = vpop.permute.xlu0 %5153
      %5155 = vrot.lane.b32.xlu0 %v5064, 94
      %v5156 = vpop.permute.xlu0 %5155
      %5157 = vrot.lane.b32.xlu0 %v5065, 94
      %v5158 = vpop.permute.xlu0 %5157
      %v5159 = vsel %vm1107, %v5154, %v5156
      %v5160 = vsel %vm1107, %v5156, %v5158
      %v5163 = vpack.c.bf16 %v5074, %v5049
      %v5164 = vpack.c.bf16 %v5075, %v5050
      %v5165 = vpack.c.bf16 %v5100, %v5087
      %v5166 = vpack.c.bf16 %v5101, %v5088
      %v5167 = vpack.c.bf16 %v5123, %v5110
      %v5168 = vpack.c.bf16 %v5124, %v5111
      %v5169 = vpack.c.bf16 %v5146, %v5136
      %v5170 = vpack.c.bf16 %v5147, %v5137
      %v5171 = vpack.c.bf16 %v5159, %v5159
      %v5172 = vpack.c.bf16 %v5160, %v5160
      %v5173 = vld [vmem:[%s55] sm:$0x1]
      %v5174 = vld [vmem:[#allocation3] sm:$0x1]
      %5176 = vset.pattern.permute.xlu0 0
      %5177 = vperm.xlu0 %5176, %v5174
      %v5178 = vpop.permute.xlu0 %5177
      %v5180 = vperm.slane %v5178, 0
      %v5182 = vsel %vm1379, %v5173, 0
      %v5185 = vsel %vm1121, %v5171, 0
      %v5188 = vsel %vm1121, %v5172, 0
      %5190 = vmatpush.bf16.msra.mxu0 0
      %5191 = vmatpush.bf16.msra.mxu0 0
      %5192 = vmatpush.bf16.msra.mxu0 0
      %5193 = vmatpush.bf16.msra.mxu0 %v5185
      %5194 = vmatpush.bf16.msra.mxu0 %v5169
      %5195 = vmatpush.bf16.msra.mxu0 %v5167
      %5196 = vmatpush.bf16.msra.mxu0 %v5165
      %5197 = vmatpush.bf16.msra.mxu0 %v5163
      %5198 = vmatmul.bf16.gmra.mxu0 %v5182
      %v5199 = vpop.f32.mrf.mxu0
      %v5200 = vadd.f32 %v5180, %v5199
      %v5201 = vpop.f32.mrf.mxu0
      %5202 = vdwg.mxu0
      %5203 = vmatpush.bf16.msra.mxu0 0
      %5204 = vmatpush.bf16.msra.mxu0 0
      %5205 = vmatpush.bf16.msra.mxu0 0
      %5206 = vmatpush.bf16.msra.mxu0 %v5188
      %5207 = vmatpush.bf16.msra.mxu0 %v5170
      %5208 = vmatpush.bf16.msra.mxu0 %v5168
      %5209 = vmatpush.bf16.msra.mxu0 %v5166
      %5210 = vmatpush.bf16.msra.mxu0 %v5164
      %5211 = vmatmul.bf16.gmra.mxu0 %v5182
      %v5212 = vpop.f32.mrf.mxu0
      %v5213 = vadd.f32 %v5180, %v5212
      %v5214 = vpop.f32.mrf.mxu0
      %5215 = vdwg.mxu0
      %v5216 = vxor.u32 %v5200, 2147483648
      %v5217 = vxor.u32 %v5213, 2147483648
      %v5218 = vmul.f32 %v5216, 1.442695
      %v5219 = vpow.pop %v5218
      %v5220 = vmul.f32 %v5217, 1.442695
      %v5221 = vpow.pop %v5220
      %v5222 = vadd.f32 %v5219, 1.0
      %v5223 = vadd.f32 %v5221, 1.0
      %v5224 = vrcp.pop %v5222
      %v5225 = vmul.f32 %v5222, %v5224
      %v5226 = vsub.f32 1.0, %v5225
      %v5227 = vmul.f32 %v5224, %v5226
      %v5228 = vadd.f32 %v5224, %v5227
      %vm5229 = vweird.f32 %v5222
      %vm5230 = vweird.f32 %v5224
      %vm5231 = vmor %vm5229, %vm5230
      %v5232 = vsel %vm5231, %v5224, %v5228
      %v5233 = vand.u32 2147483647, %v5222
      %vm5234 = vcmp.eq.f32.partialorder %v5233, 8.507059e+37
      %v5235 = vand.u32 %v5222, 2147483648
      %v5236 = vor.u32 1.1754944e-38, %v5235
      %v5237 = vsel %vm5234, %v5236, %v5232
      %v5238 = vmul.f32 1.0, %v5237
      %v5239 = vrcp.pop %v5223
      %v5240 = vmul.f32 %v5223, %v5239
      %v5241 = vsub.f32 1.0, %v5240
      %v5242 = vmul.f32 %v5239, %v5241
      %v5243 = vadd.f32 %v5239, %v5242
      %vm5244 = vweird.f32 %v5223
      %vm5245 = vweird.f32 %v5239
      %vm5246 = vmor %vm5244, %vm5245
      %v5247 = vsel %vm5246, %v5239, %v5243
      %v5248 = vand.u32 2147483647, %v5223
      %vm5249 = vcmp.eq.f32.partialorder %v5248, 8.507059e+37
      %v5250 = vand.u32 %v5223, 2147483648
      %v5251 = vor.u32 1.1754944e-38, %v5250
      %v5252 = vsel %vm5249, %v5251, %v5247
      %v5253 = vmul.f32 1.0, %v5252
      %v5254 = vmul.f32 %v4364, %v5238
      %v5255 = vmul.f32 %v4377, %v5253
      %v5256 = vsel %vm1112, %v5254, 0.0
      %v5257 = vsel %vm1112, %v5255, 0.0
      %v5258 = vadd.f32 %v5256, %v5257
      %5259 = vadd.xlane.f32.xlu0 %v5258
      %v5260 = vpop.xlane.xlu0 %5259
      %v5261 = vsel %vm1112, %v5238, 0.0
      %v5262 = vsel %vm1112, %v5253, 0.0
      %v5263 = vadd.f32 %v5261, %v5262
      %5264 = vadd.xlane.f32.xlu0 %v5263
      %v5265 = vpop.xlane.xlu0 %5264
      %v5266 = vrcp.pop %v5265
      %v5267 = vmul.f32 %v5265, %v5266
      %v5268 = vsub.f32 1.0, %v5267
      %v5269 = vmul.f32 %v5266, %v5268
      %v5270 = vadd.f32 %v5266, %v5269
      %vm5271 = vweird.f32 %v5265
      %vm5272 = vweird.f32 %v5266
      %vm5273 = vmor %vm5271, %vm5272
      %v5274 = vsel %vm5273, %v5266, %v5270
      %v5275 = vand.u32 2147483647, %v5265
      %vm5276 = vcmp.eq.f32.partialorder %v5275, 8.507059e+37
      %v5277 = vand.u32 %v5265, 2147483648
      %v5278 = vor.u32 1.1754944e-38, %v5277
      %v5279 = vsel %vm5276, %v5278, %v5274
      %v5280 = vmul.f32 %v5260, %v5279
      %vm5281 = vcmask 0
      %5282 = vst.msk [vmem:[%s899] sm:$0x1] %vm5281, %v5280
      %p5283 = scmp.lt.s32.totalorder %s74, 1
      %s5284 = scalar_select %p5283, %s74, 1
      %s5285 = scalar_lea.vmem %s59, %s5284
      // Predicated region
      $region137: #{attention_pixel_discriminator.1} parent=135 // pred_check
        %p5286 = pneg %p706
      $region138: #{attention_pixel_discriminator.1} parent=135 // pred_check_branch
        %5288 = sbr.rel (%p5286) target = $region140
      $region139: #{attention_pixel_discriminator.1} parent=135 // pred_region
        _
      $region140: #{attention_pixel_discriminator.1} parent=135 // pred_fallthru
        _
    $region136: #{attention_pixel_discriminator.1} parent=5 // pred_fallthru
      _
    %p5289 = scmp.le.s32.totalorder 2, %s69
    // Predicated region
    $region141: #{attention_pixel_discriminator.1} parent=5 // pred_check
      %p5290 = pneg %p5289
    $region142: #{attention_pixel_discriminator.1} parent=5 // pred_check_branch
      %5292 = sbr.rel (%p5290) target = $region144
    $region143: #{attention_pixel_discriminator.1} parent=5 // pred_region
      %s5293 = ssub.s32 %s69, 2
      // Predicated region
      $region145: #{attention_pixel_discriminator.1} parent=143 // pred_check
        %p5294 = pneg %p712
      $region146: #{attention_pixel_discriminator.1} parent=143 // pred_check_branch
        %5296 = sbr.rel (%p5294) target = $region148
      $region147: #{attention_pixel_discriminator.1} parent=143 // pred_region
        %p5297 = scmp.lt.s32.totalorder %s75, 1
        %s5298 = scalar_select %p5297, %s75, 1
        %s5299 = scalar_lea.vmem %s59, %s5298
      $region148: #{attention_pixel_discriminator.1} parent=143 // pred_fallthru
        _
    $region144: #{attention_pixel_discriminator.1} parent=5 // pred_fallthru
      _
  $region6: #{attention_pixel_discriminator.1} parent=0 // loop_footer
    %s73 = sadd.s32 1, %s69
  $region7: #{attention_pixel_discriminator.1} parent=0 // loop_footer_branch
    %68 = sbr.rel target = $region3
  $region8: #{attention_pixel_discriminator.1} parent=0 // loop_exit
    _

</llo_original>
